<compile_context>
chip_gen: v7x
topology: tpu7x:2x2x1
jax: 0.10.0
libtpu: 0.0.40
codegen_flags: <defaults>
</compile_context>

<pallas_src>
import math
import functools

import jax
import jax.numpy as jnp
from jax.experimental import pallas as pl
from jax.experimental.pallas import tpu as pltpu


PARAM_ORDER = (
    'sp_ln_g', 'sp_ln_b', 'sp_win', 'sp_bin', 'sp_wout', 'sp_bout',
    'm1_ln_g', 'm1_ln_b', 'm1_w1', 'm1_b1', 'm1_w2', 'm1_b2',
    'tp_ln_g', 'tp_ln_b', 'tp_win_bd', 'tp_bin_bd', 'tp_wout_bd', 'tp_bout_bd',
    'm2_ln_g', 'm2_ln_b', 'm2_w1', 'm2_b1', 'm2_w2', 'm2_b2',
)

# Big matrices go to the MXU -> cast to bf16 in the wrapper.  Biases / LN params
# stay f32 (elementwise path).
MATMUL_WEIGHTS = frozenset({
    'sp_win', 'sp_wout', 'm1_w1', 'm1_w2',
    'tp_win_bd', 'tp_wout_bd', 'm2_w1', 'm2_w2',
})


# ---------------------------------------------------------------------------
# Fused kernel factory (one packed group of G batch elements per grid step)
# ---------------------------------------------------------------------------
def make_fused_block_kernel(*, C, S, G, T, num_heads, matmul_dtype):
    L = G * S                       # lane dimension of the in-kernel slab
    D = C // T                      # temporal embedding dim
    assert C % T == 0
    assert C % num_heads == 0       # spatial MHA head split
    assert D % num_heads == 0       # temporal MHA head split
    hd_s = C // num_heads
    hd_t = D // num_heads
    scale_s = 1.0 / math.sqrt(hd_s)
    scale_t = 1.0 / math.sqrt(hd_t)
    inv_sqrt2 = 1.0 / math.sqrt(2.0)
    f32 = jnp.float32
    mdt = matmul_dtype

    # ---------------- helpers (all elementwise math in f32) ----------------
    def layernorm_cols(x, g, b):
        # LayerNorm over the channel (sublane) axis of a (F, L) slab; eps=1e-5.
        mu = jnp.mean(x, axis=0, keepdims=True)
        var = jnp.mean(jnp.square(x - mu), axis=0, keepdims=True)
        return (x - mu) * jax.lax.rsqrt(var + 1e-5) * g + b

    def gelu_exact(x):              # matches nn.GELU() default (erf form)
        return 0.5 * x * (1.0 + jax.lax.erf(x * inv_sqrt2))

    def mlp(x, g, b, w1, b1, w2, b2):
        # LayerNorm(C) -> Linear(C,4C) -> GELU -> Linear(4C,C), channel-major.
        xn = layernorm_cols(x, g, b)
        h = jnp.dot(w1, xn.astype(mdt), preferred_element_type=f32) + b1
        h = gelu_exact(h)
        return jnp.dot(w2, h.astype(mdt), preferred_element_type=f32) + b2

    def spatial_attention(xn, w_in, b_in, w_out, b_out, bias):
        # xn: (C, L) normalised; MultiheadAttention(embed=C, heads=num_heads)
        # over the H*W positions of each packed batch element (bias keeps the
        # packed elements from attending to each other).
        qkv = jnp.dot(w_in, xn.astype(mdt), preferred_element_type=f32) + b_in   # (3C, L)
        q3 = (qkv[0:C] * scale_s).reshape(num_heads, hd_s, L).astype(mdt)        # scale folded into q
        k3 = qkv[C:2 * C].reshape(num_heads, hd_s, L).astype(mdt)
        v3 = qkv[2 * C:3 * C].reshape(num_heads, hd_s, L).astype(mdt)
        # scores[h, q, k] = sum_d q3[h, d, q] * k3[h, d, k]  (contract hd directly,
        # no transposed copy of q).
        s = jax.lax.dot_general(q3, k3, (((1,), (1,)), ((0,), (0,))),
                                preferred_element_type=f32)                       # (H, L, L)
        if bias is not None:
            s = s + bias            # block-diagonal 0 / -1e30 mask across packed elems
        s = s - jnp.max(s, axis=-1, keepdims=True)
        p = jnp.exp(s)
        p = p / jnp.sum(p, axis=-1, keepdims=True)   # exact normalisation
        # ctx[h, d, q] = sum_k v3[h, d, k] * p[h, q, k]
        ctx = jax.lax.dot_general(v3, p.astype(mdt), (((2,), (2,)), ((0,), (0,))),
                                  preferred_element_type=f32)                     # (H, hd, L)
        return jnp.dot(w_out, ctx.reshape(C, L).astype(mdt),
                       preferred_element_type=f32) + b_out

    def softmax_over_steps(parts):
        # Exact softmax over a short static list of (H, L) score slabs.
        m = parts[0]
        for s_ in parts[1:]:
            m = jnp.maximum(m, s_)
        es = [jnp.exp(s_ - m) for s_ in parts]
        denom = es[0]
        for e in es[1:]:
            denom = denom + e
        inv = 1.0 / denom
        return [e * inv for e in es]

    def temporal_attention(y, g, b, w_in, b_in, w_out, b_out):
        # y: (C, L) with channel index = t*D + d (NCHW layout of the reference);
        # per spatial position: MHA over the T timesteps with embed dim D.
        # Vectorised per-timestep LayerNorm: one (T, D, L) LN over axis=1.
        y3 = y.reshape(T, D, L)
        mu = jnp.mean(y3, axis=1, keepdims=True)
        var = jnp.mean(jnp.square(y3 - mu), axis=1, keepdims=True)
        xn = ((y3 - mu) * jax.lax.rsqrt(var + 1e-5) * g.reshape(1, D, 1)
              + b.reshape(1, D, 1)).reshape(C, L)
        # Block-diagonal (shared per-timestep weights) QKV projection: one
        # lane-dense matmul for all timesteps at once.
        qkv = jnp.dot(w_in, xn.astype(mdt), preferred_element_type=f32) + b_in    # (3C, L)
        q = [qkv[t * 3 * D + 0 * D: t * 3 * D + 1 * D] * scale_t for t in range(T)]
        k = [qkv[t * 3 * D + 1 * D: t * 3 * D + 2 * D] for t in range(T)]
        v = [qkv[t * 3 * D + 2 * D: t * 3 * D + 3 * D].reshape(num_heads, hd_t, L)
             for t in range(T)]
        ctx_parts = []
        for tq in range(T):         # static unroll; T (num_time_steps) is small
            # Per-head scores via VPU multiply + sublane reduction (no tiny MXU matmuls).
            scores = [jnp.sum((q[tq] * k[tk]).reshape(num_heads, hd_t, L), axis=1)
                      for tk in range(T)]                                          # T x (H, L)
            probs = softmax_over_steps(scores)
            # Per-head context via sublane broadcast of probs over hd_t rows.
            ctx3 = probs[0][:, None, :] * v[0]
            for tk in range(1, T):
                ctx3 = ctx3 + probs[tk][:, None, :] * v[tk]
            ctx_parts.append(ctx3.reshape(D, L))
        ctx_all = jnp.concatenate(ctx_parts, axis=0)                               # (C, L)
        return jnp.dot(w_out, ctx_all.astype(mdt), preferred_element_type=f32) + b_out

    # ---------------- kernel body ----------------
    def kernel(*refs):
        x_ref = refs[0]
        if G > 1:
            bias = refs[1][...]
            wrefs = refs[2:-1]
        else:
            bias = None
            wrefs = refs[1:-1]
        o_ref = refs[-1]
        (sp_g, sp_b, sp_win, sp_bin, sp_wout, sp_bout,
         m1_g, m1_b, m1_w1, m1_b1, m1_w2, m1_b2,
         tp_g, tp_b, tp_win, tp_bin, tp_wout, tp_bout,
         m2_g, m2_b, m2_w1, m2_b1, m2_w2, m2_b2) = [r[...] for r in wrefs]

        # x_ref / o_ref: (C, L) channel-major slab of G packed batch elements.
        x = x_ref[...].astype(f32)

        # 1) SpatialTransformer: LN(C) + MHA over the H*W sequence, + residual.
        y = x + spatial_attention(layernorm_cols(x, sp_g, sp_b),
                                  sp_win, sp_bin, sp_wout, sp_bout, bias)
        # 2) mlp: LN + Linear(C,4C) + GELU + Linear(4C,C), + residual.
        y = y + mlp(y, m1_g, m1_b, m1_w1, m1_b1, m1_w2, m1_b2)
        # 3) TemporalTransformer: per-pixel MHA over T timesteps, + residual.
        y = y + temporal_attention(y, tp_g, tp_b, tp_win, tp_bin, tp_wout, tp_bout)
        # 4) mlp2, + residual.
        y = y + mlp(y, m2_g, m2_b, m2_w1, m2_b1, m2_w2, m2_b2)
        # 5) outer residual of SharedDiffusionTransformerBlock (the reference really
        #    adds the original input again on top of the per-sub-block residuals).
        o_ref[...] = (y + x).astype(o_ref.dtype)

    return kernel


# ---------------------------------------------------------------------------
# Wrapper
# ---------------------------------------------------------------------------
def _pick_group(B, S):
    # Pack batch elements into the lane dim until the minor dimension of the
    # in-kernel slab reaches 256 (v6e/v7x MXU width); >=128 gives full vregs and
    # unmasked stores.  G must divide B.
    G = 1
    while G < B and B % (2 * G) == 0 and G * S < 256:
        G *= 2
    return G


def _const_spec(shape):
    n = len(shape)
    return pl.BlockSpec(shape, lambda i, _n=n: (0,) * _n)


def _cost_estimate(B, C, S, T, num_heads, param_bytes, act_bytes):
    N = B * S
    D = C // T
    flops = 0
    flops += 2 * (3 * C) * C * N + 2 * C * C * N          # spatial qkv + out-proj
    flops += 2 * 2 * C * S * N                            # spatial scores + context
    flops += 2 * 16 * C * C * N                           # two MLPs
    flops += 2 * (3 * C) * C * N + 2 * C * C * N          # temporal qkv + out-proj (block-diag)
    flops += 4 * T * T * D * N                            # temporal scores/context (elementwise)
    transcend = num_heads * S * N + T * T * num_heads * N + 2 * (4 * C) * N
    return pl.CostEstimate(flops=int(flops), transcendentals=int(transcend),
                           bytes_accessed=int(2 * act_bytes + param_bytes))


def shared_block_forward(x_nchw, params, *, num_time_steps, num_heads,
                         group=None, matmul_dtype=jnp.bfloat16):
    B, C, H, W = x_nchw.shape
    S = H * W
    T = num_time_steps
    assert C % T == 0

    G = group if group is not None else _pick_group(B, S)
    assert B % G == 0
    Bg = B // G
    L = G * S

    # Wrapper-side layout plumbing: pack G batch elements into the lane dim so the
    # in-kernel slab (and the output store) is lane-dense.  (For G=1 this is a
    # plain reshape.)
    x_slab = x_nchw.reshape(Bg, G, C, S).transpose(0, 2, 1, 3).reshape(Bg, C, L)

    # bf16 MXU weights (halves weight VMEM + DMA bytes); biases / LN params stay f32.
    weights = []
    for name in PARAM_ORDER:
        p = params[name]
        if name in MATMUL_WEIGHTS:
            p = p.astype(matmul_dtype)
        weights.append(p)

    inputs = [x_slab]
    in_specs = [pl.BlockSpec((None, C, L), lambda i: (i, 0, 0))]
    if G > 1:
        # Precomputed (wrapper-side) block-diagonal attention bias: 0 within a
        # packed batch element, -1e30 across elements.
        pos = jnp.arange(L, dtype=jnp.int32) // S
        attn_bias = jnp.where(pos[:, None] == pos[None, :], 0.0, -1e30).astype(jnp.float32)
        inputs.append(attn_bias)
        in_specs.append(pl.BlockSpec((L, L), lambda i: (0, 0)))
    inputs += weights
    in_specs += [_const_spec(tuple(p.shape)) for p in weights]

    kernel = make_fused_block_kernel(C=C, S=S, G=G, T=T, num_heads=num_heads,
                                     matmul_dtype=matmul_dtype)

    param_bytes = sum(int(p.size) * jnp.dtype(p.dtype).itemsize for p in weights)
    act_bytes = int(x_slab.size) * jnp.dtype(x_nchw.dtype).itemsize
    cost = _cost_estimate(B, C, S, T, num_heads, param_bytes, act_bytes)

    out = pl.pallas_call(
        kernel,
        out_shape=jax.ShapeDtypeStruct((Bg, C, L), x_nchw.dtype),
        grid=(Bg,),
        in_specs=in_specs,
        out_specs=pl.BlockSpec((None, C, L), lambda i: (i, 0, 0)),
        compiler_params=pltpu.CompilerParams(
            dimension_semantics=("parallel",),      # independent groups -> 2 TCs on v7x
            vmem_limit_bytes=48 * 1024 * 1024,      # explicit, > 32 MiB default, < v7x physical
        ),
        cost_estimate=cost,
    )(*inputs)

    return out.reshape(Bg, C, G, S).transpose(0, 2, 1, 3).reshape(B, C, H, W)


# ---------------------------------------------------------------------------
# Parameters (deterministic synthetic init, PyTorch (out_features, in_features)
# orientation; temporal weights expanded once into block-diagonal form)
# ---------------------------------------------------------------------------
def _block_diag(w, reps):
    m, n = w.shape
    out = jnp.zeros((reps * m, reps * n), w.dtype)
    for t in range(reps):
        out = out.at[t * m:(t + 1) * m, t * n:(t + 1) * n].set(w)
    return out


def init_params(key, channels, num_time_steps, num_heads):
    C = channels
    T = num_time_steps
    D = C // T
    assert C % T == 0 and C % num_heads == 0 and D % num_heads == 0
    keys = jax.random.split(key, 8)

    def lin(k, fan_out, fan_in):
        kw, kb = jax.random.split(k)
        w = jax.random.normal(kw, (fan_out, fan_in), jnp.float32) * 0.02
        b = jax.random.normal(kb, (fan_out, 1), jnp.float32) * 0.02
        return w, b

    p = {}
    # SpatialTransformer: LayerNorm(C) + MHA(embed=C)
    p['sp_ln_g'] = jnp.ones((C, 1), jnp.float32)
    p['sp_ln_b'] = jnp.zeros((C, 1), jnp.float32)
    p['sp_win'], p['sp_bin'] = lin(keys[0], 3 * C, C)
    p['sp_wout'], p['sp_bout'] = lin(keys[1], C, C)
    # mlp: LayerNorm(C) + Linear(C,4C) + GELU + Linear(4C,C)
    p['m1_ln_g'] = jnp.ones((C, 1), jnp.float32)
    p['m1_ln_b'] = jnp.zeros((C, 1), jnp.float32)
    p['m1_w1'], p['m1_b1'] = lin(keys[2], 4 * C, C)
    p['m1_w2'], p['m1_b2'] = lin(keys[3], C, 4 * C)
    # TemporalTransformer: LayerNorm(D) + MHA(embed=D); the single nn.MultiheadAttention
    # is shared by all T timesteps, so the per-timestep projections are expanded once
    # into block-diagonal (3C,C)/(C,C) matrices (channel layout = t*D + d, matching NCHW).
    p['tp_ln_g'] = jnp.ones((D, 1), jnp.float32)
    p['tp_ln_b'] = jnp.zeros((D, 1), jnp.float32)
    tw_in, tb_in = lin(keys[4], 3 * D, D)
    tw_out, tb_out = lin(keys[5], D, D)
    p['tp_win_bd'] = _block_diag(tw_in, T)         # (3C, C)
    p['tp_bin_bd'] = jnp.tile(tb_in, (T, 1))       # (3C, 1)
    p['tp_wout_bd'] = _block_diag(tw_out, T)       # (C, C)
    p['tp_bout_bd'] = jnp.tile(tb_out, (T, 1))     # (C, 1)
    # mlp2
    p['m2_ln_g'] = jnp.ones((C, 1), jnp.float32)
    p['m2_ln_b'] = jnp.zeros((C, 1), jnp.float32)
    p['m2_w1'], p['m2_b1'] = lin(keys[6], 4 * C, C)
    p['m2_w2'], p['m2_b2'] = lin(keys[7], C, 4 * C)
    return p


# ---------------------------------------------------------------------------
if __name__ == "__main__":
    # channels=32, num_time_steps=2 -> temporal_dim=16, num_heads=4 (divides both)
    B, C, H, W = 2, 32, 8, 8
    NUM_TIME_STEPS = 2
    NUM_HEADS = 4

    key = jax.random.PRNGKey(0)
    kx, kp = jax.random.split(key)
    x = jax.random.normal(kx, (B, C, H, W), jnp.float32)
    params = init_params(kp, C, NUM_TIME_STEPS, NUM_HEADS)

    fwd = jax.jit(functools.partial(shared_block_forward,
                                    num_time_steps=NUM_TIME_STEPS,
                                    num_heads=NUM_HEADS))
    out = jax.block_until_ready(fwd(x, params))

    assert out.shape == (B, C, H, W) and out.dtype == jnp.float32
    assert bool(jnp.all(jnp.isfinite(out)))
    print("KERNEL_OK")
</pallas_src>

<mosaic_0001>
module attributes {stable_mosaic.version = 11 : i64} {
  func.func @kernel(%arg0: i32, %arg1: memref<1x32x128xf32, #tpu.memory_space<vmem>>, %arg2: memref<128x128xf32, #tpu.memory_space<vmem>>, %arg3: memref<32x1xf32, #tpu.memory_space<vmem>>, %arg4: memref<32x1xf32, #tpu.memory_space<vmem>>, %arg5: memref<96x32xbf16, #tpu.memory_space<vmem>>, %arg6: memref<96x1xf32, #tpu.memory_space<vmem>>, %arg7: memref<32x32xbf16, #tpu.memory_space<vmem>>, %arg8: memref<32x1xf32, #tpu.memory_space<vmem>>, %arg9: memref<32x1xf32, #tpu.memory_space<vmem>>, %arg10: memref<32x1xf32, #tpu.memory_space<vmem>>, %arg11: memref<128x32xbf16, #tpu.memory_space<vmem>>, %arg12: memref<128x1xf32, #tpu.memory_space<vmem>>, %arg13: memref<32x128xbf16, #tpu.memory_space<vmem>>, %arg14: memref<32x1xf32, #tpu.memory_space<vmem>>, %arg15: memref<16x1xf32, #tpu.memory_space<vmem>>, %arg16: memref<16x1xf32, #tpu.memory_space<vmem>>, %arg17: memref<96x32xbf16, #tpu.memory_space<vmem>>, %arg18: memref<96x1xf32, #tpu.memory_space<vmem>>, %arg19: memref<32x32xbf16, #tpu.memory_space<vmem>>, %arg20: memref<32x1xf32, #tpu.memory_space<vmem>>, %arg21: memref<32x1xf32, #tpu.memory_space<vmem>>, %arg22: memref<32x1xf32, #tpu.memory_space<vmem>>, %arg23: memref<128x32xbf16, #tpu.memory_space<vmem>>, %arg24: memref<128x1xf32, #tpu.memory_space<vmem>>, %arg25: memref<32x128xbf16, #tpu.memory_space<vmem>>, %arg26: memref<32x1xf32, #tpu.memory_space<vmem>>, %arg27: memref<1x32x128xf32, #tpu.memory_space<vmem>>) attributes {dimension_semantics = [#tpu.dimension_semantics<parallel>], iteration_bounds = array<i64: 1>, scalar_prefetch = 0 : i64, scratch_operands = 0 : i64, tpu.core_type = #tpu.core_type<tc>, window_params = [{transform_indices = @transform_0, window_bounds = array<i64: 1, 32, 128>}, {pipeline_mode = #tpu.pipeline_mode<synchronous>, transform_indices = @transform_1, window_bounds = array<i64: 128, 128>}, {pipeline_mode = #tpu.pipeline_mode<synchronous>, transform_indices = @transform_2, window_bounds = array<i64: 32, 1>}, {pipeline_mode = #tpu.pipeline_mode<synchronous>, transform_indices = @transform_3, window_bounds = array<i64: 32, 1>}, {pipeline_mode = #tpu.pipeline_mode<synchronous>, transform_indices = @transform_4, window_bounds = array<i64: 96, 32>}, {pipeline_mode = #tpu.pipeline_mode<synchronous>, transform_indices = @transform_5, window_bounds = array<i64: 96, 1>}, {pipeline_mode = #tpu.pipeline_mode<synchronous>, transform_indices = @transform_6, window_bounds = array<i64: 32, 32>}, {pipeline_mode = #tpu.pipeline_mode<synchronous>, transform_indices = @transform_7, window_bounds = array<i64: 32, 1>}, {pipeline_mode = #tpu.pipeline_mode<synchronous>, transform_indices = @transform_8, window_bounds = array<i64: 32, 1>}, {pipeline_mode = #tpu.pipeline_mode<synchronous>, transform_indices = @transform_9, window_bounds = array<i64: 32, 1>}, {pipeline_mode = #tpu.pipeline_mode<synchronous>, transform_indices = @transform_10, window_bounds = array<i64: 128, 32>}, {pipeline_mode = #tpu.pipeline_mode<synchronous>, transform_indices = @transform_11, window_bounds = array<i64: 128, 1>}, {pipeline_mode = #tpu.pipeline_mode<synchronous>, transform_indices = @transform_12, window_bounds = array<i64: 32, 128>}, {pipeline_mode = #tpu.pipeline_mode<synchronous>, transform_indices = @transform_13, window_bounds = array<i64: 32, 1>}, {pipeline_mode = #tpu.pipeline_mode<synchronous>, transform_indices = @transform_14, window_bounds = array<i64: 16, 1>}, {pipeline_mode = #tpu.pipeline_mode<synchronous>, transform_indices = @transform_15, window_bounds = array<i64: 16, 1>}, {pipeline_mode = #tpu.pipeline_mode<synchronous>, transform_indices = @transform_16, window_bounds = array<i64: 96, 32>}, {pipeline_mode = #tpu.pipeline_mode<synchronous>, transform_indices = @transform_17, window_bounds = array<i64: 96, 1>}, {pipeline_mode = #tpu.pipeline_mode<synchronous>, transform_indices = @transform_18, window_bounds = array<i64: 32, 32>}, {pipeline_mode = #tpu.pipeline_mode<synchronous>, transform_indices = @transform_19, window_bounds = array<i64: 32, 1>}, {pipeline_mode = #tpu.pipeline_mode<synchronous>, transform_indices = @transform_20, window_bounds = array<i64: 32, 1>}, {pipeline_mode = #tpu.pipeline_mode<synchronous>, transform_indices = @transform_21, window_bounds = array<i64: 32, 1>}, {pipeline_mode = #tpu.pipeline_mode<synchronous>, transform_indices = @transform_22, window_bounds = array<i64: 128, 32>}, {pipeline_mode = #tpu.pipeline_mode<synchronous>, transform_indices = @transform_23, window_bounds = array<i64: 128, 1>}, {pipeline_mode = #tpu.pipeline_mode<synchronous>, transform_indices = @transform_24, window_bounds = array<i64: 32, 128>}, {pipeline_mode = #tpu.pipeline_mode<synchronous>, transform_indices = @transform_25, window_bounds = array<i64: 32, 1>}, {transform_indices = @transform_26, window_bounds = array<i64: 1, 32, 128>}]} {
    %c0 = arith.constant 0 : index
    %c0_0 = arith.constant 0 : index
    %0 = vector.load %arg2[%c0, %c0_0] : memref<128x128xf32, #tpu.memory_space<vmem>>, vector<128x128xf32>
    %c0_1 = arith.constant 0 : index
    %c0_2 = arith.constant 0 : index
    %1 = vector.load %arg3[%c0_1, %c0_2] : memref<32x1xf32, #tpu.memory_space<vmem>>, vector<32x1xf32>
    %c0_3 = arith.constant 0 : index
    %c0_4 = arith.constant 0 : index
    %2 = vector.load %arg4[%c0_3, %c0_4] : memref<32x1xf32, #tpu.memory_space<vmem>>, vector<32x1xf32>
    %c0_5 = arith.constant 0 : index
    %c0_6 = arith.constant 0 : index
    %3 = vector.load %arg5[%c0_5, %c0_6] : memref<96x32xbf16, #tpu.memory_space<vmem>>, vector<96x32xbf16>
    %c0_7 = arith.constant 0 : index
    %c0_8 = arith.constant 0 : index
    %4 = vector.load %arg6[%c0_7, %c0_8] : memref<96x1xf32, #tpu.memory_space<vmem>>, vector<96x1xf32>
    %c0_9 = arith.constant 0 : index
    %c0_10 = arith.constant 0 : index
    %5 = vector.load %arg7[%c0_9, %c0_10] : memref<32x32xbf16, #tpu.memory_space<vmem>>, vector<32x32xbf16>
    %c0_11 = arith.constant 0 : index
    %c0_12 = arith.constant 0 : index
    %6 = vector.load %arg8[%c0_11, %c0_12] : memref<32x1xf32, #tpu.memory_space<vmem>>, vector<32x1xf32>
    %c0_13 = arith.constant 0 : index
    %c0_14 = arith.constant 0 : index
    %7 = vector.load %arg9[%c0_13, %c0_14] : memref<32x1xf32, #tpu.memory_space<vmem>>, vector<32x1xf32>
    %c0_15 = arith.constant 0 : index
    %c0_16 = arith.constant 0 : index
    %8 = vector.load %arg10[%c0_15, %c0_16] : memref<32x1xf32, #tpu.memory_space<vmem>>, vector<32x1xf32>
    %c0_17 = arith.constant 0 : index
    %c0_18 = arith.constant 0 : index
    %9 = vector.load %arg11[%c0_17, %c0_18] : memref<128x32xbf16, #tpu.memory_space<vmem>>, vector<128x32xbf16>
    %c0_19 = arith.constant 0 : index
    %c0_20 = arith.constant 0 : index
    %10 = vector.load %arg12[%c0_19, %c0_20] : memref<128x1xf32, #tpu.memory_space<vmem>>, vector<128x1xf32>
    %c0_21 = arith.constant 0 : index
    %c0_22 = arith.constant 0 : index
    %11 = vector.load %arg13[%c0_21, %c0_22] : memref<32x128xbf16, #tpu.memory_space<vmem>>, vector<32x128xbf16>
    %c0_23 = arith.constant 0 : index
    %c0_24 = arith.constant 0 : index
    %12 = vector.load %arg14[%c0_23, %c0_24] : memref<32x1xf32, #tpu.memory_space<vmem>>, vector<32x1xf32>
    %c0_25 = arith.constant 0 : index
    %c0_26 = arith.constant 0 : index
    %13 = vector.load %arg15[%c0_25, %c0_26] : memref<16x1xf32, #tpu.memory_space<vmem>>, vector<16x1xf32>
    %c0_27 = arith.constant 0 : index
    %c0_28 = arith.constant 0 : index
    %14 = vector.load %arg16[%c0_27, %c0_28] : memref<16x1xf32, #tpu.memory_space<vmem>>, vector<16x1xf32>
    %c0_29 = arith.constant 0 : index
    %c0_30 = arith.constant 0 : index
    %15 = vector.load %arg17[%c0_29, %c0_30] : memref<96x32xbf16, #tpu.memory_space<vmem>>, vector<96x32xbf16>
    %c0_31 = arith.constant 0 : index
    %c0_32 = arith.constant 0 : index
    %16 = vector.load %arg18[%c0_31, %c0_32] : memref<96x1xf32, #tpu.memory_space<vmem>>, vector<96x1xf32>
    %c0_33 = arith.constant 0 : index
    %c0_34 = arith.constant 0 : index
    %17 = vector.load %arg19[%c0_33, %c0_34] : memref<32x32xbf16, #tpu.memory_space<vmem>>, vector<32x32xbf16>
    %c0_35 = arith.constant 0 : index
    %c0_36 = arith.constant 0 : index
    %18 = vector.load %arg20[%c0_35, %c0_36] : memref<32x1xf32, #tpu.memory_space<vmem>>, vector<32x1xf32>
    %c0_37 = arith.constant 0 : index
    %c0_38 = arith.constant 0 : index
    %19 = vector.load %arg21[%c0_37, %c0_38] : memref<32x1xf32, #tpu.memory_space<vmem>>, vector<32x1xf32>
    %c0_39 = arith.constant 0 : index
    %c0_40 = arith.constant 0 : index
    %20 = vector.load %arg22[%c0_39, %c0_40] : memref<32x1xf32, #tpu.memory_space<vmem>>, vector<32x1xf32>
    %c0_41 = arith.constant 0 : index
    %c0_42 = arith.constant 0 : index
    %21 = vector.load %arg23[%c0_41, %c0_42] : memref<128x32xbf16, #tpu.memory_space<vmem>>, vector<128x32xbf16>
    %c0_43 = arith.constant 0 : index
    %c0_44 = arith.constant 0 : index
    %22 = vector.load %arg24[%c0_43, %c0_44] : memref<128x1xf32, #tpu.memory_space<vmem>>, vector<128x1xf32>
    %c0_45 = arith.constant 0 : index
    %c0_46 = arith.constant 0 : index
    %23 = vector.load %arg25[%c0_45, %c0_46] : memref<32x128xbf16, #tpu.memory_space<vmem>>, vector<32x128xbf16>
    %c0_47 = arith.constant 0 : index
    %c0_48 = arith.constant 0 : index
    %24 = vector.load %arg26[%c0_47, %c0_48] : memref<32x1xf32, #tpu.memory_space<vmem>>, vector<32x1xf32>
    %c0_49 = arith.constant 0 : index
    %c0_50 = arith.constant 0 : index
    %c0_51 = arith.constant 0 : index
    %25 = vector.load %arg1[%c0_49, %c0_50, %c0_51] : memref<1x32x128xf32, #tpu.memory_space<vmem>>, vector<1x32x128xf32>
    %26 = vector.shape_cast %25 : vector<1x32x128xf32> to vector<32x128xf32>
    %cst = arith.constant dense<0.000000e+00> : vector<128xf32>
    %27 = vector.multi_reduction <add>, %26, %cst [0] : vector<32x128xf32> to vector<128xf32>
    %28 = vector.shape_cast %27 : vector<128xf32> to vector<1x128xf32>
    %cst_52 = arith.constant 3.200000e+01 : f32
    %29 = vector.broadcast %cst_52 : f32 to vector<1x128xf32>
    %30 = arith.divf %28, %29 : vector<1x128xf32>
    %31 = vector.broadcast %30 : vector<1x128xf32> to vector<32x128xf32>
    %32 = arith.subf %26, %31 : vector<32x128xf32>
    %33 = arith.mulf %32, %32 : vector<32x128xf32>
    %cst_53 = arith.constant dense<0.000000e+00> : vector<128xf32>
    %34 = vector.multi_reduction <add>, %33, %cst_53 [0] : vector<32x128xf32> to vector<128xf32>
    %35 = vector.shape_cast %34 : vector<128xf32> to vector<1x128xf32>
    %cst_54 = arith.constant 3.200000e+01 : f32
    %36 = vector.broadcast %cst_54 : f32 to vector<1x128xf32>
    %37 = arith.divf %35, %36 : vector<1x128xf32>
    %38 = vector.broadcast %30 : vector<1x128xf32> to vector<32x128xf32>
    %39 = arith.subf %26, %38 : vector<32x128xf32>
    %cst_55 = arith.constant 9.99999974E-6 : f32
    %40 = vector.broadcast %cst_55 : f32 to vector<1x128xf32>
    %41 = arith.addf %37, %40 : vector<1x128xf32>
    %42 = math.rsqrt %41 : vector<1x128xf32>
    %43 = vector.broadcast %42 : vector<1x128xf32> to vector<32x128xf32>
    %44 = arith.mulf %39, %43 : vector<32x128xf32>
    %45 = vector.broadcast %1 : vector<32x1xf32> to vector<32x128xf32>
    %46 = arith.mulf %44, %45 : vector<32x128xf32>
    %47 = vector.broadcast %2 : vector<32x1xf32> to vector<32x128xf32>
    %48 = arith.addf %46, %47 : vector<32x128xf32>
    %49 = arith.truncf %48 : vector<32x128xf32> to vector<32x128xbf16>
    %cst_56 = arith.constant dense<0.000000e+00> : vector<96x128xf32>
    %50 = tpu.matmul %3, %49, %cst_56 {dimension_numbers = #tpu.dot_dimension_numbers<[1], [0], [0], [1], [0, 0, 1, 1], [], []>} : vector<96x32xbf16>, vector<32x128xbf16>, vector<96x128xf32> -> vector<96x128xf32>
    %51 = vector.broadcast %4 : vector<96x1xf32> to vector<96x128xf32>
    %52 = arith.addf %50, %51 : vector<96x128xf32>
    %53 = vector.extract_strided_slice %52 {offsets = [0, 0], sizes = [32, 128], strides = [1, 1]} : vector<96x128xf32> to vector<32x128xf32>
    %cst_57 = arith.constant 0.353553385 : f32
    %54 = vector.broadcast %cst_57 : f32 to vector<32x128xf32>
    %55 = arith.mulf %53, %54 : vector<32x128xf32>
    %56 = vector.shape_cast %55 : vector<32x128xf32> to vector<4x8x128xf32>
    %57 = arith.truncf %56 : vector<4x8x128xf32> to vector<4x8x128xbf16>
    %58 = vector.extract_strided_slice %52 {offsets = [32, 0], sizes = [32, 128], strides = [1, 1]} : vector<96x128xf32> to vector<32x128xf32>
    %59 = vector.shape_cast %58 : vector<32x128xf32> to vector<4x8x128xf32>
    %60 = arith.truncf %59 : vector<4x8x128xf32> to vector<4x8x128xbf16>
    %61 = vector.extract_strided_slice %52 {offsets = [64, 0], sizes = [32, 128], strides = [1, 1]} : vector<96x128xf32> to vector<32x128xf32>
    %62 = vector.shape_cast %61 : vector<32x128xf32> to vector<4x8x128xf32>
    %63 = arith.truncf %62 : vector<4x8x128xf32> to vector<4x8x128xbf16>
    %cst_58 = arith.constant dense<0.000000e+00> : vector<4x128x128xf32>
    %64 = tpu.matmul %57, %60, %cst_58 {dimension_numbers = #tpu.dot_dimension_numbers<[1], [1], [2], [2], [0, 0, 0, 2, 1, 2], [0], [0]>} : vector<4x8x128xbf16>, vector<4x8x128xbf16>, vector<4x128x128xf32> -> vector<4x128x128xf32>
    %65 = vector.shape_cast %0 : vector<128x128xf32> to vector<1x128x128xf32>
    %66 = vector.broadcast %65 : vector<1x128x128xf32> to vector<4x128x128xf32>
    %67 = arith.addf %64, %66 : vector<4x128x128xf32>
    %cst_59 = arith.constant dense<0xFF800000> : vector<4x128xf32>
    %68 = vector.multi_reduction <maximumf>, %67, %cst_59 [2] : vector<4x128x128xf32> to vector<4x128xf32>
    %69 = vector.shape_cast %68 : vector<4x128xf32> to vector<4x128x1xf32>
    %70 = vector.broadcast %69 : vector<4x128x1xf32> to vector<4x128x128xf32>
    %71 = arith.subf %67, %70 : vector<4x128x128xf32>
    %72 = math.exp %71 : vector<4x128x128xf32>
    %cst_60 = arith.constant dense<0.000000e+00> : vector<4x128xf32>
    %73 = vector.multi_reduction <add>, %72, %cst_60 [2] : vector<4x128x128xf32> to vector<4x128xf32>
    %74 = vector.shape_cast %73 : vector<4x128xf32> to vector<4x128x1xf32>
    %75 = vector.broadcast %74 : vector<4x128x1xf32> to vector<4x128x128xf32>
    %76 = arith.divf %72, %75 : vector<4x128x128xf32>
    %77 = arith.truncf %76 : vector<4x128x128xf32> to vector<4x128x128xbf16>
    %cst_61 = arith.constant dense<0.000000e+00> : vector<4x8x128xf32>
    %78 = tpu.matmul %63, %77, %cst_61 {dimension_numbers = #tpu.dot_dimension_numbers<[2], [2], [1], [1], [0, 0, 0, 1, 1, 1], [0], [0]>} : vector<4x8x128xbf16>, vector<4x128x128xbf16>, vector<4x8x128xf32> -> vector<4x8x128xf32>
    %79 = vector.shape_cast %78 : vector<4x8x128xf32> to vector<32x128xf32>
    %80 = arith.truncf %79 : vector<32x128xf32> to vector<32x128xbf16>
    %cst_62 = arith.constant dense<0.000000e+00> : vector<32x128xf32>
    %81 = tpu.matmul %5, %80, %cst_62 {dimension_numbers = #tpu.dot_dimension_numbers<[1], [0], [0], [1], [0, 0, 1, 1], [], []>} : vector<32x32xbf16>, vector<32x128xbf16>, vector<32x128xf32> -> vector<32x128xf32>
    %82 = vector.broadcast %6 : vector<32x1xf32> to vector<32x128xf32>
    %83 = arith.addf %81, %82 : vector<32x128xf32>
    %84 = arith.addf %26, %83 : vector<32x128xf32>
    %cst_63 = arith.constant dense<0.000000e+00> : vector<128xf32>
    %85 = vector.multi_reduction <add>, %84, %cst_63 [0] : vector<32x128xf32> to vector<128xf32>
    %86 = vector.shape_cast %85 : vector<128xf32> to vector<1x128xf32>
    %cst_64 = arith.constant 3.200000e+01 : f32
    %87 = vector.broadcast %cst_64 : f32 to vector<1x128xf32>
    %88 = arith.divf %86, %87 : vector<1x128xf32>
    %89 = vector.broadcast %88 : vector<1x128xf32> to vector<32x128xf32>
    %90 = arith.subf %84, %89 : vector<32x128xf32>
    %91 = arith.mulf %90, %90 : vector<32x128xf32>
    %cst_65 = arith.constant dense<0.000000e+00> : vector<128xf32>
    %92 = vector.multi_reduction <add>, %91, %cst_65 [0] : vector<32x128xf32> to vector<128xf32>
    %93 = vector.shape_cast %92 : vector<128xf32> to vector<1x128xf32>
    %cst_66 = arith.constant 3.200000e+01 : f32
    %94 = vector.broadcast %cst_66 : f32 to vector<1x128xf32>
    %95 = arith.divf %93, %94 : vector<1x128xf32>
    %96 = vector.broadcast %88 : vector<1x128xf32> to vector<32x128xf32>
    %97 = arith.subf %84, %96 : vector<32x128xf32>
    %cst_67 = arith.constant 9.99999974E-6 : f32
    %98 = vector.broadcast %cst_67 : f32 to vector<1x128xf32>
    %99 = arith.addf %95, %98 : vector<1x128xf32>
    %100 = math.rsqrt %99 : vector<1x128xf32>
    %101 = vector.broadcast %100 : vector<1x128xf32> to vector<32x128xf32>
    %102 = arith.mulf %97, %101 : vector<32x128xf32>
    %103 = vector.broadcast %7 : vector<32x1xf32> to vector<32x128xf32>
    %104 = arith.mulf %102, %103 : vector<32x128xf32>
    %105 = vector.broadcast %8 : vector<32x1xf32> to vector<32x128xf32>
    %106 = arith.addf %104, %105 : vector<32x128xf32>
    %107 = arith.truncf %106 : vector<32x128xf32> to vector<32x128xbf16>
    %cst_68 = arith.constant dense<0.000000e+00> : vector<128x128xf32>
    %108 = tpu.matmul %9, %107, %cst_68 {dimension_numbers = #tpu.dot_dimension_numbers<[1], [0], [0], [1], [0, 0, 1, 1], [], []>} : vector<128x32xbf16>, vector<32x128xbf16>, vector<128x128xf32> -> vector<128x128xf32>
    %109 = vector.broadcast %10 : vector<128x1xf32> to vector<128x128xf32>
    %110 = arith.addf %108, %109 : vector<128x128xf32>
    %cst_69 = arith.constant 5.000000e-01 : f32
    %111 = vector.broadcast %cst_69 : f32 to vector<128x128xf32>
    %112 = arith.mulf %111, %110 : vector<128x128xf32>
    %cst_70 = arith.constant 0.707106769 : f32
    %113 = vector.broadcast %cst_70 : f32 to vector<128x128xf32>
    %114 = arith.mulf %110, %113 : vector<128x128xf32>
    %115 = math.erf %114 : vector<128x128xf32>
    %cst_71 = arith.constant 1.000000e+00 : f32
    %116 = vector.broadcast %cst_71 : f32 to vector<128x128xf32>
    %117 = arith.addf %116, %115 : vector<128x128xf32>
    %118 = arith.mulf %112, %117 : vector<128x128xf32>
    %119 = arith.truncf %118 : vector<128x128xf32> to vector<128x128xbf16>
    %cst_72 = arith.constant dense<0.000000e+00> : vector<32x128xf32>
    %120 = tpu.matmul %11, %119, %cst_72 {dimension_numbers = #tpu.dot_dimension_numbers<[1], [0], [0], [1], [0, 0, 1, 1], [], []>} : vector<32x128xbf16>, vector<128x128xbf16>, vector<32x128xf32> -> vector<32x128xf32>
    %121 = vector.broadcast %12 : vector<32x1xf32> to vector<32x128xf32>
    %122 = arith.addf %120, %121 : vector<32x128xf32>
    %123 = arith.addf %84, %122 : vector<32x128xf32>
    %124 = vector.shape_cast %123 : vector<32x128xf32> to vector<2x16x128xf32>
    %cst_73 = arith.constant dense<0.000000e+00> : vector<2x128xf32>
    %125 = vector.multi_reduction <add>, %124, %cst_73 [1] : vector<2x16x128xf32> to vector<2x128xf32>
    %126 = vector.shape_cast %125 : vector<2x128xf32> to vector<2x1x128xf32>
    %cst_74 = arith.constant 1.600000e+01 : f32
    %127 = vector.broadcast %cst_74 : f32 to vector<2x1x128xf32>
    %128 = arith.divf %126, %127 : vector<2x1x128xf32>
    %129 = vector.broadcast %128 : vector<2x1x128xf32> to vector<2x16x128xf32>
    %130 = arith.subf %124, %129 : vector<2x16x128xf32>
    %131 = arith.mulf %130, %130 : vector<2x16x128xf32>
    %cst_75 = arith.constant dense<0.000000e+00> : vector<2x128xf32>
    %132 = vector.multi_reduction <add>, %131, %cst_75 [1] : vector<2x16x128xf32> to vector<2x128xf32>
    %133 = vector.shape_cast %132 : vector<2x128xf32> to vector<2x1x128xf32>
    %cst_76 = arith.constant 1.600000e+01 : f32
    %134 = vector.broadcast %cst_76 : f32 to vector<2x1x128xf32>
    %135 = arith.divf %133, %134 : vector<2x1x128xf32>
    %136 = vector.broadcast %128 : vector<2x1x128xf32> to vector<2x16x128xf32>
    %137 = arith.subf %124, %136 : vector<2x16x128xf32>
    %cst_77 = arith.constant 9.99999974E-6 : f32
    %138 = vector.broadcast %cst_77 : f32 to vector<2x1x128xf32>
    %139 = arith.addf %135, %138 : vector<2x1x128xf32>
    %140 = math.rsqrt %139 : vector<2x1x128xf32>
    %141 = vector.broadcast %140 : vector<2x1x128xf32> to vector<2x16x128xf32>
    %142 = arith.mulf %137, %141 : vector<2x16x128xf32>
    %143 = vector.shape_cast %13 : vector<16x1xf32> to vector<1x16x1xf32>
    %144 = vector.broadcast %143 : vector<1x16x1xf32> to vector<2x16x128xf32>
    %145 = arith.mulf %142, %144 : vector<2x16x128xf32>
    %146 = vector.shape_cast %14 : vector<16x1xf32> to vector<1x16x1xf32>
    %147 = vector.broadcast %146 : vector<1x16x1xf32> to vector<2x16x128xf32>
    %148 = arith.addf %145, %147 : vector<2x16x128xf32>
    %149 = vector.shape_cast %148 : vector<2x16x128xf32> to vector<32x128xf32>
    %150 = arith.truncf %149 : vector<32x128xf32> to vector<32x128xbf16>
    %cst_78 = arith.constant dense<0.000000e+00> : vector<96x128xf32>
    %151 = tpu.matmul %15, %150, %cst_78 {dimension_numbers = #tpu.dot_dimension_numbers<[1], [0], [0], [1], [0, 0, 1, 1], [], []>} : vector<96x32xbf16>, vector<32x128xbf16>, vector<96x128xf32> -> vector<96x128xf32>
    %152 = vector.broadcast %16 : vector<96x1xf32> to vector<96x128xf32>
    %153 = arith.addf %151, %152 : vector<96x128xf32>
    %154 = vector.extract_strided_slice %153 {offsets = [0, 0], sizes = [16, 128], strides = [1, 1]} : vector<96x128xf32> to vector<16x128xf32>
    %cst_79 = arith.constant 5.000000e-01 : f32
    %155 = vector.broadcast %cst_79 : f32 to vector<16x128xf32>
    %156 = arith.mulf %154, %155 : vector<16x128xf32>
    %157 = vector.extract_strided_slice %153 {offsets = [48, 0], sizes = [16, 128], strides = [1, 1]} : vector<96x128xf32> to vector<16x128xf32>
    %cst_80 = arith.constant 5.000000e-01 : f32
    %158 = vector.broadcast %cst_80 : f32 to vector<16x128xf32>
    %159 = arith.mulf %157, %158 : vector<16x128xf32>
    %160 = vector.extract_strided_slice %153 {offsets = [16, 0], sizes = [16, 128], strides = [1, 1]} : vector<96x128xf32> to vector<16x128xf32>
    %161 = vector.extract_strided_slice %153 {offsets = [64, 0], sizes = [16, 128], strides = [1, 1]} : vector<96x128xf32> to vector<16x128xf32>
    %162 = vector.extract_strided_slice %153 {offsets = [32, 0], sizes = [16, 128], strides = [1, 1]} : vector<96x128xf32> to vector<16x128xf32>
    %163 = vector.shape_cast %162 : vector<16x128xf32> to vector<4x4x128xf32>
    %164 = vector.extract_strided_slice %153 {offsets = [80, 0], sizes = [16, 128], strides = [1, 1]} : vector<96x128xf32> to vector<16x128xf32>
    %165 = vector.shape_cast %164 : vector<16x128xf32> to vector<4x4x128xf32>
    %166 = arith.mulf %156, %160 : vector<16x128xf32>
    %167 = vector.shape_cast %166 : vector<16x128xf32> to vector<4x4x128xf32>
    %cst_81 = arith.constant dense<0.000000e+00> : vector<4x128xf32>
    %168 = vector.multi_reduction <add>, %167, %cst_81 [1] : vector<4x4x128xf32> to vector<4x128xf32>
    %169 = arith.mulf %156, %161 : vector<16x128xf32>
    %170 = vector.shape_cast %169 : vector<16x128xf32> to vector<4x4x128xf32>
    %cst_82 = arith.constant dense<0.000000e+00> : vector<4x128xf32>
    %171 = vector.multi_reduction <add>, %170, %cst_82 [1] : vector<4x4x128xf32> to vector<4x128xf32>
    %172 = arith.maximumf %168, %171 : vector<4x128xf32>
    %173 = arith.subf %168, %172 : vector<4x128xf32>
    %174 = math.exp %173 : vector<4x128xf32>
    %175 = arith.subf %171, %172 : vector<4x128xf32>
    %176 = math.exp %175 : vector<4x128xf32>
    %177 = arith.addf %174, %176 : vector<4x128xf32>
    %cst_83 = arith.constant 1.000000e+00 : f32
    %178 = vector.broadcast %cst_83 : f32 to vector<4x128xf32>
    %179 = arith.divf %178, %177 : vector<4x128xf32>
    %180 = arith.mulf %174, %179 : vector<4x128xf32>
    %181 = arith.mulf %176, %179 : vector<4x128xf32>
    %182 = vector.shape_cast %180 : vector<4x128xf32> to vector<4x1x128xf32>
    %183 = vector.broadcast %182 : vector<4x1x128xf32> to vector<4x4x128xf32>
    %184 = arith.mulf %183, %163 : vector<4x4x128xf32>
    %185 = vector.shape_cast %181 : vector<4x128xf32> to vector<4x1x128xf32>
    %186 = vector.broadcast %185 : vector<4x1x128xf32> to vector<4x4x128xf32>
    %187 = arith.mulf %186, %165 : vector<4x4x128xf32>
    %188 = arith.addf %184, %187 : vector<4x4x128xf32>
    %189 = vector.shape_cast %188 : vector<4x4x128xf32> to vector<16x128xf32>
    %190 = arith.mulf %159, %160 : vector<16x128xf32>
    %191 = vector.shape_cast %190 : vector<16x128xf32> to vector<4x4x128xf32>
    %cst_84 = arith.constant dense<0.000000e+00> : vector<4x128xf32>
    %192 = vector.multi_reduction <add>, %191, %cst_84 [1] : vector<4x4x128xf32> to vector<4x128xf32>
    %193 = arith.mulf %159, %161 : vector<16x128xf32>
    %194 = vector.shape_cast %193 : vector<16x128xf32> to vector<4x4x128xf32>
    %cst_85 = arith.constant dense<0.000000e+00> : vector<4x128xf32>
    %195 = vector.multi_reduction <add>, %194, %cst_85 [1] : vector<4x4x128xf32> to vector<4x128xf32>
    %196 = arith.maximumf %192, %195 : vector<4x128xf32>
    %197 = arith.subf %192, %196 : vector<4x128xf32>
    %198 = math.exp %197 : vector<4x128xf32>
    %199 = arith.subf %195, %196 : vector<4x128xf32>
    %200 = math.exp %199 : vector<4x128xf32>
    %201 = arith.addf %198, %200 : vector<4x128xf32>
    %cst_86 = arith.constant 1.000000e+00 : f32
    %202 = vector.broadcast %cst_86 : f32 to vector<4x128xf32>
    %203 = arith.divf %202, %201 : vector<4x128xf32>
    %204 = arith.mulf %198, %203 : vector<4x128xf32>
    %205 = arith.mulf %200, %203 : vector<4x128xf32>
    %206 = vector.shape_cast %204 : vector<4x128xf32> to vector<4x1x128xf32>
    %207 = vector.broadcast %206 : vector<4x1x128xf32> to vector<4x4x128xf32>
    %208 = arith.mulf %207, %163 : vector<4x4x128xf32>
    %209 = vector.shape_cast %205 : vector<4x128xf32> to vector<4x1x128xf32>
    %210 = vector.broadcast %209 : vector<4x1x128xf32> to vector<4x4x128xf32>
    %211 = arith.mulf %210, %165 : vector<4x4x128xf32>
    %212 = arith.addf %208, %211 : vector<4x4x128xf32>
    %213 = vector.shape_cast %212 : vector<4x4x128xf32> to vector<16x128xf32>
    %214 = tpu.concatenate %189, %213 in 0 : vector<16x128xf32>, vector<16x128xf32> -> vector<32x128xf32>
    %215 = arith.truncf %214 : vector<32x128xf32> to vector<32x128xbf16>
    %cst_87 = arith.constant dense<0.000000e+00> : vector<32x128xf32>
    %216 = tpu.matmul %17, %215, %cst_87 {dimension_numbers = #tpu.dot_dimension_numbers<[1], [0], [0], [1], [0, 0, 1, 1], [], []>} : vector<32x32xbf16>, vector<32x128xbf16>, vector<32x128xf32> -> vector<32x128xf32>
    %217 = vector.broadcast %18 : vector<32x1xf32> to vector<32x128xf32>
    %218 = arith.addf %216, %217 : vector<32x128xf32>
    %219 = arith.addf %123, %218 : vector<32x128xf32>
    %cst_88 = arith.constant dense<0.000000e+00> : vector<128xf32>
    %220 = vector.multi_reduction <add>, %219, %cst_88 [0] : vector<32x128xf32> to vector<128xf32>
    %221 = vector.shape_cast %220 : vector<128xf32> to vector<1x128xf32>
    %cst_89 = arith.constant 3.200000e+01 : f32
    %222 = vector.broadcast %cst_89 : f32 to vector<1x128xf32>
    %223 = arith.divf %221, %222 : vector<1x128xf32>
    %224 = vector.broadcast %223 : vector<1x128xf32> to vector<32x128xf32>
    %225 = arith.subf %219, %224 : vector<32x128xf32>
    %226 = arith.mulf %225, %225 : vector<32x128xf32>
    %cst_90 = arith.constant dense<0.000000e+00> : vector<128xf32>
    %227 = vector.multi_reduction <add>, %226, %cst_90 [0] : vector<32x128xf32> to vector<128xf32>
    %228 = vector.shape_cast %227 : vector<128xf32> to vector<1x128xf32>
    %cst_91 = arith.constant 3.200000e+01 : f32
    %229 = vector.broadcast %cst_91 : f32 to vector<1x128xf32>
    %230 = arith.divf %228, %229 : vector<1x128xf32>
    %231 = vector.broadcast %223 : vector<1x128xf32> to vector<32x128xf32>
    %232 = arith.subf %219, %231 : vector<32x128xf32>
    %cst_92 = arith.constant 9.99999974E-6 : f32
    %233 = vector.broadcast %cst_92 : f32 to vector<1x128xf32>
    %234 = arith.addf %230, %233 : vector<1x128xf32>
    %235 = math.rsqrt %234 : vector<1x128xf32>
    %236 = vector.broadcast %235 : vector<1x128xf32> to vector<32x128xf32>
    %237 = arith.mulf %232, %236 : vector<32x128xf32>
    %238 = vector.broadcast %19 : vector<32x1xf32> to vector<32x128xf32>
    %239 = arith.mulf %237, %238 : vector<32x128xf32>
    %240 = vector.broadcast %20 : vector<32x1xf32> to vector<32x128xf32>
    %241 = arith.addf %239, %240 : vector<32x128xf32>
    %242 = arith.truncf %241 : vector<32x128xf32> to vector<32x128xbf16>
    %cst_93 = arith.constant dense<0.000000e+00> : vector<128x128xf32>
    %243 = tpu.matmul %21, %242, %cst_93 {dimension_numbers = #tpu.dot_dimension_numbers<[1], [0], [0], [1], [0, 0, 1, 1], [], []>} : vector<128x32xbf16>, vector<32x128xbf16>, vector<128x128xf32> -> vector<128x128xf32>
    %244 = vector.broadcast %22 : vector<128x1xf32> to vector<128x128xf32>
    %245 = arith.addf %243, %244 : vector<128x128xf32>
    %cst_94 = arith.constant 5.000000e-01 : f32
    %246 = vector.broadcast %cst_94 : f32 to vector<128x128xf32>
    %247 = arith.mulf %246, %245 : vector<128x128xf32>
    %cst_95 = arith.constant 0.707106769 : f32
    %248 = vector.broadcast %cst_95 : f32 to vector<128x128xf32>
    %249 = arith.mulf %245, %248 : vector<128x128xf32>
    %250 = math.erf %249 : vector<128x128xf32>
    %cst_96 = arith.constant 1.000000e+00 : f32
    %251 = vector.broadcast %cst_96 : f32 to vector<128x128xf32>
    %252 = arith.addf %251, %250 : vector<128x128xf32>
    %253 = arith.mulf %247, %252 : vector<128x128xf32>
    %254 = arith.truncf %253 : vector<128x128xf32> to vector<128x128xbf16>
    %cst_97 = arith.constant dense<0.000000e+00> : vector<32x128xf32>
    %255 = tpu.matmul %23, %254, %cst_97 {dimension_numbers = #tpu.dot_dimension_numbers<[1], [0], [0], [1], [0, 0, 1, 1], [], []>} : vector<32x128xbf16>, vector<128x128xbf16>, vector<32x128xf32> -> vector<32x128xf32>
    %256 = vector.broadcast %24 : vector<32x1xf32> to vector<32x128xf32>
    %257 = arith.addf %255, %256 : vector<32x128xf32>
    %258 = arith.addf %219, %257 : vector<32x128xf32>
    %259 = arith.addf %258, %26 : vector<32x128xf32>
    %c0_98 = arith.constant 0 : index
    %c0_99 = arith.constant 0 : index
    %c0_100 = arith.constant 0 : index
    %260 = vector.load %arg27[%c0_98, %c0_99, %c0_100] : memref<1x32x128xf32, #tpu.memory_space<vmem>>, vector<1x32x128xf32>
    %261 = vector.shape_cast %260 : vector<1x32x128xf32> to vector<32x128xf32>
    %262 = vector.shape_cast %259 : vector<32x128xf32> to vector<1x32x128xf32>
    tpu.vector_store %arg27[%c0_98, %c0_99, %c0_100], %262 {strides = array<i32>} : memref<1x32x128xf32, #tpu.memory_space<vmem>>, vector<1x32x128xf32>,
    return
  }
  func.func @transform_0(%arg0: i32) -> (i32, i32, i32) {
    %c0_i32 = arith.constant 0 : i32
    %c0_i32_0 = arith.constant 0 : i32
    %c0_i32_1 = arith.constant 0 : i32
    return %arg0, %c0_i32, %c0_i32_0 : i32, i32, i32
  }
  func.func @transform_1(%arg0: i32) -> (i32, i32) {
    %c0_i32 = arith.constant 0 : i32
    %c0_i32_0 = arith.constant 0 : i32
    %c0_i32_1 = arith.constant 0 : i32
    return %c0_i32, %c0_i32_0 : i32, i32
  }
  func.func @transform_2(%arg0: i32) -> (i32, i32) {
    %c0_i32 = arith.constant 0 : i32
    %c0_i32_0 = arith.constant 0 : i32
    %c0_i32_1 = arith.constant 0 : i32
    return %c0_i32, %c0_i32_0 : i32, i32
  }
  func.func @transform_3(%arg0: i32) -> (i32, i32) {
    %c0_i32 = arith.constant 0 : i32
    %c0_i32_0 = arith.constant 0 : i32
    %c0_i32_1 = arith.constant 0 : i32
    return %c0_i32, %c0_i32_0 : i32, i32
  }
  func.func @transform_4(%arg0: i32) -> (i32, i32) {
    %c0_i32 = arith.constant 0 : i32
    %c0_i32_0 = arith.constant 0 : i32
    %c0_i32_1 = arith.constant 0 : i32
    return %c0_i32, %c0_i32_0 : i32, i32
  }
  func.func @transform_5(%arg0: i32) -> (i32, i32) {
    %c0_i32 = arith.constant 0 : i32
    %c0_i32_0 = arith.constant 0 : i32
    %c0_i32_1 = arith.constant 0 : i32
    return %c0_i32, %c0_i32_0 : i32, i32
  }
  func.func @transform_6(%arg0: i32) -> (i32, i32) {
    %c0_i32 = arith.constant 0 : i32
    %c0_i32_0 = arith.constant 0 : i32
    %c0_i32_1 = arith.constant 0 : i32
    return %c0_i32, %c0_i32_0 : i32, i32
  }
  func.func @transform_7(%arg0: i32) -> (i32, i32) {
    %c0_i32 = arith.constant 0 : i32
    %c0_i32_0 = arith.constant 0 : i32
    %c0_i32_1 = arith.constant 0 : i32
    return %c0_i32, %c0_i32_0 : i32, i32
  }
  func.func @transform_8(%arg0: i32) -> (i32, i32) {
    %c0_i32 = arith.constant 0 : i32
    %c0_i32_0 = arith.constant 0 : i32
    %c0_i32_1 = arith.constant 0 : i32
    return %c0_i32, %c0_i32_0 : i32, i32
  }
  func.func @transform_9(%arg0: i32) -> (i32, i32) {
    %c0_i32 = arith.constant 0 : i32
    %c0_i32_0 = arith.constant 0 : i32
    %c0_i32_1 = arith.constant 0 : i32
    return %c0_i32, %c0_i32_0 : i32, i32
  }
  func.func @transform_10(%arg0: i32) -> (i32, i32) {
    %c0_i32 = arith.constant 0 : i32
    %c0_i32_0 = arith.constant 0 : i32
    %c0_i32_1 = arith.constant 0 : i32
    return %c0_i32, %c0_i32_0 : i32, i32
  }
  func.func @transform_11(%arg0: i32) -> (i32, i32) {
    %c0_i32 = arith.constant 0 : i32
    %c0_i32_0 = arith.constant 0 : i32
    %c0_i32_1 = arith.constant 0 : i32
    return %c0_i32, %c0_i32_0 : i32, i32
  }
  func.func @transform_12(%arg0: i32) -> (i32, i32) {
    %c0_i32 = arith.constant 0 : i32
    %c0_i32_0 = arith.constant 0 : i32
    %c0_i32_1 = arith.constant 0 : i32
    return %c0_i32, %c0_i32_0 : i32, i32
  }
  func.func @transform_13(%arg0: i32) -> (i32, i32) {
    %c0_i32 = arith.constant 0 : i32
    %c0_i32_0 = arith.constant 0 : i32
    %c0_i32_1 = arith.constant 0 : i32
    return %c0_i32, %c0_i32_0 : i32, i32
  }
  func.func @transform_14(%arg0: i32) -> (i32, i32) {
    %c0_i32 = arith.constant 0 : i32
    %c0_i32_0 = arith.constant 0 : i32
    %c0_i32_1 = arith.constant 0 : i32
    return %c0_i32, %c0_i32_0 : i32, i32
  }
  func.func @transform_15(%arg0: i32) -> (i32, i32) {
    %c0_i32 = arith.constant 0 : i32
    %c0_i32_0 = arith.constant 0 : i32
    %c0_i32_1 = arith.constant 0 : i32
    return %c0_i32, %c0_i32_0 : i32, i32
  }
  func.func @transform_16(%arg0: i32) -> (i32, i32) {
    %c0_i32 = arith.constant 0 : i32
    %c0_i32_0 = arith.constant 0 : i32
    %c0_i32_1 = arith.constant 0 : i32
    return %c0_i32, %c0_i32_0 : i32, i32
  }
  func.func @transform_17(%arg0: i32) -> (i32, i32) {
    %c0_i32 = arith.constant 0 : i32
    %c0_i32_0 = arith.constant 0 : i32
    %c0_i32_1 = arith.constant 0 : i32
    return %c0_i32, %c0_i32_0 : i32, i32
  }
  func.func @transform_18(%arg0: i32) -> (i32, i32) {
    %c0_i32 = arith.constant 0 : i32
    %c0_i32_0 = arith.constant 0 : i32
    %c0_i32_1 = arith.constant 0 : i32
    return %c0_i32, %c0_i32_0 : i32, i32
  }
  func.func @transform_19(%arg0: i32) -> (i32, i32) {
    %c0_i32 = arith.constant 0 : i32
    %c0_i32_0 = arith.constant 0 : i32
    %c0_i32_1 = arith.constant 0 : i32
    return %c0_i32, %c0_i32_0 : i32, i32
  }
  func.func @transform_20(%arg0: i32) -> (i32, i32) {
    %c0_i32 = arith.constant 0 : i32
    %c0_i32_0 = arith.constant 0 : i32
    %c0_i32_1 = arith.constant 0 : i32
    return %c0_i32, %c0_i32_0 : i32, i32
  }
  func.func @transform_21(%arg0: i32) -> (i32, i32) {
    %c0_i32 = arith.constant 0 : i32
    %c0_i32_0 = arith.constant 0 : i32
    %c0_i32_1 = arith.constant 0 : i32
    return %c0_i32, %c0_i32_0 : i32, i32
  }
  func.func @transform_22(%arg0: i32) -> (i32, i32) {
    %c0_i32 = arith.constant 0 : i32
    %c0_i32_0 = arith.constant 0 : i32
    %c0_i32_1 = arith.constant 0 : i32
    return %c0_i32, %c0_i32_0 : i32, i32
  }
  func.func @transform_23(%arg0: i32) -> (i32, i32) {
    %c0_i32 = arith.constant 0 : i32
    %c0_i32_0 = arith.constant 0 : i32
    %c0_i32_1 = arith.constant 0 : i32
    return %c0_i32, %c0_i32_0 : i32, i32
  }
  func.func @transform_24(%arg0: i32) -> (i32, i32) {
    %c0_i32 = arith.constant 0 : i32
    %c0_i32_0 = arith.constant 0 : i32
    %c0_i32_1 = arith.constant 0 : i32
    return %c0_i32, %c0_i32_0 : i32, i32
  }
  func.func @transform_25(%arg0: i32) -> (i32, i32) {
    %c0_i32 = arith.constant 0 : i32
    %c0_i32_0 = arith.constant 0 : i32
    %c0_i32_1 = arith.constant 0 : i32
    return %c0_i32, %c0_i32_0 : i32, i32
  }
  func.func @transform_26(%arg0: i32) -> (i32, i32, i32) {
    %c0_i32 = arith.constant 0 : i32
    %c0_i32_0 = arith.constant 0 : i32
    %c0_i32_1 = arith.constant 0 : i32
    return %arg0, %c0_i32, %c0_i32_0 : i32, i32, i32
  }
}

</mosaic_0001>

<llo_original>
// kernel: shared_block_forward.1
$region0: #{shared_block_forward.1}
  #allocation0 [shape = 'u32[]', space=smem, size = 0x4, offset = 0x4, fixed_abs, tag = 'smem constant byte address 0x4 - core index']
  #allocation1 [shape = 'u32[144,128]{1,0:T(1,128)}', space=vmem, size = 0x12000, scoped, tag = 'internal scratch']
  %s0 = inlined_call_operand.vmem [shape: f32[1,32,128], index: 0, kind: input, shape index: {}]
  %s1 = inlined_call_operand.vmem [shape: f32[128,128], index: 1, kind: input, shape index: {}]
  %s2 = inlined_call_operand.vmem [shape: f32[32,1], index: 2, kind: input, shape index: {}]
  %s3 = inlined_call_operand.vmem [shape: f32[32,1], index: 3, kind: input, shape index: {}]
  %s4 = inlined_call_operand.vmem [shape: bf16[96,32], index: 4, kind: input, shape index: {}]
  %s5 = inlined_call_operand.vmem [shape: f32[96,1], index: 5, kind: input, shape index: {}]
  %s6 = inlined_call_operand.vmem [shape: bf16[32,32], index: 6, kind: input, shape index: {}]
  %s7 = inlined_call_operand.vmem [shape: f32[32,1], index: 7, kind: input, shape index: {}]
  %s8 = inlined_call_operand.vmem [shape: f32[32,1], index: 8, kind: input, shape index: {}]
  %s9 = inlined_call_operand.vmem [shape: f32[32,1], index: 9, kind: input, shape index: {}]
  %s10 = inlined_call_operand.vmem [shape: bf16[128,32], index: 10, kind: input, shape index: {}]
  %s11 = inlined_call_operand.vmem [shape: f32[128,1], index: 11, kind: input, shape index: {}]
  %s12 = inlined_call_operand.vmem [shape: bf16[32,128], index: 12, kind: input, shape index: {}]
  %s13 = inlined_call_operand.vmem [shape: f32[32,1], index: 13, kind: input, shape index: {}]
  %s14 = inlined_call_operand.vmem [shape: f32[16,1], index: 14, kind: input, shape index: {}]
  %s15 = inlined_call_operand.vmem [shape: f32[16,1], index: 15, kind: input, shape index: {}]
  %s16 = inlined_call_operand.vmem [shape: bf16[96,32], index: 16, kind: input, shape index: {}]
  %s17 = inlined_call_operand.vmem [shape: f32[96,1], index: 17, kind: input, shape index: {}]
  %s18 = inlined_call_operand.vmem [shape: bf16[32,32], index: 18, kind: input, shape index: {}]
  %s19 = inlined_call_operand.vmem [shape: f32[32,1], index: 19, kind: input, shape index: {}]
  %s20 = inlined_call_operand.vmem [shape: f32[32,1], index: 20, kind: input, shape index: {}]
  %s21 = inlined_call_operand.vmem [shape: f32[32,1], index: 21, kind: input, shape index: {}]
  %s22 = inlined_call_operand.vmem [shape: bf16[128,32], index: 22, kind: input, shape index: {}]
  %s23 = inlined_call_operand.vmem [shape: f32[128,1], index: 23, kind: input, shape index: {}]
  %s24 = inlined_call_operand.vmem [shape: bf16[32,128], index: 24, kind: input, shape index: {}]
  %s25 = inlined_call_operand.vmem [shape: f32[32,1], index: 25, kind: input, shape index: {}]
  %s26 = inlined_call_operand.vmem [shape: f32[1,32,128], index: 26, kind: output, shape index: {}]
  %s27 = sld [smem:[#allocation0]]
  $region114: #{shared_block_forward.1} parent=0
    _
  %s29 = ssub.s32 1, %s27
  %s30 = scalar_select 0, %s29, %s27
  // Predicated region
  $region2: #{shared_block_forward.1} parent=0 // pred_check
    _
  $region3: #{shared_block_forward.1} parent=0 // pred_check_branch
    %32 = sbr.rel (0) target = $region5
  $region4: #{shared_block_forward.1} parent=0 // pred_region
    _
  $region5: #{shared_block_forward.1} parent=0 // pred_fallthru
    _
  // Predicated region
  $region6: #{shared_block_forward.1} parent=0 // pred_check
    _
  $region7: #{shared_block_forward.1} parent=0 // pred_check_branch
    %34 = sbr.rel (0) target = $region9
  $region8: #{shared_block_forward.1} parent=0 // pred_region
    _
  $region9: #{shared_block_forward.1} parent=0 // pred_fallthru
    _
  // Predicated region
  $region10: #{shared_block_forward.1} parent=0 // pred_check
    _
  $region11: #{shared_block_forward.1} parent=0 // pred_check_branch
    %36 = sbr.rel (0) target = $region13
  $region12: #{shared_block_forward.1} parent=0 // pred_region
    _
  $region13: #{shared_block_forward.1} parent=0 // pred_fallthru
    _
  // Predicated region
  $region14: #{shared_block_forward.1} parent=0 // pred_check
    _
  $region15: #{shared_block_forward.1} parent=0 // pred_check_branch
    %38 = sbr.rel (0) target = $region17
  $region16: #{shared_block_forward.1} parent=0 // pred_region
    _
  $region17: #{shared_block_forward.1} parent=0 // pred_fallthru
    _
  // Predicated region
  $region18: #{shared_block_forward.1} parent=0 // pred_check
    _
  $region19: #{shared_block_forward.1} parent=0 // pred_check_branch
    %40 = sbr.rel (0) target = $region21
  $region20: #{shared_block_forward.1} parent=0 // pred_region
    _
  $region21: #{shared_block_forward.1} parent=0 // pred_fallthru
    _
  // Predicated region
  $region22: #{shared_block_forward.1} parent=0 // pred_check
    _
  $region23: #{shared_block_forward.1} parent=0 // pred_check_branch
    %42 = sbr.rel (0) target = $region25
  $region24: #{shared_block_forward.1} parent=0 // pred_region
    _
  $region25: #{shared_block_forward.1} parent=0 // pred_fallthru
    _
  // Predicated region
  $region26: #{shared_block_forward.1} parent=0 // pred_check
    _
  $region27: #{shared_block_forward.1} parent=0 // pred_check_branch
    %44 = sbr.rel (0) target = $region29
  $region28: #{shared_block_forward.1} parent=0 // pred_region
    _
  $region29: #{shared_block_forward.1} parent=0 // pred_fallthru
    _
  // Predicated region
  $region30: #{shared_block_forward.1} parent=0 // pred_check
    _
  $region31: #{shared_block_forward.1} parent=0 // pred_check_branch
    %46 = sbr.rel (0) target = $region33
  $region32: #{shared_block_forward.1} parent=0 // pred_region
    _
  $region33: #{shared_block_forward.1} parent=0 // pred_fallthru
    _
  // Predicated region
  $region34: #{shared_block_forward.1} parent=0 // pred_check
    _
  $region35: #{shared_block_forward.1} parent=0 // pred_check_branch
    %48 = sbr.rel (0) target = $region37
  $region36: #{shared_block_forward.1} parent=0 // pred_region
    _
  $region37: #{shared_block_forward.1} parent=0 // pred_fallthru
    _
  // Predicated region
  $region38: #{shared_block_forward.1} parent=0 // pred_check
    _
  $region39: #{shared_block_forward.1} parent=0 // pred_check_branch
    %50 = sbr.rel (0) target = $region41
  $region40: #{shared_block_forward.1} parent=0 // pred_region
    _
  $region41: #{shared_block_forward.1} parent=0 // pred_fallthru
    _
  // Predicated region
  $region42: #{shared_block_forward.1} parent=0 // pred_check
    _
  $region43: #{shared_block_forward.1} parent=0 // pred_check_branch
    %52 = sbr.rel (0) target = $region45
  $region44: #{shared_block_forward.1} parent=0 // pred_region
    _
  $region45: #{shared_block_forward.1} parent=0 // pred_fallthru
    _
  // Predicated region
  $region46: #{shared_block_forward.1} parent=0 // pred_check
    _
  $region47: #{shared_block_forward.1} parent=0 // pred_check_branch
    %54 = sbr.rel (0) target = $region49
  $region48: #{shared_block_forward.1} parent=0 // pred_region
    _
  $region49: #{shared_block_forward.1} parent=0 // pred_fallthru
    _
  // Predicated region
  $region50: #{shared_block_forward.1} parent=0 // pred_check
    _
  $region51: #{shared_block_forward.1} parent=0 // pred_check_branch
    %56 = sbr.rel (0) target = $region53
  $region52: #{shared_block_forward.1} parent=0 // pred_region
    _
  $region53: #{shared_block_forward.1} parent=0 // pred_fallthru
    _
  // Predicated region
  $region54: #{shared_block_forward.1} parent=0 // pred_check
    _
  $region55: #{shared_block_forward.1} parent=0 // pred_check_branch
    %58 = sbr.rel (0) target = $region57
  $region56: #{shared_block_forward.1} parent=0 // pred_region
    _
  $region57: #{shared_block_forward.1} parent=0 // pred_fallthru
    _
  // Predicated region
  $region58: #{shared_block_forward.1} parent=0 // pred_check
    _
  $region59: #{shared_block_forward.1} parent=0 // pred_check_branch
    %60 = sbr.rel (0) target = $region61
  $region60: #{shared_block_forward.1} parent=0 // pred_region
    _
  $region61: #{shared_block_forward.1} parent=0 // pred_fallthru
    _
  // Predicated region
  $region62: #{shared_block_forward.1} parent=0 // pred_check
    _
  $region63: #{shared_block_forward.1} parent=0 // pred_check_branch
    %62 = sbr.rel (0) target = $region65
  $region64: #{shared_block_forward.1} parent=0 // pred_region
    _
  $region65: #{shared_block_forward.1} parent=0 // pred_fallthru
    _
  // Predicated region
  $region66: #{shared_block_forward.1} parent=0 // pred_check
    _
  $region67: #{shared_block_forward.1} parent=0 // pred_check_branch
    %64 = sbr.rel (0) target = $region69
  $region68: #{shared_block_forward.1} parent=0 // pred_region
    _
  $region69: #{shared_block_forward.1} parent=0 // pred_fallthru
    _
  // Predicated region
  $region70: #{shared_block_forward.1} parent=0 // pred_check
    _
  $region71: #{shared_block_forward.1} parent=0 // pred_check_branch
    %66 = sbr.rel (0) target = $region73
  $region72: #{shared_block_forward.1} parent=0 // pred_region
    _
  $region73: #{shared_block_forward.1} parent=0 // pred_fallthru
    _
  // Predicated region
  $region74: #{shared_block_forward.1} parent=0 // pred_check
    _
  $region75: #{shared_block_forward.1} parent=0 // pred_check_branch
    %68 = sbr.rel (0) target = $region77
  $region76: #{shared_block_forward.1} parent=0 // pred_region
    _
  $region77: #{shared_block_forward.1} parent=0 // pred_fallthru
    _
  // Predicated region
  $region78: #{shared_block_forward.1} parent=0 // pred_check
    _
  $region79: #{shared_block_forward.1} parent=0 // pred_check_branch
    %70 = sbr.rel (0) target = $region81
  $region80: #{shared_block_forward.1} parent=0 // pred_region
    _
  $region81: #{shared_block_forward.1} parent=0 // pred_fallthru
    _
  // Predicated region
  $region82: #{shared_block_forward.1} parent=0 // pred_check
    _
  $region83: #{shared_block_forward.1} parent=0 // pred_check_branch
    %72 = sbr.rel (0) target = $region85
  $region84: #{shared_block_forward.1} parent=0 // pred_region
    _
  $region85: #{shared_block_forward.1} parent=0 // pred_fallthru
    _
  // Predicated region
  $region86: #{shared_block_forward.1} parent=0 // pred_check
    _
  $region87: #{shared_block_forward.1} parent=0 // pred_check_branch
    %74 = sbr.rel (0) target = $region89
  $region88: #{shared_block_forward.1} parent=0 // pred_region
    _
  $region89: #{shared_block_forward.1} parent=0 // pred_fallthru
    _
  // Predicated region
  $region90: #{shared_block_forward.1} parent=0 // pred_check
    _
  $region91: #{shared_block_forward.1} parent=0 // pred_check_branch
    %76 = sbr.rel (0) target = $region93
  $region92: #{shared_block_forward.1} parent=0 // pred_region
    _
  $region93: #{shared_block_forward.1} parent=0 // pred_fallthru
    _
  // Predicated region
  $region94: #{shared_block_forward.1} parent=0 // pred_check
    _
  $region95: #{shared_block_forward.1} parent=0 // pred_check_branch
    %78 = sbr.rel (0) target = $region97
  $region96: #{shared_block_forward.1} parent=0 // pred_region
    _
  $region97: #{shared_block_forward.1} parent=0 // pred_fallthru
    _
  // Predicated region
  $region98: #{shared_block_forward.1} parent=0 // pred_check
    _
  $region99: #{shared_block_forward.1} parent=0 // pred_check_branch
    %80 = sbr.rel (0) target = $region101
  $region100: #{shared_block_forward.1} parent=0 // pred_region
    _
  $region101: #{shared_block_forward.1} parent=0 // pred_fallthru
    _
  // Predicated region
  $region102: #{shared_block_forward.1} parent=0 // pred_check
    _
  $region103: #{shared_block_forward.1} parent=0 // pred_check_branch
    %82 = sbr.rel (0) target = $region105
  $region104: #{shared_block_forward.1} parent=0 // pred_region
    _
  $region105: #{shared_block_forward.1} parent=0 // pred_fallthru
    _
  %v84 = vld [vmem:[%s1] sm:$0xff]
  %v85 = vld [vmem:[%s1 + $0x8] sm:$0xff]
  %v86 = vld [vmem:[%s1 + $0x10] sm:$0xff]
  %v87 = vld [vmem:[%s1 + $0x18] sm:$0xff]
  %v88 = vld [vmem:[%s1 + $0x20] sm:$0xff]
  %v89 = vld [vmem:[%s1 + $0x28] sm:$0xff]
  %v90 = vld [vmem:[%s1 + $0x30] sm:$0xff]
  %v91 = vld [vmem:[%s1 + $0x38] sm:$0xff]
  %v92 = vld [vmem:[%s1 + $0x40] sm:$0xff]
  %v93 = vld [vmem:[%s1 + $0x48] sm:$0xff]
  %v94 = vld [vmem:[%s1 + $0x50] sm:$0xff]
  %v95 = vld [vmem:[%s1 + $0x58] sm:$0xff]
  %v96 = vld [vmem:[%s1 + $0x60] sm:$0xff]
  %v97 = vld [vmem:[%s1 + $0x68] sm:$0xff]
  %v98 = vld [vmem:[%s1 + $0x70] sm:$0xff]
  %v99 = vld [vmem:[%s1 + $0x78] sm:$0xff]
  %v100 = vld [vmem:[%s2] sm:$0xff]
  %v101 = vld [vmem:[%s2 + $0x8] sm:$0xff]
  %v102 = vld [vmem:[%s2 + $0x10] sm:$0xff]
  %v103 = vld [vmem:[%s2 + $0x18] sm:$0xff]
  %v104 = vld [vmem:[%s3] sm:$0xff]
  %v105 = vld [vmem:[%s3 + $0x8] sm:$0xff]
  %v106 = vld [vmem:[%s3 + $0x10] sm:$0xff]
  %v107 = vld [vmem:[%s3 + $0x18] sm:$0xff]
  %v108 = vld [vmem:[%s4] sm:$0xf]
  %v109 = vld [vmem:[%s4 + $0x4] sm:$0xf]
  %v110 = vld [vmem:[%s4 + $0x8] sm:$0xf]
  %v111 = vld [vmem:[%s4 + $0xc] sm:$0xf]
  %v112 = vld [vmem:[%s4 + $0x10] sm:$0xf]
  %v113 = vld [vmem:[%s4 + $0x14] sm:$0xf]
  %v114 = vld [vmem:[%s4 + $0x18] sm:$0xf]
  %v115 = vld [vmem:[%s4 + $0x1c] sm:$0xf]
  %v116 = vld [vmem:[%s4 + $0x20] sm:$0xf]
  %v117 = vld [vmem:[%s4 + $0x24] sm:$0xf]
  %v118 = vld [vmem:[%s4 + $0x28] sm:$0xf]
  %v119 = vld [vmem:[%s4 + $0x2c] sm:$0xf]
  %v120 = vld [vmem:[%s5] sm:$0xff]
  %v121 = vld [vmem:[%s5 + $0x8] sm:$0xff]
  %v122 = vld [vmem:[%s5 + $0x10] sm:$0xff]
  %v123 = vld [vmem:[%s5 + $0x18] sm:$0xff]
  %v124 = vld [vmem:[%s5 + $0x20] sm:$0xff]
  %v125 = vld [vmem:[%s5 + $0x28] sm:$0xff]
  %v126 = vld [vmem:[%s5 + $0x30] sm:$0xff]
  %v127 = vld [vmem:[%s5 + $0x38] sm:$0xff]
  %v128 = vld [vmem:[%s5 + $0x40] sm:$0xff]
  %v129 = vld [vmem:[%s5 + $0x48] sm:$0xff]
  %v130 = vld [vmem:[%s5 + $0x50] sm:$0xff]
  %v131 = vld [vmem:[%s5 + $0x58] sm:$0xff]
  %v132 = vld [vmem:[%s6] sm:$0xf]
  %v133 = vld [vmem:[%s6 + $0x4] sm:$0xf]
  %v134 = vld [vmem:[%s6 + $0x8] sm:$0xf]
  %v135 = vld [vmem:[%s6 + $0xc] sm:$0xf]
  %v136 = vld [vmem:[%s7] sm:$0xff]
  %v137 = vld [vmem:[%s7 + $0x8] sm:$0xff]
  %v138 = vld [vmem:[%s7 + $0x10] sm:$0xff]
  %v139 = vld [vmem:[%s7 + $0x18] sm:$0xff]
  %v140 = vld [vmem:[%s8] sm:$0xff]
  %v141 = vld [vmem:[%s8 + $0x8] sm:$0xff]
  %v142 = vld [vmem:[%s8 + $0x10] sm:$0xff]
  %v143 = vld [vmem:[%s8 + $0x18] sm:$0xff]
  %v144 = vld [vmem:[%s9] sm:$0xff]
  %v145 = vld [vmem:[%s9 + $0x8] sm:$0xff]
  %v146 = vld [vmem:[%s9 + $0x10] sm:$0xff]
  %v147 = vld [vmem:[%s9 + $0x18] sm:$0xff]
  %v148 = vld [vmem:[%s10] sm:$0xf]
  %v149 = vld [vmem:[%s10 + $0x4] sm:$0xf]
  %v150 = vld [vmem:[%s10 + $0x8] sm:$0xf]
  %v151 = vld [vmem:[%s10 + $0xc] sm:$0xf]
  %v152 = vld [vmem:[%s10 + $0x10] sm:$0xf]
  %v153 = vld [vmem:[%s10 + $0x14] sm:$0xf]
  %v154 = vld [vmem:[%s10 + $0x18] sm:$0xf]
  %v155 = vld [vmem:[%s10 + $0x1c] sm:$0xf]
  %v156 = vld [vmem:[%s10 + $0x20] sm:$0xf]
  %v157 = vld [vmem:[%s10 + $0x24] sm:$0xf]
  %v158 = vld [vmem:[%s10 + $0x28] sm:$0xf]
  %v159 = vld [vmem:[%s10 + $0x2c] sm:$0xf]
  %v160 = vld [vmem:[%s10 + $0x30] sm:$0xf]
  %v161 = vld [vmem:[%s10 + $0x34] sm:$0xf]
  %v162 = vld [vmem:[%s10 + $0x38] sm:$0xf]
  %v163 = vld [vmem:[%s10 + $0x3c] sm:$0xf]
  %v164 = vld [vmem:[%s11] sm:$0xff]
  %v165 = vld [vmem:[%s11 + $0x8] sm:$0xff]
  %v166 = vld [vmem:[%s11 + $0x10] sm:$0xff]
  %v167 = vld [vmem:[%s11 + $0x18] sm:$0xff]
  %v168 = vld [vmem:[%s11 + $0x20] sm:$0xff]
  %v169 = vld [vmem:[%s11 + $0x28] sm:$0xff]
  %v170 = vld [vmem:[%s11 + $0x30] sm:$0xff]
  %v171 = vld [vmem:[%s11 + $0x38] sm:$0xff]
  %v172 = vld [vmem:[%s11 + $0x40] sm:$0xff]
  %v173 = vld [vmem:[%s11 + $0x48] sm:$0xff]
  %v174 = vld [vmem:[%s11 + $0x50] sm:$0xff]
  %v175 = vld [vmem:[%s11 + $0x58] sm:$0xff]
  %v176 = vld [vmem:[%s11 + $0x60] sm:$0xff]
  %v177 = vld [vmem:[%s11 + $0x68] sm:$0xff]
  %v178 = vld [vmem:[%s11 + $0x70] sm:$0xff]
  %v179 = vld [vmem:[%s11 + $0x78] sm:$0xff]
  %v180 = vld [vmem:[%s12] sm:$0xf]
  %v181 = vld [vmem:[%s12 + $0x4] sm:$0xf]
  %v182 = vld [vmem:[%s12 + $0x8] sm:$0xf]
  %v183 = vld [vmem:[%s12 + $0xc] sm:$0xf]
  %v184 = vld [vmem:[%s13] sm:$0xff]
  %v185 = vld [vmem:[%s13 + $0x8] sm:$0xff]
  %v186 = vld [vmem:[%s13 + $0x10] sm:$0xff]
  %v187 = vld [vmem:[%s13 + $0x18] sm:$0xff]
  %v188 = vld [vmem:[%s14] sm:$0xff]
  %v189 = vld [vmem:[%s14 + $0x8] sm:$0xff]
  %v190 = vld [vmem:[%s15] sm:$0xff]
  %v191 = vld [vmem:[%s15 + $0x8] sm:$0xff]
  %v192 = vld [vmem:[%s16] sm:$0xf]
  %v193 = vld [vmem:[%s16 + $0x4] sm:$0xf]
  %v194 = vld [vmem:[%s16 + $0x8] sm:$0xf]
  %v195 = vld [vmem:[%s16 + $0xc] sm:$0xf]
  %v196 = vld [vmem:[%s16 + $0x10] sm:$0xf]
  %v197 = vld [vmem:[%s16 + $0x14] sm:$0xf]
  %v198 = vld [vmem:[%s16 + $0x18] sm:$0xf]
  %v199 = vld [vmem:[%s16 + $0x1c] sm:$0xf]
  %v200 = vld [vmem:[%s16 + $0x20] sm:$0xf]
  %v201 = vld [vmem:[%s16 + $0x24] sm:$0xf]
  %v202 = vld [vmem:[%s16 + $0x28] sm:$0xf]
  %v203 = vld [vmem:[%s16 + $0x2c] sm:$0xf]
  %v204 = vld [vmem:[%s17] sm:$0xff]
  %v205 = vld [vmem:[%s17 + $0x8] sm:$0xff]
  %v206 = vld [vmem:[%s17 + $0x10] sm:$0xff]
  %v207 = vld [vmem:[%s17 + $0x18] sm:$0xff]
  %v208 = vld [vmem:[%s17 + $0x20] sm:$0xff]
  %v209 = vld [vmem:[%s17 + $0x28] sm:$0xff]
  %v210 = vld [vmem:[%s17 + $0x30] sm:$0xff]
  %v211 = vld [vmem:[%s17 + $0x38] sm:$0xff]
  %v212 = vld [vmem:[%s17 + $0x40] sm:$0xff]
  %v213 = vld [vmem:[%s17 + $0x48] sm:$0xff]
  %v214 = vld [vmem:[%s17 + $0x50] sm:$0xff]
  %v215 = vld [vmem:[%s17 + $0x58] sm:$0xff]
  %v216 = vld [vmem:[%s18] sm:$0xf]
  %v217 = vld [vmem:[%s18 + $0x4] sm:$0xf]
  %v218 = vld [vmem:[%s18 + $0x8] sm:$0xf]
  %v219 = vld [vmem:[%s18 + $0xc] sm:$0xf]
  %v220 = vld [vmem:[%s19] sm:$0xff]
  %v221 = vld [vmem:[%s19 + $0x8] sm:$0xff]
  %v222 = vld [vmem:[%s19 + $0x10] sm:$0xff]
  %v223 = vld [vmem:[%s19 + $0x18] sm:$0xff]
  %v224 = vld [vmem:[%s20] sm:$0xff]
  %v225 = vld [vmem:[%s20 + $0x8] sm:$0xff]
  %v226 = vld [vmem:[%s20 + $0x10] sm:$0xff]
  %v227 = vld [vmem:[%s20 + $0x18] sm:$0xff]
  %v228 = vld [vmem:[%s21] sm:$0xff]
  %v229 = vld [vmem:[%s21 + $0x8] sm:$0xff]
  %v230 = vld [vmem:[%s21 + $0x10] sm:$0xff]
  %v231 = vld [vmem:[%s21 + $0x18] sm:$0xff]
  %v232 = vld [vmem:[%s22] sm:$0xf]
  %v233 = vld [vmem:[%s22 + $0x4] sm:$0xf]
  %v234 = vld [vmem:[%s22 + $0x8] sm:$0xf]
  %v235 = vld [vmem:[%s22 + $0xc] sm:$0xf]
  %v236 = vld [vmem:[%s22 + $0x10] sm:$0xf]
  %v237 = vld [vmem:[%s22 + $0x14] sm:$0xf]
  %v238 = vld [vmem:[%s22 + $0x18] sm:$0xf]
  %v239 = vld [vmem:[%s22 + $0x1c] sm:$0xf]
  %v240 = vld [vmem:[%s22 + $0x20] sm:$0xf]
  %v241 = vld [vmem:[%s22 + $0x24] sm:$0xf]
  %v242 = vld [vmem:[%s22 + $0x28] sm:$0xf]
  %v243 = vld [vmem:[%s22 + $0x2c] sm:$0xf]
  %v244 = vld [vmem:[%s22 + $0x30] sm:$0xf]
  %v245 = vld [vmem:[%s22 + $0x34] sm:$0xf]
  %v246 = vld [vmem:[%s22 + $0x38] sm:$0xf]
  %v247 = vld [vmem:[%s22 + $0x3c] sm:$0xf]
  %v248 = vld [vmem:[%s23] sm:$0xff]
  %v249 = vld [vmem:[%s23 + $0x8] sm:$0xff]
  %v250 = vld [vmem:[%s23 + $0x10] sm:$0xff]
  %v251 = vld [vmem:[%s23 + $0x18] sm:$0xff]
  %v252 = vld [vmem:[%s23 + $0x20] sm:$0xff]
  %v253 = vld [vmem:[%s23 + $0x28] sm:$0xff]
  %v254 = vld [vmem:[%s23 + $0x30] sm:$0xff]
  %v255 = vld [vmem:[%s23 + $0x38] sm:$0xff]
  %v256 = vld [vmem:[%s23 + $0x40] sm:$0xff]
  %v257 = vld [vmem:[%s23 + $0x48] sm:$0xff]
  %v258 = vld [vmem:[%s23 + $0x50] sm:$0xff]
  %v259 = vld [vmem:[%s23 + $0x58] sm:$0xff]
  %v260 = vld [vmem:[%s23 + $0x60] sm:$0xff]
  %v261 = vld [vmem:[%s23 + $0x68] sm:$0xff]
  %v262 = vld [vmem:[%s23 + $0x70] sm:$0xff]
  %v263 = vld [vmem:[%s23 + $0x78] sm:$0xff]
  %v264 = vld [vmem:[%s24] sm:$0xf]
  %v265 = vld [vmem:[%s24 + $0x4] sm:$0xf]
  %v266 = vld [vmem:[%s24 + $0x8] sm:$0xf]
  %v267 = vld [vmem:[%s24 + $0xc] sm:$0xf]
  %v268 = vld [vmem:[%s25] sm:$0xff]
  %v269 = vld [vmem:[%s25 + $0x8] sm:$0xff]
  %v270 = vld [vmem:[%s25 + $0x10] sm:$0xff]
  %v271 = vld [vmem:[%s25 + $0x18] sm:$0xff]
  %v272 = vld [vmem:[%s0] sm:$0xff]
  %v273 = vld [vmem:[%s0 + $0x8] sm:$0xff]
  %v274 = vld [vmem:[%s0 + $0x10] sm:$0xff]
  %v275 = vld [vmem:[%s0 + $0x18] sm:$0xff]
  %v276 = vadd.f32 %v272, %v273
  %v277 = vadd.f32 %v276, %v274
  %v278 = vadd.f32 %v277, %v275
  %v279 = vrot.slane %v278, 4
  %v280 = vadd.f32 %v278, %v279
  %v281 = vrot.slane %v280, 2
  %v282 = vadd.f32 %v280, %v281
  %v283 = vrot.slane %v282, 1
  %v284 = vadd.f32 %v282, %v283
  %v285 = vrcp.pop 32.0
  %v286 = vmul.f32 %v284, %v285
  %v287 = vsub.f32 %v272, %v286
  %v288 = vsub.f32 %v273, %v286
  %v289 = vsub.f32 %v274, %v286
  %v290 = vsub.f32 %v275, %v286
  %v291 = vmul.f32 %v287, %v287
  %v292 = vmul.f32 %v288, %v288
  %v293 = vmul.f32 %v289, %v289
  %v294 = vmul.f32 %v290, %v290
  %v295 = vadd.f32 %v291, %v292
  %v296 = vadd.f32 %v295, %v293
  %v297 = vadd.f32 %v296, %v294
  %v298 = vrot.slane %v297, 4
  %v299 = vadd.f32 %v297, %v298
  %v300 = vrot.slane %v299, 2
  %v301 = vadd.f32 %v299, %v300
  %v302 = vrot.slane %v301, 1
  %v303 = vadd.f32 %v301, %v302
  %v304 = vmul.f32 %v303, %v285
  %v305 = vadd.f32 %v304, 1e-05
  %v306 = vrsqrt.pop %v305
  %v307 = vmul.f32 %v287, %v306
  %v308 = vmul.f32 %v288, %v306
  %v309 = vmul.f32 %v289, %v306
  %v310 = vmul.f32 %v290, %v306
  %312 = vset.pattern.permute.xlu0 0
  %313 = vperm.xlu0 %312, %v100
  %v314 = vpop.permute.xlu0 %313
  %317 = vset.pattern.permute.xlu0 0
  %318 = vperm.xlu0 %317, %v101
  %v319 = vpop.permute.xlu0 %318
  %322 = vset.pattern.permute.xlu0 0
  %323 = vperm.xlu0 %322, %v102
  %v324 = vpop.permute.xlu0 %323
  %327 = vset.pattern.permute.xlu0 0
  %328 = vperm.xlu0 %327, %v103
  %v329 = vpop.permute.xlu0 %328
  %v331 = vmul.f32 %v307, %v314
  %v332 = vmul.f32 %v308, %v319
  %v333 = vmul.f32 %v309, %v324
  %v334 = vmul.f32 %v310, %v329
  %336 = vset.pattern.permute.xlu0 0
  %337 = vperm.xlu0 %336, %v104
  %v338 = vpop.permute.xlu0 %337
  %341 = vset.pattern.permute.xlu0 0
  %342 = vperm.xlu0 %341, %v105
  %v343 = vpop.permute.xlu0 %342
  %346 = vset.pattern.permute.xlu0 0
  %347 = vperm.xlu0 %346, %v106
  %v348 = vpop.permute.xlu0 %347
  %351 = vset.pattern.permute.xlu0 0
  %352 = vperm.xlu0 %351, %v107
  %v353 = vpop.permute.xlu0 %352
  %v355 = vadd.f32 %v331, %v338
  %v356 = vadd.f32 %v332, %v343
  %v357 = vadd.f32 %v333, %v348
  %v358 = vadd.f32 %v334, %v353
  %v359 = vpack.c.bf16 %v356, %v355
  %v360 = vpack.c.bf16 %v358, %v357
  %362 = vset.pattern.permute.xlu0 0
  %363 = vperm.xlu0 %362, %v120
  %v364 = vpop.permute.xlu0 %363
  %367 = vset.pattern.permute.xlu0 0
  %368 = vperm.xlu0 %367, %v121
  %v369 = vpop.permute.xlu0 %368
  %372 = vset.pattern.permute.xlu0 0
  %373 = vperm.xlu0 %372, %v122
  %v374 = vpop.permute.xlu0 %373
  %377 = vset.pattern.permute.xlu0 0
  %378 = vperm.xlu0 %377, %v123
  %v379 = vpop.permute.xlu0 %378
  %382 = vset.pattern.permute.xlu0 0
  %383 = vperm.xlu0 %382, %v124
  %v384 = vpop.permute.xlu0 %383
  %387 = vset.pattern.permute.xlu0 0
  %388 = vperm.xlu0 %387, %v125
  %v389 = vpop.permute.xlu0 %388
  %392 = vset.pattern.permute.xlu0 0
  %393 = vperm.xlu0 %392, %v126
  %v394 = vpop.permute.xlu0 %393
  %397 = vset.pattern.permute.xlu0 0
  %398 = vperm.xlu0 %397, %v127
  %v399 = vpop.permute.xlu0 %398
  %402 = vset.pattern.permute.xlu0 0
  %403 = vperm.xlu0 %402, %v128
  %v404 = vpop.permute.xlu0 %403
  %407 = vset.pattern.permute.xlu0 0
  %408 = vperm.xlu0 %407, %v129
  %v409 = vpop.permute.xlu0 %408
  %412 = vset.pattern.permute.xlu0 0
  %413 = vperm.xlu0 %412, %v130
  %v414 = vpop.permute.xlu0 %413
  %417 = vset.pattern.permute.xlu0 0
  %418 = vperm.xlu0 %417, %v131
  %v419 = vpop.permute.xlu0 %418
  %v433 = vunpack.c.l.b16 %v108
  %v434 = vunpack.c.l.b16 %v109
  %v435 = vunpack.c.l.b16 %v110
  %v436 = vunpack.c.l.b16 %v111
  %v437 = vunpack.c.l.b16 %v112
  %v438 = vunpack.c.l.b16 %v113
  %v439 = vunpack.c.l.b16 %v114
  %v440 = vunpack.c.l.b16 %v115
  %v441 = vunpack.c.l.b16 %v116
  %v442 = vunpack.c.l.b16 %v117
  %v443 = vunpack.c.l.b16 %v118
  %v444 = vunpack.c.l.b16 %v119
  %v445 = vpack.c.b16 %v434, %v433
  %v446 = vpack.c.b16 %v436, %v435
  %v447 = vpack.c.b16 %v438, %v437
  %v448 = vpack.c.b16 %v440, %v439
  %v449 = vpack.c.b16 %v442, %v441
  %v450 = vpack.c.b16 %v444, %v443
  %vm451 = vcmask 261120
  %v453 = vsel %vm451, %v445, 0
  %v456 = vsel %vm451, %v446, 0
  %v459 = vsel %vm451, %v447, 0
  %v462 = vsel %vm451, %v448, 0
  %v465 = vsel %vm451, %v449, 0
  %v468 = vsel %vm451, %v450, 0
  %470 = vmatprep.subr.bf16.mxu0 0
  %471 = vmatpush1.bf16.msra.mxu0 %v359
  %472 = vmatprep.subr.bf16.mxu0 0
  %473 = vmatpush1.bf16.msra.mxu0 %v360
  %474 = vmatprep.subr.bf16.mxu0 0
  %475 = vmatpush1.bf16.msra.mxu0 0
  %476 = vmatprep.subr.bf16.mxu0 0
  %477 = vmatpush1.bf16.msra.mxu0 0
  %478 = vmatprep.subr.bf16.mxu0 0
  %479 = vmatpush1.bf16.msra.mxu0 0
  %480 = vmatprep.subr.bf16.mxu0 0
  %481 = vmatpush1.bf16.msra.mxu0 0
  %482 = vmatprep.subr.bf16.mxu0 0
  %483 = vmatpush1.bf16.msra.mxu0 0
  %484 = vmatprep.subr.bf16.mxu0 0
  %485 = vmatpush1.bf16.msra.mxu0 0
  %486 = vmatprep.subr.bf16.mxu0 0
  %487 = vmatpush1.bf16.msra.mxu0 0
  %488 = vmatprep.subr.bf16.mxu0 0
  %489 = vmatpush1.bf16.msra.mxu0 0
  %490 = vmatprep.subr.bf16.mxu0 0
  %491 = vmatpush1.bf16.msra.mxu0 0
  %492 = vmatprep.subr.bf16.mxu0 0
  %493 = vmatpush1.bf16.msra.mxu0 0
  %494 = vmatprep.subr.bf16.mxu0 0
  %495 = vmatpush1.bf16.msra.mxu0 0
  %496 = vmatprep.subr.bf16.mxu0 0
  %497 = vmatpush1.bf16.msra.mxu0 0
  %498 = vmatprep.subr.bf16.mxu0 0
  %499 = vmatpush1.bf16.msra.mxu0 0
  %500 = vmatprep.subr.bf16.mxu0 0
  %501 = vmatpush1.bf16.msra.mxu0 0
  %502 = vmatprep.mubr.bf16.mxu0 0
  %503 = vmatmul.mubr.bf16.gmra.mrb[0].mxu0 %v453
  %v504 = vpop.f32.mrb[0].mxu0
  %v505 = vadd.f32 %v364, %v504
  %v506 = vpop.f32.mrb[0].mxu0
  %v507 = vpop.f32.mrb[0].mxu0
  %v508 = vadd.f32 %v369, %v507
  %v509 = vpop.f32.mrb[0].mxu0
  %510 = vmatprep.mubr.bf16.mxu0 0
  %511 = vmatmul.mubr.bf16.gmra.mrb[0].mxu0 %v456
  %v512 = vpop.f32.mrb[0].mxu0
  %v513 = vadd.f32 %v374, %v512
  %v514 = vpop.f32.mrb[0].mxu0
  %v515 = vpop.f32.mrb[0].mxu0
  %v516 = vadd.f32 %v379, %v515
  %v517 = vpop.f32.mrb[0].mxu0
  %518 = vmatprep.mubr.bf16.mxu0 0
  %519 = vmatmul.mubr.bf16.gmra.mrb[0].mxu0 %v459
  %v520 = vpop.f32.mrb[0].mxu0
  %v521 = vadd.f32 %v384, %v520
  %v522 = vpop.f32.mrb[0].mxu0
  %v523 = vpop.f32.mrb[0].mxu0
  %v524 = vadd.f32 %v389, %v523
  %v525 = vpop.f32.mrb[0].mxu0
  %526 = vmatprep.mubr.bf16.mxu0 0
  %527 = vmatmul.mubr.bf16.gmra.mrb[0].mxu0 %v462
  %v528 = vpop.f32.mrb[0].mxu0
  %v529 = vadd.f32 %v394, %v528
  %v530 = vpop.f32.mrb[0].mxu0
  %v531 = vpop.f32.mrb[0].mxu0
  %v532 = vadd.f32 %v399, %v531
  %v533 = vpop.f32.mrb[0].mxu0
  %534 = vmatprep.mubr.bf16.mxu0 0
  %535 = vmatmul.mubr.bf16.gmra.mrb[0].mxu0 %v465
  %v536 = vpop.f32.mrb[0].mxu0
  %v537 = vadd.f32 %v404, %v536
  %v538 = vpop.f32.mrb[0].mxu0
  %v539 = vpop.f32.mrb[0].mxu0
  %v540 = vadd.f32 %v409, %v539
  %v541 = vpop.f32.mrb[0].mxu0
  %542 = vmatprep.mubr.bf16.mxu0 0
  %543 = vmatmul.mubr.bf16.gmra.mrb[0].mxu0 %v468
  %v544 = vpop.f32.mrb[0].mxu0
  %v545 = vadd.f32 %v414, %v544
  %v546 = vpop.f32.mrb[0].mxu0
  %v547 = vpop.f32.mrb[0].mxu0
  %v548 = vadd.f32 %v419, %v547
  %v549 = vpop.f32.mrb[0].mxu0
  %550 = vdwg.mxu0
  %v551 = vmul.f32 %v505, 0.35355338
  %v552 = vmul.f32 %v508, 0.35355338
  %v553 = vmul.f32 %v513, 0.35355338
  %v554 = vmul.f32 %v516, 0.35355338
  %v555 = vpack.c.bf16 %v551, %v551
  %v556 = vpack.c.bf16 %v552, %v552
  %v557 = vpack.c.bf16 %v553, %v553
  %v558 = vpack.c.bf16 %v554, %v554
  %v559 = vpack.c.bf16 %v521, %v521
  %v560 = vpack.c.bf16 %v524, %v524
  %v561 = vpack.c.bf16 %v529, %v529
  %v562 = vpack.c.bf16 %v532, %v532
  %v563 = vpack.c.bf16 %v537, %v537
  %v564 = vpack.c.bf16 %v540, %v540
  %v565 = vpack.c.bf16 %v545, %v545
  %v566 = vpack.c.bf16 %v548, %v548
  %567 = vxpose.xlu0.c.b16.start [1/8] %v555, 128
  %568 = vxpose.xlu0.c.b16.cont [2/8] 0, 128
  %569 = vxpose.xlu0.c.b16.cont [3/8] 0, 128
  %570 = vxpose.xlu0.c.b16.cont [4/8] 0, 128
  %571 = vxpose.xlu0.c.b16.cont [5/8] 0, 128
  %572 = vxpose.xlu0.c.b16.cont [6/8] 0, 128
  %573 = vxpose.xlu0.c.b16.cont [7/8] 0, 128
  %574 = vxpose.xlu0.c.b16.end [8/8] 0, 128
  %v575 = vpop.trf.xlu0
  %v576 = vpop.trf.xlu0
  %v577 = vpop.trf.xlu0
  %v578 = vpop.trf.xlu0
  %v579 = vpop.trf.xlu0
  %v580 = vpop.trf.xlu0
  %v581 = vpop.trf.xlu0
  %v582 = vpop.trf.xlu0
  %vm583 = vcmask 64512
  %v585 = vsel %vm583, %v575, 0
  %v588 = vsel %vm583, %v576, 0
  %v591 = vsel %vm583, %v577, 0
  %v594 = vsel %vm583, %v578, 0
  %v597 = vsel %vm583, %v579, 0
  %v600 = vsel %vm583, %v580, 0
  %v603 = vsel %vm583, %v581, 0
  %v606 = vsel %vm583, %v582, 0
  %vm608 = vcmask 1043456
  %v610 = vsel %vm608, %v559, 0
  %612 = vmatprep.subr.bf16.mxu0 0
  %613 = vmatpush1.bf16.msra.mxu0 %v610
  %614 = vmatprep.subr.bf16.mxu0 0
  %615 = vmatpush1.bf16.msra.mxu0 0
  %616 = vmatprep.subr.bf16.mxu0 0
  %617 = vmatpush1.bf16.msra.mxu0 0
  %618 = vmatprep.subr.bf16.mxu0 0
  %619 = vmatpush1.bf16.msra.mxu0 0
  %620 = vmatprep.subr.bf16.mxu0 0
  %621 = vmatpush1.bf16.msra.mxu0 0
  %622 = vmatprep.subr.bf16.mxu0 0
  %623 = vmatpush1.bf16.msra.mxu0 0
  %624 = vmatprep.subr.bf16.mxu0 0
  %625 = vmatpush1.bf16.msra.mxu0 0
  %626 = vmatprep.subr.bf16.mxu0 0
  %627 = vmatpush1.bf16.msra.mxu0 0
  %628 = vmatprep.subr.bf16.mxu0 0
  %629 = vmatpush1.bf16.msra.mxu0 0
  %630 = vmatprep.subr.bf16.mxu0 0
  %631 = vmatpush1.bf16.msra.mxu0 0
  %632 = vmatprep.subr.bf16.mxu0 0
  %633 = vmatpush1.bf16.msra.mxu0 0
  %634 = vmatprep.subr.bf16.mxu0 0
  %635 = vmatpush1.bf16.msra.mxu0 0
  %636 = vmatprep.subr.bf16.mxu0 0
  %637 = vmatpush1.bf16.msra.mxu0 0
  %638 = vmatprep.subr.bf16.mxu0 0
  %639 = vmatpush1.bf16.msra.mxu0 0
  %640 = vmatprep.subr.bf16.mxu0 0
  %641 = vmatpush1.bf16.msra.mxu0 0
  %642 = vmatprep.subr.bf16.mxu0 0
  %643 = vmatpush1.bf16.msra.mxu0 0
  %644 = vmatprep.mubr.bf16.mxu0 0
  %645 = vmatmul.mubr.bf16.gmra.mrb[0].mxu0 %v585
  %v646 = vpop.f32.mrb[0].mxu0
  %v647 = vadd.f32 %v84, %v646
  %v648 = vpop.f32.mrb[0].mxu0
  %v649 = vpop.f32.mrb[0].mxu0
  %v650 = vadd.f32 %v85, %v649
  %v651 = vpop.f32.mrb[0].mxu0
  %652 = vmatprep.mubr.bf16.mxu0 0
  %653 = vmatmul.mubr.bf16.gmra.mrb[0].mxu0 %v588
  %v654 = vpop.f32.mrb[0].mxu0
  %v655 = vadd.f32 %v86, %v654
  %v656 = vpop.f32.mrb[0].mxu0
  %v657 = vpop.f32.mrb[0].mxu0
  %v658 = vadd.f32 %v87, %v657
  %v659 = vpop.f32.mrb[0].mxu0
  %660 = vmatprep.mubr.bf16.mxu0 0
  %661 = vmatmul.mubr.bf16.gmra.mrb[0].mxu0 %v591
  %v662 = vpop.f32.mrb[0].mxu0
  %v663 = vadd.f32 %v88, %v662
  %v664 = vpop.f32.mrb[0].mxu0
  %v665 = vpop.f32.mrb[0].mxu0
  %v666 = vadd.f32 %v89, %v665
  %v667 = vpop.f32.mrb[0].mxu0
  %668 = vmatprep.mubr.bf16.mxu0 0
  %669 = vmatmul.mubr.bf16.gmra.mrb[0].mxu0 %v594
  %v670 = vpop.f32.mrb[0].mxu0
  %v671 = vadd.f32 %v90, %v670
  %v672 = vpop.f32.mrb[0].mxu0
  %v673 = vpop.f32.mrb[0].mxu0
  %v674 = vadd.f32 %v91, %v673
  %v675 = vpop.f32.mrb[0].mxu0
  %676 = vmatprep.mubr.bf16.mxu0 0
  %677 = vmatmul.mubr.bf16.gmra.mrb[0].mxu0 %v597
  %v678 = vpop.f32.mrb[0].mxu0
  %v679 = vadd.f32 %v92, %v678
  %v680 = vpop.f32.mrb[0].mxu0
  %v681 = vpop.f32.mrb[0].mxu0
  %v682 = vadd.f32 %v93, %v681
  %v683 = vpop.f32.mrb[0].mxu0
  %684 = vmatprep.mubr.bf16.mxu0 0
  %685 = vmatmul.mubr.bf16.gmra.mrb[0].mxu0 %v600
  %v686 = vpop.f32.mrb[0].mxu0
  %v687 = vadd.f32 %v94, %v686
  %v688 = vpop.f32.mrb[0].mxu0
  %v689 = vpop.f32.mrb[0].mxu0
  %v690 = vadd.f32 %v95, %v689
  %v691 = vpop.f32.mrb[0].mxu0
  %692 = vmatprep.mubr.bf16.mxu0 0
  %693 = vmatmul.mubr.bf16.gmra.mrb[0].mxu0 %v603
  %v694 = vpop.f32.mrb[0].mxu0
  %v695 = vadd.f32 %v96, %v694
  %v696 = vpop.f32.mrb[0].mxu0
  %v697 = vpop.f32.mrb[0].mxu0
  %v698 = vadd.f32 %v97, %v697
  %v699 = vpop.f32.mrb[0].mxu0
  %700 = vmatprep.mubr.bf16.mxu0 0
  %701 = vmatmul.mubr.bf16.gmra.mrb[0].mxu0 %v606
  %v702 = vpop.f32.mrb[0].mxu0
  %v703 = vadd.f32 %v98, %v702
  %v704 = vpop.f32.mrb[0].mxu0
  %v705 = vpop.f32.mrb[0].mxu0
  %v706 = vadd.f32 %v99, %v705
  %v707 = vpop.f32.mrb[0].mxu0
  %708 = vdwg.mxu0
  %709 = vxpose.xlu0.c.b16.start [1/8] %v556, 128
  %710 = vxpose.xlu0.c.b16.cont [2/8] 0, 128
  %711 = vxpose.xlu0.c.b16.cont [3/8] 0, 128
  %712 = vxpose.xlu0.c.b16.cont [4/8] 0, 128
  %713 = vxpose.xlu0.c.b16.cont [5/8] 0, 128
  %714 = vxpose.xlu0.c.b16.cont [6/8] 0, 128
  %715 = vxpose.xlu0.c.b16.cont [7/8] 0, 128
  %716 = vxpose.xlu0.c.b16.end [8/8] 0, 128
  %v717 = vpop.trf.xlu0
  %v718 = vpop.trf.xlu0
  %v719 = vpop.trf.xlu0
  %v720 = vpop.trf.xlu0
  %v721 = vpop.trf.xlu0
  %v722 = vpop.trf.xlu0
  %v723 = vpop.trf.xlu0
  %v724 = vpop.trf.xlu0
  %v726 = vsel %vm583, %v717, 0
  %v729 = vsel %vm583, %v718, 0
  %v732 = vsel %vm583, %v719, 0
  %v735 = vsel %vm583, %v720, 0
  %v738 = vsel %vm583, %v721, 0
  %v741 = vsel %vm583, %v722, 0
  %v744 = vsel %vm583, %v723, 0
  %v747 = vsel %vm583, %v724, 0
  %v750 = vsel %vm608, %v560, 0
  %752 = vmatprep.subr.bf16.mxu0 0
  %753 = vmatpush1.bf16.msra.mxu0 %v750
  %754 = vmatprep.subr.bf16.mxu0 0
  %755 = vmatpush1.bf16.msra.mxu0 0
  %756 = vmatprep.subr.bf16.mxu0 0
  %757 = vmatpush1.bf16.msra.mxu0 0
  %758 = vmatprep.subr.bf16.mxu0 0
  %759 = vmatpush1.bf16.msra.mxu0 0
  %760 = vmatprep.subr.bf16.mxu0 0
  %761 = vmatpush1.bf16.msra.mxu0 0
  %762 = vmatprep.subr.bf16.mxu0 0
  %763 = vmatpush1.bf16.msra.mxu0 0
  %764 = vmatprep.subr.bf16.mxu0 0
  %765 = vmatpush1.bf16.msra.mxu0 0
  %766 = vmatprep.subr.bf16.mxu0 0
  %767 = vmatpush1.bf16.msra.mxu0 0
  %768 = vmatprep.subr.bf16.mxu0 0
  %769 = vmatpush1.bf16.msra.mxu0 0
  %770 = vmatprep.subr.bf16.mxu0 0
  %771 = vmatpush1.bf16.msra.mxu0 0
  %772 = vmatprep.subr.bf16.mxu0 0
  %773 = vmatpush1.bf16.msra.mxu0 0
  %774 = vmatprep.subr.bf16.mxu0 0
  %775 = vmatpush1.bf16.msra.mxu0 0
  %776 = vmatprep.subr.bf16.mxu0 0
  %777 = vmatpush1.bf16.msra.mxu0 0
  %778 = vmatprep.subr.bf16.mxu0 0
  %779 = vmatpush1.bf16.msra.mxu0 0
  %780 = vmatprep.subr.bf16.mxu0 0
  %781 = vmatpush1.bf16.msra.mxu0 0
  %782 = vmatprep.subr.bf16.mxu0 0
  %783 = vmatpush1.bf16.msra.mxu0 0
  %784 = vmatprep.mubr.bf16.mxu0 0
  %785 = vmatmul.mubr.bf16.gmra.mrb[0].mxu0 %v726
  %v786 = vpop.f32.mrb[0].mxu0
  %v787 = vadd.f32 %v84, %v786
  %v788 = vpop.f32.mrb[0].mxu0
  %v789 = vpop.f32.mrb[0].mxu0
  %v790 = vadd.f32 %v85, %v789
  %v791 = vpop.f32.mrb[0].mxu0
  %792 = vmatprep.mubr.bf16.mxu0 0
  %793 = vmatmul.mubr.bf16.gmra.mrb[0].mxu0 %v729
  %v794 = vpop.f32.mrb[0].mxu0
  %v795 = vadd.f32 %v86, %v794
  %v796 = vpop.f32.mrb[0].mxu0
  %v797 = vpop.f32.mrb[0].mxu0
  %v798 = vadd.f32 %v87, %v797
  %v799 = vpop.f32.mrb[0].mxu0
  %800 = vmatprep.mubr.bf16.mxu0 0
  %801 = vmatmul.mubr.bf16.gmra.mrb[0].mxu0 %v732
  %v802 = vpop.f32.mrb[0].mxu0
  %v803 = vadd.f32 %v88, %v802
  %v804 = vpop.f32.mrb[0].mxu0
  %v805 = vpop.f32.mrb[0].mxu0
  %v806 = vadd.f32 %v89, %v805
  %v807 = vpop.f32.mrb[0].mxu0
  %808 = vmatprep.mubr.bf16.mxu0 0
  %809 = vmatmul.mubr.bf16.gmra.mrb[0].mxu0 %v735
  %v810 = vpop.f32.mrb[0].mxu0
  %v811 = vadd.f32 %v90, %v810
  %v812 = vpop.f32.mrb[0].mxu0
  %v813 = vpop.f32.mrb[0].mxu0
  %v814 = vadd.f32 %v91, %v813
  %v815 = vpop.f32.mrb[0].mxu0
  %816 = vmatprep.mubr.bf16.mxu0 0
  %817 = vmatmul.mubr.bf16.gmra.mrb[0].mxu0 %v738
  %v818 = vpop.f32.mrb[0].mxu0
  %v819 = vadd.f32 %v92, %v818
  %v820 = vpop.f32.mrb[0].mxu0
  %v821 = vpop.f32.mrb[0].mxu0
  %v822 = vadd.f32 %v93, %v821
  %v823 = vpop.f32.mrb[0].mxu0
  %824 = vmatprep.mubr.bf16.mxu0 0
  %825 = vmatmul.mubr.bf16.gmra.mrb[0].mxu0 %v741
  %v826 = vpop.f32.mrb[0].mxu0
  %v827 = vadd.f32 %v94, %v826
  %v828 = vpop.f32.mrb[0].mxu0
  %v829 = vpop.f32.mrb[0].mxu0
  %v830 = vadd.f32 %v95, %v829
  %v831 = vpop.f32.mrb[0].mxu0
  %832 = vmatprep.mubr.bf16.mxu0 0
  %833 = vmatmul.mubr.bf16.gmra.mrb[0].mxu0 %v744
  %v834 = vpop.f32.mrb[0].mxu0
  %v835 = vadd.f32 %v96, %v834
  %v836 = vpop.f32.mrb[0].mxu0
  %v837 = vpop.f32.mrb[0].mxu0
  %v838 = vadd.f32 %v97, %v837
  %v839 = vpop.f32.mrb[0].mxu0
  %840 = vmatprep.mubr.bf16.mxu0 0
  %841 = vmatmul.mubr.bf16.gmra.mrb[0].mxu0 %v747
  %v842 = vpop.f32.mrb[0].mxu0
  %v843 = vadd.f32 %v98, %v842
  %v844 = vpop.f32.mrb[0].mxu0
  %v845 = vpop.f32.mrb[0].mxu0
  %v846 = vadd.f32 %v99, %v845
  %v847 = vpop.f32.mrb[0].mxu0
  %848 = vdwg.mxu0
  %849 = vxpose.xlu0.c.b16.start [1/8] %v557, 128
  %850 = vxpose.xlu0.c.b16.cont [2/8] 0, 128
  %851 = vxpose.xlu0.c.b16.cont [3/8] 0, 128
  %852 = vxpose.xlu0.c.b16.cont [4/8] 0, 128
  %853 = vxpose.xlu0.c.b16.cont [5/8] 0, 128
  %854 = vxpose.xlu0.c.b16.cont [6/8] 0, 128
  %855 = vxpose.xlu0.c.b16.cont [7/8] 0, 128
  %856 = vxpose.xlu0.c.b16.end [8/8] 0, 128
  %v857 = vpop.trf.xlu0
  %v858 = vpop.trf.xlu0
  %v859 = vpop.trf.xlu0
  %v860 = vpop.trf.xlu0
  %v861 = vpop.trf.xlu0
  %v862 = vpop.trf.xlu0
  %v863 = vpop.trf.xlu0
  %v864 = vpop.trf.xlu0
  %v866 = vsel %vm583, %v857, 0
  %v869 = vsel %vm583, %v858, 0
  %v872 = vsel %vm583, %v859, 0
  %v875 = vsel %vm583, %v860, 0
  %v878 = vsel %vm583, %v861, 0
  %v881 = vsel %vm583, %v862, 0
  %v884 = vsel %vm583, %v863, 0
  %v887 = vsel %vm583, %v864, 0
  %v890 = vsel %vm608, %v561, 0
  %892 = vmatprep.subr.bf16.mxu0 0
  %893 = vmatpush1.bf16.msra.mxu0 %v890
  %894 = vmatprep.subr.bf16.mxu0 0
  %895 = vmatpush1.bf16.msra.mxu0 0
  %896 = vmatprep.subr.bf16.mxu0 0
  %897 = vmatpush1.bf16.msra.mxu0 0
  %898 = vmatprep.subr.bf16.mxu0 0
  %899 = vmatpush1.bf16.msra.mxu0 0
  %900 = vmatprep.subr.bf16.mxu0 0
  %901 = vmatpush1.bf16.msra.mxu0 0
  %902 = vmatprep.subr.bf16.mxu0 0
  %903 = vmatpush1.bf16.msra.mxu0 0
  %904 = vmatprep.subr.bf16.mxu0 0
  %905 = vmatpush1.bf16.msra.mxu0 0
  %906 = vmatprep.subr.bf16.mxu0 0
  %907 = vmatpush1.bf16.msra.mxu0 0
  %908 = vmatprep.subr.bf16.mxu0 0
  %909 = vmatpush1.bf16.msra.mxu0 0
  %910 = vmatprep.subr.bf16.mxu0 0
  %911 = vmatpush1.bf16.msra.mxu0 0
  %912 = vmatprep.subr.bf16.mxu0 0
  %913 = vmatpush1.bf16.msra.mxu0 0
  %914 = vmatprep.subr.bf16.mxu0 0
  %915 = vmatpush1.bf16.msra.mxu0 0
  %916 = vmatprep.subr.bf16.mxu0 0
  %917 = vmatpush1.bf16.msra.mxu0 0
  %918 = vmatprep.subr.bf16.mxu0 0
  %919 = vmatpush1.bf16.msra.mxu0 0
  %920 = vmatprep.subr.bf16.mxu0 0
  %921 = vmatpush1.bf16.msra.mxu0 0
  %922 = vmatprep.subr.bf16.mxu0 0
  %923 = vmatpush1.bf16.msra.mxu0 0
  %924 = vmatprep.mubr.bf16.mxu0 0
  %925 = vmatmul.mubr.bf16.gmra.mrb[0].mxu0 %v866
  %v926 = vpop.f32.mrb[0].mxu0
  %v927 = vadd.f32 %v84, %v926
  %v928 = vpop.f32.mrb[0].mxu0
  %v929 = vpop.f32.mrb[0].mxu0
  %v930 = vadd.f32 %v85, %v929
  %v931 = vpop.f32.mrb[0].mxu0
  %932 = vmatprep.mubr.bf16.mxu0 0
  %933 = vmatmul.mubr.bf16.gmra.mrb[0].mxu0 %v869
  %v934 = vpop.f32.mrb[0].mxu0
  %v935 = vadd.f32 %v86, %v934
  %v936 = vpop.f32.mrb[0].mxu0
  %v937 = vpop.f32.mrb[0].mxu0
  %v938 = vadd.f32 %v87, %v937
  %v939 = vpop.f32.mrb[0].mxu0
  %940 = vmatprep.mubr.bf16.mxu0 0
  %941 = vmatmul.mubr.bf16.gmra.mrb[0].mxu0 %v872
  %v942 = vpop.f32.mrb[0].mxu0
  %v943 = vadd.f32 %v88, %v942
  %v944 = vpop.f32.mrb[0].mxu0
  %v945 = vpop.f32.mrb[0].mxu0
  %v946 = vadd.f32 %v89, %v945
  %v947 = vpop.f32.mrb[0].mxu0
  %948 = vmatprep.mubr.bf16.mxu0 0
  %949 = vmatmul.mubr.bf16.gmra.mrb[0].mxu0 %v875
  %v950 = vpop.f32.mrb[0].mxu0
  %v951 = vadd.f32 %v90, %v950
  %v952 = vpop.f32.mrb[0].mxu0
  %v953 = vpop.f32.mrb[0].mxu0
  %v954 = vadd.f32 %v91, %v953
  %v955 = vpop.f32.mrb[0].mxu0
  %956 = vmatprep.mubr.bf16.mxu0 0
  %957 = vmatmul.mubr.bf16.gmra.mrb[0].mxu0 %v878
  %v958 = vpop.f32.mrb[0].mxu0
  %v959 = vadd.f32 %v92, %v958
  %v960 = vpop.f32.mrb[0].mxu0
  %v961 = vpop.f32.mrb[0].mxu0
  %v962 = vadd.f32 %v93, %v961
  %v963 = vpop.f32.mrb[0].mxu0
  %964 = vmatprep.mubr.bf16.mxu0 0
  %965 = vmatmul.mubr.bf16.gmra.mrb[0].mxu0 %v881
  %v966 = vpop.f32.mrb[0].mxu0
  %v967 = vadd.f32 %v94, %v966
  %v968 = vpop.f32.mrb[0].mxu0
  %v969 = vpop.f32.mrb[0].mxu0
  %v970 = vadd.f32 %v95, %v969
  %v971 = vpop.f32.mrb[0].mxu0
  %972 = vmatprep.mubr.bf16.mxu0 0
  %973 = vmatmul.mubr.bf16.gmra.mrb[0].mxu0 %v884
  %v974 = vpop.f32.mrb[0].mxu0
  %v975 = vadd.f32 %v96, %v974
  %v976 = vpop.f32.mrb[0].mxu0
  %v977 = vpop.f32.mrb[0].mxu0
  %v978 = vadd.f32 %v97, %v977
  %v979 = vpop.f32.mrb[0].mxu0
  %980 = vmatprep.mubr.bf16.mxu0 0
  %981 = vmatmul.mubr.bf16.gmra.mrb[0].mxu0 %v887
  %v982 = vpop.f32.mrb[0].mxu0
  %v983 = vadd.f32 %v98, %v982
  %v984 = vpop.f32.mrb[0].mxu0
  %v985 = vpop.f32.mrb[0].mxu0
  %v986 = vadd.f32 %v99, %v985
  %v987 = vpop.f32.mrb[0].mxu0
  %988 = vdwg.mxu0
  %989 = vxpose.xlu0.c.b16.start [1/8] %v558, 128
  %990 = vxpose.xlu0.c.b16.cont [2/8] 0, 128
  %991 = vxpose.xlu0.c.b16.cont [3/8] 0, 128
  %992 = vxpose.xlu0.c.b16.cont [4/8] 0, 128
  %993 = vxpose.xlu0.c.b16.cont [5/8] 0, 128
  %994 = vxpose.xlu0.c.b16.cont [6/8] 0, 128
  %995 = vxpose.xlu0.c.b16.cont [7/8] 0, 128
  %996 = vxpose.xlu0.c.b16.end [8/8] 0, 128
  %v997 = vpop.trf.xlu0
  %v998 = vpop.trf.xlu0
  %v999 = vpop.trf.xlu0
  %v1000 = vpop.trf.xlu0
  %v1001 = vpop.trf.xlu0
  %v1002 = vpop.trf.xlu0
  %v1003 = vpop.trf.xlu0
  %v1004 = vpop.trf.xlu0
  %v1006 = vsel %vm583, %v997, 0
  %v1009 = vsel %vm583, %v998, 0
  %v1012 = vsel %vm583, %v999, 0
  %v1015 = vsel %vm583, %v1000, 0
  %v1018 = vsel %vm583, %v1001, 0
  %v1021 = vsel %vm583, %v1002, 0
  %v1024 = vsel %vm583, %v1003, 0
  %v1027 = vsel %vm583, %v1004, 0
  %v1030 = vsel %vm608, %v562, 0
  %1032 = vmatprep.subr.bf16.mxu0 0
  %1033 = vmatpush1.bf16.msra.mxu0 %v1030
  %1034 = vmatprep.subr.bf16.mxu0 0
  %1035 = vmatpush1.bf16.msra.mxu0 0
  %1036 = vmatprep.subr.bf16.mxu0 0
  %1037 = vmatpush1.bf16.msra.mxu0 0
  %1038 = vmatprep.subr.bf16.mxu0 0
  %1039 = vmatpush1.bf16.msra.mxu0 0
  %1040 = vmatprep.subr.bf16.mxu0 0
  %1041 = vmatpush1.bf16.msra.mxu0 0
  %1042 = vmatprep.subr.bf16.mxu0 0
  %1043 = vmatpush1.bf16.msra.mxu0 0
  %1044 = vmatprep.subr.bf16.mxu0 0
  %1045 = vmatpush1.bf16.msra.mxu0 0
  %1046 = vmatprep.subr.bf16.mxu0 0
  %1047 = vmatpush1.bf16.msra.mxu0 0
  %1048 = vmatprep.subr.bf16.mxu0 0
  %1049 = vmatpush1.bf16.msra.mxu0 0
  %1050 = vmatprep.subr.bf16.mxu0 0
  %1051 = vmatpush1.bf16.msra.mxu0 0
  %1052 = vmatprep.subr.bf16.mxu0 0
  %1053 = vmatpush1.bf16.msra.mxu0 0
  %1054 = vmatprep.subr.bf16.mxu0 0
  %1055 = vmatpush1.bf16.msra.mxu0 0
  %1056 = vmatprep.subr.bf16.mxu0 0
  %1057 = vmatpush1.bf16.msra.mxu0 0
  %1058 = vmatprep.subr.bf16.mxu0 0
  %1059 = vmatpush1.bf16.msra.mxu0 0
  %1060 = vmatprep.subr.bf16.mxu0 0
  %1061 = vmatpush1.bf16.msra.mxu0 0
  %1062 = vmatprep.subr.bf16.mxu0 0
  %1063 = vmatpush1.bf16.msra.mxu0 0
  %1064 = vmatprep.mubr.bf16.mxu0 0
  %1065 = vmatmul.mubr.bf16.gmra.mrb[0].mxu0 %v1006
  %v1066 = vpop.f32.mrb[0].mxu0
  %v1067 = vadd.f32 %v84, %v1066
  %v1068 = vpop.f32.mrb[0].mxu0
  %v1069 = vpop.f32.mrb[0].mxu0
  %v1070 = vadd.f32 %v85, %v1069
  %v1071 = vpop.f32.mrb[0].mxu0
  %1072 = vmatprep.mubr.bf16.mxu0 0
  %1073 = vmatmul.mubr.bf16.gmra.mrb[0].mxu0 %v1009
  %v1074 = vpop.f32.mrb[0].mxu0
  %v1075 = vadd.f32 %v86, %v1074
  %v1076 = vpop.f32.mrb[0].mxu0
  %v1077 = vpop.f32.mrb[0].mxu0
  %v1078 = vadd.f32 %v87, %v1077
  %v1079 = vpop.f32.mrb[0].mxu0
  %1080 = vmatprep.mubr.bf16.mxu0 0
  %1081 = vmatmul.mubr.bf16.gmra.mrb[0].mxu0 %v1012
  %v1082 = vpop.f32.mrb[0].mxu0
  %v1083 = vadd.f32 %v88, %v1082
  %v1084 = vpop.f32.mrb[0].mxu0
  %v1085 = vpop.f32.mrb[0].mxu0
  %v1086 = vadd.f32 %v89, %v1085
  %v1087 = vpop.f32.mrb[0].mxu0
  %1088 = vmatprep.mubr.bf16.mxu0 0
  %1089 = vmatmul.mubr.bf16.gmra.mrb[0].mxu0 %v1015
  %v1090 = vpop.f32.mrb[0].mxu0
  %v1091 = vadd.f32 %v90, %v1090
  %v1092 = vpop.f32.mrb[0].mxu0
  %v1093 = vpop.f32.mrb[0].mxu0
  %v1094 = vadd.f32 %v91, %v1093
  %v1095 = vpop.f32.mrb[0].mxu0
  %1096 = vmatprep.mubr.bf16.mxu0 0
  %1097 = vmatmul.mubr.bf16.gmra.mrb[0].mxu0 %v1018
  %v1098 = vpop.f32.mrb[0].mxu0
  %v1099 = vadd.f32 %v92, %v1098
  %v1100 = vpop.f32.mrb[0].mxu0
  %v1101 = vpop.f32.mrb[0].mxu0
  %v1102 = vadd.f32 %v93, %v1101
  %v1103 = vpop.f32.mrb[0].mxu0
  %1104 = vmatprep.mubr.bf16.mxu0 0
  %1105 = vmatmul.mubr.bf16.gmra.mrb[0].mxu0 %v1021
  %v1106 = vpop.f32.mrb[0].mxu0
  %v1107 = vadd.f32 %v94, %v1106
  %v1108 = vpop.f32.mrb[0].mxu0
  %v1109 = vpop.f32.mrb[0].mxu0
  %v1110 = vadd.f32 %v95, %v1109
  %v1111 = vpop.f32.mrb[0].mxu0
  %1112 = vmatprep.mubr.bf16.mxu0 0
  %1113 = vmatmul.mubr.bf16.gmra.mrb[0].mxu0 %v1024
  %v1114 = vpop.f32.mrb[0].mxu0
  %v1115 = vadd.f32 %v96, %v1114
  %v1116 = vpop.f32.mrb[0].mxu0
  %v1117 = vpop.f32.mrb[0].mxu0
  %v1118 = vadd.f32 %v97, %v1117
  %v1119 = vpop.f32.mrb[0].mxu0
  %1120 = vmatprep.mubr.bf16.mxu0 0
  %1121 = vmatmul.mubr.bf16.gmra.mrb[0].mxu0 %v1027
  %v1122 = vpop.f32.mrb[0].mxu0
  %v1123 = vadd.f32 %v98, %v1122
  %v1124 = vpop.f32.mrb[0].mxu0
  %v1125 = vpop.f32.mrb[0].mxu0
  %v1126 = vadd.f32 %v99, %v1125
  %v1127 = vpop.f32.mrb[0].mxu0
  %1128 = vdwg.mxu0
  %1129 = vmax.xlane.f32.xlu0 %v647
  %v1130 = vpop.xlane.xlu0 %1129
  %1131 = vmax.xlane.f32.xlu0 %v650
  %v1132 = vpop.xlane.xlu0 %1131
  %1133 = vmax.xlane.f32.xlu0 %v655
  %v1134 = vpop.xlane.xlu0 %1133
  %1135 = vmax.xlane.f32.xlu0 %v658
  %v1136 = vpop.xlane.xlu0 %1135
  %1137 = vmax.xlane.f32.xlu0 %v663
  %v1138 = vpop.xlane.xlu0 %1137
  %1139 = vmax.xlane.f32.xlu0 %v666
  %v1140 = vpop.xlane.xlu0 %1139
  %1141 = vmax.xlane.f32.xlu0 %v671
  %v1142 = vpop.xlane.xlu0 %1141
  %1143 = vmax.xlane.f32.xlu0 %v674
  %v1144 = vpop.xlane.xlu0 %1143
  %1145 = vmax.xlane.f32.xlu0 %v679
  %v1146 = vpop.xlane.xlu0 %1145
  %1147 = vmax.xlane.f32.xlu0 %v682
  %v1148 = vpop.xlane.xlu0 %1147
  %1149 = vmax.xlane.f32.xlu0 %v687
  %v1150 = vpop.xlane.xlu0 %1149
  %1151 = vmax.xlane.f32.xlu0 %v690
  %v1152 = vpop.xlane.xlu0 %1151
  %1153 = vmax.xlane.f32.xlu0 %v695
  %v1154 = vpop.xlane.xlu0 %1153
  %1155 = vmax.xlane.f32.xlu0 %v698
  %v1156 = vpop.xlane.xlu0 %1155
  %1157 = vmax.xlane.f32.xlu0 %v703
  %v1158 = vpop.xlane.xlu0 %1157
  %1159 = vmax.xlane.f32.xlu0 %v706
  %v1160 = vpop.xlane.xlu0 %1159
  %1161 = vmax.xlane.f32.xlu0 %v787
  %v1162 = vpop.xlane.xlu0 %1161
  %1163 = vmax.xlane.f32.xlu0 %v790
  %v1164 = vpop.xlane.xlu0 %1163
  %1165 = vmax.xlane.f32.xlu0 %v795
  %v1166 = vpop.xlane.xlu0 %1165
  %1167 = vmax.xlane.f32.xlu0 %v798
  %v1168 = vpop.xlane.xlu0 %1167
  %1169 = vmax.xlane.f32.xlu0 %v803
  %v1170 = vpop.xlane.xlu0 %1169
  %1171 = vmax.xlane.f32.xlu0 %v806
  %v1172 = vpop.xlane.xlu0 %1171
  %1173 = vmax.xlane.f32.xlu0 %v811
  %v1174 = vpop.xlane.xlu0 %1173
  %1175 = vmax.xlane.f32.xlu0 %v814
  %v1176 = vpop.xlane.xlu0 %1175
  %1177 = vmax.xlane.f32.xlu0 %v819
  %v1178 = vpop.xlane.xlu0 %1177
  %1179 = vmax.xlane.f32.xlu0 %v822
  %v1180 = vpop.xlane.xlu0 %1179
  %1181 = vmax.xlane.f32.xlu0 %v827
  %v1182 = vpop.xlane.xlu0 %1181
  %1183 = vmax.xlane.f32.xlu0 %v830
  %v1184 = vpop.xlane.xlu0 %1183
  %1185 = vmax.xlane.f32.xlu0 %v835
  %v1186 = vpop.xlane.xlu0 %1185
  %1187 = vmax.xlane.f32.xlu0 %v838
  %v1188 = vpop.xlane.xlu0 %1187
  %1189 = vmax.xlane.f32.xlu0 %v843
  %v1190 = vpop.xlane.xlu0 %1189
  %1191 = vmax.xlane.f32.xlu0 %v846
  %v1192 = vpop.xlane.xlu0 %1191
  %1193 = vmax.xlane.f32.xlu0 %v927
  %v1194 = vpop.xlane.xlu0 %1193
  %1195 = vmax.xlane.f32.xlu0 %v930
  %v1196 = vpop.xlane.xlu0 %1195
  %1197 = vmax.xlane.f32.xlu0 %v935
  %v1198 = vpop.xlane.xlu0 %1197
  %1199 = vmax.xlane.f32.xlu0 %v938
  %v1200 = vpop.xlane.xlu0 %1199
  %1201 = vmax.xlane.f32.xlu0 %v943
  %v1202 = vpop.xlane.xlu0 %1201
  %1203 = vmax.xlane.f32.xlu0 %v946
  %v1204 = vpop.xlane.xlu0 %1203
  %1205 = vmax.xlane.f32.xlu0 %v951
  %v1206 = vpop.xlane.xlu0 %1205
  %1207 = vmax.xlane.f32.xlu0 %v954
  %v1208 = vpop.xlane.xlu0 %1207
  %1209 = vmax.xlane.f32.xlu0 %v959
  %v1210 = vpop.xlane.xlu0 %1209
  %1211 = vmax.xlane.f32.xlu0 %v962
  %v1212 = vpop.xlane.xlu0 %1211
  %1213 = vmax.xlane.f32.xlu0 %v967
  %v1214 = vpop.xlane.xlu0 %1213
  %1215 = vmax.xlane.f32.xlu0 %v970
  %v1216 = vpop.xlane.xlu0 %1215
  %1217 = vmax.xlane.f32.xlu0 %v975
  %v1218 = vpop.xlane.xlu0 %1217
  %1219 = vmax.xlane.f32.xlu0 %v978
  %v1220 = vpop.xlane.xlu0 %1219
  %1221 = vmax.xlane.f32.xlu0 %v983
  %v1222 = vpop.xlane.xlu0 %1221
  %1223 = vmax.xlane.f32.xlu0 %v986
  %v1224 = vpop.xlane.xlu0 %1223
  %1225 = vmax.xlane.f32.xlu0 %v1067
  %v1226 = vpop.xlane.xlu0 %1225
  %1227 = vmax.xlane.f32.xlu0 %v1070
  %v1228 = vpop.xlane.xlu0 %1227
  %1229 = vmax.xlane.f32.xlu0 %v1075
  %v1230 = vpop.xlane.xlu0 %1229
  %1231 = vmax.xlane.f32.xlu0 %v1078
  %v1232 = vpop.xlane.xlu0 %1231
  %1233 = vmax.xlane.f32.xlu0 %v1083
  %v1234 = vpop.xlane.xlu0 %1233
  %1235 = vmax.xlane.f32.xlu0 %v1086
  %v1236 = vpop.xlane.xlu0 %1235
  %1237 = vmax.xlane.f32.xlu0 %v1091
  %v1238 = vpop.xlane.xlu0 %1237
  %1239 = vmax.xlane.f32.xlu0 %v1094
  %v1240 = vpop.xlane.xlu0 %1239
  %1241 = vmax.xlane.f32.xlu0 %v1099
  %v1242 = vpop.xlane.xlu0 %1241
  %1243 = vmax.xlane.f32.xlu0 %v1102
  %v1244 = vpop.xlane.xlu0 %1243
  %1245 = vmax.xlane.f32.xlu0 %v1107
  %v1246 = vpop.xlane.xlu0 %1245
  %1247 = vmax.xlane.f32.xlu0 %v1110
  %v1248 = vpop.xlane.xlu0 %1247
  %1249 = vmax.xlane.f32.xlu0 %v1115
  %v1250 = vpop.xlane.xlu0 %1249
  %1251 = vmax.xlane.f32.xlu0 %v1118
  %v1252 = vpop.xlane.xlu0 %1251
  %1253 = vmax.xlane.f32.xlu0 %v1123
  %v1254 = vpop.xlane.xlu0 %1253
  %1255 = vmax.xlane.f32.xlu0 %v1126
  %v1256 = vpop.xlane.xlu0 %1255
  %v1257 = vsub.f32 %v647, %v1130
  %v1258 = vsub.f32 %v650, %v1132
  %v1259 = vsub.f32 %v655, %v1134
  %v1260 = vsub.f32 %v658, %v1136
  %v1261 = vsub.f32 %v663, %v1138
  %v1262 = vsub.f32 %v666, %v1140
  %v1263 = vsub.f32 %v671, %v1142
  %v1264 = vsub.f32 %v674, %v1144
  %v1265 = vsub.f32 %v679, %v1146
  %v1266 = vsub.f32 %v682, %v1148
  %v1267 = vsub.f32 %v687, %v1150
  %v1268 = vsub.f32 %v690, %v1152
  %v1269 = vsub.f32 %v695, %v1154
  %v1270 = vsub.f32 %v698, %v1156
  %v1271 = vsub.f32 %v703, %v1158
  %v1272 = vsub.f32 %v706, %v1160
  %v1273 = vsub.f32 %v787, %v1162
  %v1274 = vsub.f32 %v790, %v1164
  %v1275 = vsub.f32 %v795, %v1166
  %v1276 = vsub.f32 %v798, %v1168
  %v1277 = vsub.f32 %v803, %v1170
  %v1278 = vsub.f32 %v806, %v1172
  %v1279 = vsub.f32 %v811, %v1174
  %v1280 = vsub.f32 %v814, %v1176
  %v1281 = vsub.f32 %v819, %v1178
  %v1282 = vsub.f32 %v822, %v1180
  %v1283 = vsub.f32 %v827, %v1182
  %v1284 = vsub.f32 %v830, %v1184
  %v1285 = vsub.f32 %v835, %v1186
  %v1286 = vsub.f32 %v838, %v1188
  %v1287 = vsub.f32 %v843, %v1190
  %v1288 = vsub.f32 %v846, %v1192
  %v1289 = vsub.f32 %v927, %v1194
  %v1290 = vsub.f32 %v930, %v1196
  %v1291 = vsub.f32 %v935, %v1198
  %v1292 = vsub.f32 %v938, %v1200
  %v1293 = vsub.f32 %v943, %v1202
  %v1294 = vsub.f32 %v946, %v1204
  %v1295 = vsub.f32 %v951, %v1206
  %v1296 = vsub.f32 %v954, %v1208
  %v1297 = vsub.f32 %v959, %v1210
  %v1298 = vsub.f32 %v962, %v1212
  %v1299 = vsub.f32 %v967, %v1214
  %v1300 = vsub.f32 %v970, %v1216
  %v1301 = vsub.f32 %v975, %v1218
  %v1302 = vsub.f32 %v978, %v1220
  %v1303 = vsub.f32 %v983, %v1222
  %v1304 = vsub.f32 %v986, %v1224
  %v1305 = vsub.f32 %v1067, %v1226
  %v1306 = vsub.f32 %v1070, %v1228
  %v1307 = vsub.f32 %v1075, %v1230
  %v1308 = vsub.f32 %v1078, %v1232
  %v1309 = vsub.f32 %v1083, %v1234
  %v1310 = vsub.f32 %v1086, %v1236
  %v1311 = vsub.f32 %v1091, %v1238
  %v1312 = vsub.f32 %v1094, %v1240
  %v1313 = vsub.f32 %v1099, %v1242
  %v1314 = vsub.f32 %v1102, %v1244
  %v1315 = vsub.f32 %v1107, %v1246
  %v1316 = vsub.f32 %v1110, %v1248
  %v1317 = vsub.f32 %v1115, %v1250
  %v1318 = vsub.f32 %v1118, %v1252
  %v1319 = vsub.f32 %v1123, %v1254
  %v1320 = vsub.f32 %v1126, %v1256
  %v1321 = vmul.f32 %v1257, 1.442695
  %v1322 = vpow.pop %v1321
  %v1323 = vmul.f32 %v1258, 1.442695
  %v1324 = vpow.pop %v1323
  %v1325 = vmul.f32 %v1259, 1.442695
  %v1326 = vpow.pop %v1325
  %v1327 = vmul.f32 %v1260, 1.442695
  %v1328 = vpow.pop %v1327
  %v1329 = vmul.f32 %v1261, 1.442695
  %v1330 = vpow.pop %v1329
  %v1331 = vmul.f32 %v1262, 1.442695
  %v1332 = vpow.pop %v1331
  %v1333 = vmul.f32 %v1263, 1.442695
  %v1334 = vpow.pop %v1333
  %v1335 = vmul.f32 %v1264, 1.442695
  %v1336 = vpow.pop %v1335
  %v1337 = vmul.f32 %v1265, 1.442695
  %v1338 = vpow.pop %v1337
  %v1339 = vmul.f32 %v1266, 1.442695
  %v1340 = vpow.pop %v1339
  %v1341 = vmul.f32 %v1267, 1.442695
  %v1342 = vpow.pop %v1341
  %v1343 = vmul.f32 %v1268, 1.442695
  %v1344 = vpow.pop %v1343
  %v1345 = vmul.f32 %v1269, 1.442695
  %v1346 = vpow.pop %v1345
  %v1347 = vmul.f32 %v1270, 1.442695
  %v1348 = vpow.pop %v1347
  %v1349 = vmul.f32 %v1271, 1.442695
  %v1350 = vpow.pop %v1349
  %v1351 = vmul.f32 %v1272, 1.442695
  %v1352 = vpow.pop %v1351
  %v1353 = vmul.f32 %v1273, 1.442695
  %v1354 = vpow.pop %v1353
  %v1355 = vmul.f32 %v1274, 1.442695
  %v1356 = vpow.pop %v1355
  %v1357 = vmul.f32 %v1275, 1.442695
  %v1358 = vpow.pop %v1357
  %v1359 = vmul.f32 %v1276, 1.442695
  %v1360 = vpow.pop %v1359
  %v1361 = vmul.f32 %v1277, 1.442695
  %v1362 = vpow.pop %v1361
  %v1363 = vmul.f32 %v1278, 1.442695
  %v1364 = vpow.pop %v1363
  %v1365 = vmul.f32 %v1279, 1.442695
  %v1366 = vpow.pop %v1365
  %v1367 = vmul.f32 %v1280, 1.442695
  %v1368 = vpow.pop %v1367
  %v1369 = vmul.f32 %v1281, 1.442695
  %v1370 = vpow.pop %v1369
  %v1371 = vmul.f32 %v1282, 1.442695
  %v1372 = vpow.pop %v1371
  %v1373 = vmul.f32 %v1283, 1.442695
  %v1374 = vpow.pop %v1373
  %v1375 = vmul.f32 %v1284, 1.442695
  %v1376 = vpow.pop %v1375
  %v1377 = vmul.f32 %v1285, 1.442695
  %v1378 = vpow.pop %v1377
  %v1379 = vmul.f32 %v1286, 1.442695
  %v1380 = vpow.pop %v1379
  %v1381 = vmul.f32 %v1287, 1.442695
  %v1382 = vpow.pop %v1381
  %v1383 = vmul.f32 %v1288, 1.442695
  %v1384 = vpow.pop %v1383
  %v1385 = vmul.f32 %v1289, 1.442695
  %v1386 = vpow.pop %v1385
  %v1387 = vmul.f32 %v1290, 1.442695
  %v1388 = vpow.pop %v1387
  %v1389 = vmul.f32 %v1291, 1.442695
  %v1390 = vpow.pop %v1389
  %v1391 = vmul.f32 %v1292, 1.442695
  %v1392 = vpow.pop %v1391
  %v1393 = vmul.f32 %v1293, 1.442695
  %v1394 = vpow.pop %v1393
  %v1395 = vmul.f32 %v1294, 1.442695
  %v1396 = vpow.pop %v1395
  %v1397 = vmul.f32 %v1295, 1.442695
  %v1398 = vpow.pop %v1397
  %v1399 = vmul.f32 %v1296, 1.442695
  %v1400 = vpow.pop %v1399
  %v1401 = vmul.f32 %v1297, 1.442695
  %v1402 = vpow.pop %v1401
  %v1403 = vmul.f32 %v1298, 1.442695
  %v1404 = vpow.pop %v1403
  %v1405 = vmul.f32 %v1299, 1.442695
  %v1406 = vpow.pop %v1405
  %v1407 = vmul.f32 %v1300, 1.442695
  %v1408 = vpow.pop %v1407
  %v1409 = vmul.f32 %v1301, 1.442695
  %v1410 = vpow.pop %v1409
  %v1411 = vmul.f32 %v1302, 1.442695
  %v1412 = vpow.pop %v1411
  %v1413 = vmul.f32 %v1303, 1.442695
  %v1414 = vpow.pop %v1413
  %v1415 = vmul.f32 %v1304, 1.442695
  %v1416 = vpow.pop %v1415
  %v1417 = vmul.f32 %v1305, 1.442695
  %v1418 = vpow.pop %v1417
  %v1419 = vmul.f32 %v1306, 1.442695
  %v1420 = vpow.pop %v1419
  %v1421 = vmul.f32 %v1307, 1.442695
  %v1422 = vpow.pop %v1421
  %v1423 = vmul.f32 %v1308, 1.442695
  %v1424 = vpow.pop %v1423
  %v1425 = vmul.f32 %v1309, 1.442695
  %v1426 = vpow.pop %v1425
  %v1427 = vmul.f32 %v1310, 1.442695
  %v1428 = vpow.pop %v1427
  %v1429 = vmul.f32 %v1311, 1.442695
  %v1430 = vpow.pop %v1429
  %v1431 = vmul.f32 %v1312, 1.442695
  %v1432 = vpow.pop %v1431
  %v1433 = vmul.f32 %v1313, 1.442695
  %v1434 = vpow.pop %v1433
  %v1435 = vmul.f32 %v1314, 1.442695
  %v1436 = vpow.pop %v1435
  %v1437 = vmul.f32 %v1315, 1.442695
  %v1438 = vpow.pop %v1437
  %v1439 = vmul.f32 %v1316, 1.442695
  %v1440 = vpow.pop %v1439
  %v1441 = vmul.f32 %v1317, 1.442695
  %v1442 = vpow.pop %v1441
  %v1443 = vmul.f32 %v1318, 1.442695
  %v1444 = vpow.pop %v1443
  %v1445 = vmul.f32 %v1319, 1.442695
  %v1446 = vpow.pop %v1445
  %v1447 = vmul.f32 %v1320, 1.442695
  %v1448 = vpow.pop %v1447
  %1449 = vadd.xlane.f32.xlu0 %v1322
  %v1450 = vpop.xlane.xlu0 %1449
  %1451 = vadd.xlane.f32.xlu0 %v1324
  %v1452 = vpop.xlane.xlu0 %1451
  %1453 = vadd.xlane.f32.xlu0 %v1326
  %v1454 = vpop.xlane.xlu0 %1453
  %1455 = vadd.xlane.f32.xlu0 %v1328
  %v1456 = vpop.xlane.xlu0 %1455
  %1457 = vadd.xlane.f32.xlu0 %v1330
  %v1458 = vpop.xlane.xlu0 %1457
  %1459 = vadd.xlane.f32.xlu0 %v1332
  %v1460 = vpop.xlane.xlu0 %1459
  %1461 = vadd.xlane.f32.xlu0 %v1334
  %v1462 = vpop.xlane.xlu0 %1461
  %1463 = vadd.xlane.f32.xlu0 %v1336
  %v1464 = vpop.xlane.xlu0 %1463
  %1465 = vadd.xlane.f32.xlu0 %v1338
  %v1466 = vpop.xlane.xlu0 %1465
  %1467 = vadd.xlane.f32.xlu0 %v1340
  %v1468 = vpop.xlane.xlu0 %1467
  %1469 = vadd.xlane.f32.xlu0 %v1342
  %v1470 = vpop.xlane.xlu0 %1469
  %1471 = vadd.xlane.f32.xlu0 %v1344
  %v1472 = vpop.xlane.xlu0 %1471
  %1473 = vadd.xlane.f32.xlu0 %v1346
  %v1474 = vpop.xlane.xlu0 %1473
  %1475 = vadd.xlane.f32.xlu0 %v1348
  %v1476 = vpop.xlane.xlu0 %1475
  %1477 = vadd.xlane.f32.xlu0 %v1350
  %v1478 = vpop.xlane.xlu0 %1477
  %1479 = vadd.xlane.f32.xlu0 %v1352
  %v1480 = vpop.xlane.xlu0 %1479
  %1481 = vadd.xlane.f32.xlu0 %v1354
  %v1482 = vpop.xlane.xlu0 %1481
  %1483 = vadd.xlane.f32.xlu0 %v1356
  %v1484 = vpop.xlane.xlu0 %1483
  %1485 = vadd.xlane.f32.xlu0 %v1358
  %v1486 = vpop.xlane.xlu0 %1485
  %1487 = vadd.xlane.f32.xlu0 %v1360
  %v1488 = vpop.xlane.xlu0 %1487
  %1489 = vadd.xlane.f32.xlu0 %v1362
  %v1490 = vpop.xlane.xlu0 %1489
  %1491 = vadd.xlane.f32.xlu0 %v1364
  %v1492 = vpop.xlane.xlu0 %1491
  %1493 = vadd.xlane.f32.xlu0 %v1366
  %v1494 = vpop.xlane.xlu0 %1493
  %1495 = vadd.xlane.f32.xlu0 %v1368
  %v1496 = vpop.xlane.xlu0 %1495
  %1497 = vadd.xlane.f32.xlu0 %v1370
  %v1498 = vpop.xlane.xlu0 %1497
  %1499 = vadd.xlane.f32.xlu0 %v1372
  %v1500 = vpop.xlane.xlu0 %1499
  %1501 = vadd.xlane.f32.xlu0 %v1374
  %v1502 = vpop.xlane.xlu0 %1501
  %1503 = vadd.xlane.f32.xlu0 %v1376
  %v1504 = vpop.xlane.xlu0 %1503
  %1505 = vadd.xlane.f32.xlu0 %v1378
  %v1506 = vpop.xlane.xlu0 %1505
  %1507 = vadd.xlane.f32.xlu0 %v1380
  %v1508 = vpop.xlane.xlu0 %1507
  %1509 = vadd.xlane.f32.xlu0 %v1382
  %v1510 = vpop.xlane.xlu0 %1509
  %1511 = vadd.xlane.f32.xlu0 %v1384
  %v1512 = vpop.xlane.xlu0 %1511
  %1513 = vadd.xlane.f32.xlu0 %v1386
  %v1514 = vpop.xlane.xlu0 %1513
  %1515 = vadd.xlane.f32.xlu0 %v1388
  %v1516 = vpop.xlane.xlu0 %1515
  %1517 = vadd.xlane.f32.xlu0 %v1390
  %v1518 = vpop.xlane.xlu0 %1517
  %1519 = vadd.xlane.f32.xlu0 %v1392
  %v1520 = vpop.xlane.xlu0 %1519
  %1521 = vadd.xlane.f32.xlu0 %v1394
  %v1522 = vpop.xlane.xlu0 %1521
  %1523 = vadd.xlane.f32.xlu0 %v1396
  %v1524 = vpop.xlane.xlu0 %1523
  %1525 = vadd.xlane.f32.xlu0 %v1398
  %v1526 = vpop.xlane.xlu0 %1525
  %1527 = vadd.xlane.f32.xlu0 %v1400
  %v1528 = vpop.xlane.xlu0 %1527
  %1529 = vadd.xlane.f32.xlu0 %v1402
  %v1530 = vpop.xlane.xlu0 %1529
  %1531 = vadd.xlane.f32.xlu0 %v1404
  %v1532 = vpop.xlane.xlu0 %1531
  %1533 = vadd.xlane.f32.xlu0 %v1406
  %v1534 = vpop.xlane.xlu0 %1533
  %1535 = vadd.xlane.f32.xlu0 %v1408
  %v1536 = vpop.xlane.xlu0 %1535
  %1537 = vadd.xlane.f32.xlu0 %v1410
  %v1538 = vpop.xlane.xlu0 %1537
  %1539 = vadd.xlane.f32.xlu0 %v1412
  %v1540 = vpop.xlane.xlu0 %1539
  %1541 = vadd.xlane.f32.xlu0 %v1414
  %v1542 = vpop.xlane.xlu0 %1541
  %1543 = vadd.xlane.f32.xlu0 %v1416
  %v1544 = vpop.xlane.xlu0 %1543
  %1545 = vadd.xlane.f32.xlu0 %v1418
  %v1546 = vpop.xlane.xlu0 %1545
  %1547 = vadd.xlane.f32.xlu0 %v1420
  %v1548 = vpop.xlane.xlu0 %1547
  %1549 = vadd.xlane.f32.xlu0 %v1422
  %v1550 = vpop.xlane.xlu0 %1549
  %1551 = vadd.xlane.f32.xlu0 %v1424
  %v1552 = vpop.xlane.xlu0 %1551
  %1553 = vadd.xlane.f32.xlu0 %v1426
  %v1554 = vpop.xlane.xlu0 %1553
  %1555 = vadd.xlane.f32.xlu0 %v1428
  %v1556 = vpop.xlane.xlu0 %1555
  %1557 = vadd.xlane.f32.xlu0 %v1430
  %v1558 = vpop.xlane.xlu0 %1557
  %1559 = vadd.xlane.f32.xlu0 %v1432
  %v1560 = vpop.xlane.xlu0 %1559
  %1561 = vadd.xlane.f32.xlu0 %v1434
  %v1562 = vpop.xlane.xlu0 %1561
  %1563 = vadd.xlane.f32.xlu0 %v1436
  %v1564 = vpop.xlane.xlu0 %1563
  %1565 = vadd.xlane.f32.xlu0 %v1438
  %v1566 = vpop.xlane.xlu0 %1565
  %1567 = vadd.xlane.f32.xlu0 %v1440
  %v1568 = vpop.xlane.xlu0 %1567
  %1569 = vadd.xlane.f32.xlu0 %v1442
  %v1570 = vpop.xlane.xlu0 %1569
  %1571 = vadd.xlane.f32.xlu0 %v1444
  %v1572 = vpop.xlane.xlu0 %1571
  %1573 = vadd.xlane.f32.xlu0 %v1446
  %v1574 = vpop.xlane.xlu0 %1573
  %1575 = vadd.xlane.f32.xlu0 %v1448
  %v1576 = vpop.xlane.xlu0 %1575
  %v1577 = vrcp.pop %v1450
  %v1578 = vmul.f32 %v1322, %v1577
  %v1579 = vrcp.pop %v1452
  %v1580 = vmul.f32 %v1324, %v1579
  %v1581 = vrcp.pop %v1454
  %v1582 = vmul.f32 %v1326, %v1581
  %v1583 = vrcp.pop %v1456
  %v1584 = vmul.f32 %v1328, %v1583
  %v1585 = vrcp.pop %v1458
  %v1586 = vmul.f32 %v1330, %v1585
  %v1587 = vrcp.pop %v1460
  %v1588 = vmul.f32 %v1332, %v1587
  %v1589 = vrcp.pop %v1462
  %v1590 = vmul.f32 %v1334, %v1589
  %v1591 = vrcp.pop %v1464
  %v1592 = vmul.f32 %v1336, %v1591
  %v1593 = vrcp.pop %v1466
  %v1594 = vmul.f32 %v1338, %v1593
  %v1595 = vrcp.pop %v1468
  %v1596 = vmul.f32 %v1340, %v1595
  %v1597 = vrcp.pop %v1470
  %v1598 = vmul.f32 %v1342, %v1597
  %v1599 = vrcp.pop %v1472
  %v1600 = vmul.f32 %v1344, %v1599
  %v1601 = vrcp.pop %v1474
  %v1602 = vmul.f32 %v1346, %v1601
  %v1603 = vrcp.pop %v1476
  %v1604 = vmul.f32 %v1348, %v1603
  %v1605 = vrcp.pop %v1478
  %v1606 = vmul.f32 %v1350, %v1605
  %v1607 = vrcp.pop %v1480
  %v1608 = vmul.f32 %v1352, %v1607
  %v1609 = vrcp.pop %v1482
  %v1610 = vmul.f32 %v1354, %v1609
  %v1611 = vrcp.pop %v1484
  %v1612 = vmul.f32 %v1356, %v1611
  %v1613 = vrcp.pop %v1486
  %v1614 = vmul.f32 %v1358, %v1613
  %v1615 = vrcp.pop %v1488
  %v1616 = vmul.f32 %v1360, %v1615
  %v1617 = vrcp.pop %v1490
  %v1618 = vmul.f32 %v1362, %v1617
  %v1619 = vrcp.pop %v1492
  %v1620 = vmul.f32 %v1364, %v1619
  %v1621 = vrcp.pop %v1494
  %v1622 = vmul.f32 %v1366, %v1621
  %v1623 = vrcp.pop %v1496
  %v1624 = vmul.f32 %v1368, %v1623
  %v1625 = vrcp.pop %v1498
  %v1626 = vmul.f32 %v1370, %v1625
  %v1627 = vrcp.pop %v1500
  %v1628 = vmul.f32 %v1372, %v1627
  %v1629 = vrcp.pop %v1502
  %v1630 = vmul.f32 %v1374, %v1629
  %v1631 = vrcp.pop %v1504
  %v1632 = vmul.f32 %v1376, %v1631
  %v1633 = vrcp.pop %v1506
  %v1634 = vmul.f32 %v1378, %v1633
  %v1635 = vrcp.pop %v1508
  %v1636 = vmul.f32 %v1380, %v1635
  %v1637 = vrcp.pop %v1510
  %v1638 = vmul.f32 %v1382, %v1637
  %v1639 = vrcp.pop %v1512
  %v1640 = vmul.f32 %v1384, %v1639
  %v1641 = vrcp.pop %v1514
  %v1642 = vmul.f32 %v1386, %v1641
  %v1643 = vrcp.pop %v1516
  %v1644 = vmul.f32 %v1388, %v1643
  %v1645 = vrcp.pop %v1518
  %v1646 = vmul.f32 %v1390, %v1645
  %v1647 = vrcp.pop %v1520
  %v1648 = vmul.f32 %v1392, %v1647
  %v1649 = vrcp.pop %v1522
  %v1650 = vmul.f32 %v1394, %v1649
  %v1651 = vrcp.pop %v1524
  %v1652 = vmul.f32 %v1396, %v1651
  %v1653 = vrcp.pop %v1526
  %v1654 = vmul.f32 %v1398, %v1653
  %v1655 = vrcp.pop %v1528
  %v1656 = vmul.f32 %v1400, %v1655
  %v1657 = vrcp.pop %v1530
  %v1658 = vmul.f32 %v1402, %v1657
  %v1659 = vrcp.pop %v1532
  %v1660 = vmul.f32 %v1404, %v1659
  %v1661 = vrcp.pop %v1534
  %v1662 = vmul.f32 %v1406, %v1661
  %v1663 = vrcp.pop %v1536
  %v1664 = vmul.f32 %v1408, %v1663
  %v1665 = vrcp.pop %v1538
  %v1666 = vmul.f32 %v1410, %v1665
  %v1667 = vrcp.pop %v1540
  %v1668 = vmul.f32 %v1412, %v1667
  %v1669 = vrcp.pop %v1542
  %v1670 = vmul.f32 %v1414, %v1669
  %v1671 = vrcp.pop %v1544
  %v1672 = vmul.f32 %v1416, %v1671
  %v1673 = vrcp.pop %v1546
  %v1674 = vmul.f32 %v1418, %v1673
  %v1675 = vrcp.pop %v1548
  %v1676 = vmul.f32 %v1420, %v1675
  %v1677 = vrcp.pop %v1550
  %v1678 = vmul.f32 %v1422, %v1677
  %v1679 = vrcp.pop %v1552
  %v1680 = vmul.f32 %v1424, %v1679
  %v1681 = vrcp.pop %v1554
  %v1682 = vmul.f32 %v1426, %v1681
  %v1683 = vrcp.pop %v1556
  %v1684 = vmul.f32 %v1428, %v1683
  %v1685 = vrcp.pop %v1558
  %v1686 = vmul.f32 %v1430, %v1685
  %v1687 = vrcp.pop %v1560
  %v1688 = vmul.f32 %v1432, %v1687
  %v1689 = vrcp.pop %v1562
  %v1690 = vmul.f32 %v1434, %v1689
  %v1691 = vrcp.pop %v1564
  %v1692 = vmul.f32 %v1436, %v1691
  %v1693 = vrcp.pop %v1566
  %v1694 = vmul.f32 %v1438, %v1693
  %v1695 = vrcp.pop %v1568
  %v1696 = vmul.f32 %v1440, %v1695
  %v1697 = vrcp.pop %v1570
  %v1698 = vmul.f32 %v1442, %v1697
  %v1699 = vrcp.pop %v1572
  %v1700 = vmul.f32 %v1444, %v1699
  %v1701 = vrcp.pop %v1574
  %v1702 = vmul.f32 %v1446, %v1701
  %v1703 = vrcp.pop %v1576
  %v1704 = vmul.f32 %v1448, %v1703
  %v1705 = vpack.c.bf16 %v1580, %v1578
  %v1706 = vpack.c.bf16 %v1584, %v1582
  %v1707 = vpack.c.bf16 %v1588, %v1586
  %v1708 = vpack.c.bf16 %v1592, %v1590
  %v1709 = vpack.c.bf16 %v1596, %v1594
  %v1710 = vpack.c.bf16 %v1600, %v1598
  %v1711 = vpack.c.bf16 %v1604, %v1602
  %v1712 = vpack.c.bf16 %v1608, %v1606
  %v1713 = vpack.c.bf16 %v1612, %v1610
  %v1714 = vpack.c.bf16 %v1616, %v1614
  %v1715 = vpack.c.bf16 %v1620, %v1618
  %v1716 = vpack.c.bf16 %v1624, %v1622
  %v1717 = vpack.c.bf16 %v1628, %v1626
  %v1718 = vpack.c.bf16 %v1632, %v1630
  %v1719 = vpack.c.bf16 %v1636, %v1634
  %v1720 = vpack.c.bf16 %v1640, %v1638
  %v1721 = vpack.c.bf16 %v1644, %v1642
  %v1722 = vpack.c.bf16 %v1648, %v1646
  %v1723 = vpack.c.bf16 %v1652, %v1650
  %v1724 = vpack.c.bf16 %v1656, %v1654
  %v1725 = vpack.c.bf16 %v1660, %v1658
  %v1726 = vpack.c.bf16 %v1664, %v1662
  %v1727 = vpack.c.bf16 %v1668, %v1666
  %v1728 = vpack.c.bf16 %v1672, %v1670
  %v1729 = vpack.c.bf16 %v1676, %v1674
  %v1730 = vpack.c.bf16 %v1680, %v1678
  %v1731 = vpack.c.bf16 %v1684, %v1682
  %v1732 = vpack.c.bf16 %v1688, %v1686
  %v1733 = vpack.c.bf16 %v1692, %v1690
  %v1734 = vpack.c.bf16 %v1696, %v1694
  %v1735 = vpack.c.bf16 %v1700, %v1698
  %v1736 = vpack.c.bf16 %v1704, %v1702
  %1737 = vmatprep.subr.bf16.mxu0 0
  %1738 = vmatpush1.bf16.xpose.msra.mxu0 %v1705
  %1739 = vmatprep.subr.bf16.mxu0 0
  %1740 = vmatpush1.bf16.xpose.msra.mxu0 %v1706
  %1741 = vmatprep.subr.bf16.mxu0 0
  %1742 = vmatpush1.bf16.xpose.msra.mxu0 %v1707
  %1743 = vmatprep.subr.bf16.mxu0 0
  %1744 = vmatpush1.bf16.xpose.msra.mxu0 %v1708
  %1745 = vmatprep.subr.bf16.mxu0 0
  %1746 = vmatpush1.bf16.xpose.msra.mxu0 %v1709
  %1747 = vmatprep.subr.bf16.mxu0 0
  %1748 = vmatpush1.bf16.xpose.msra.mxu0 %v1710
  %1749 = vmatprep.subr.bf16.mxu0 0
  %1750 = vmatpush1.bf16.xpose.msra.mxu0 %v1711
  %1751 = vmatprep.subr.bf16.mxu0 0
  %1752 = vmatpush1.bf16.xpose.msra.mxu0 %v1712
  %1753 = vmatprep.subr.bf16.mxu0 0
  %1754 = vmatpush1.bf16.xpose.msra.mxu0 0
  %1755 = vmatprep.subr.bf16.mxu0 0
  %1756 = vmatpush1.bf16.xpose.msra.mxu0 0
  %1757 = vmatprep.subr.bf16.mxu0 0
  %1758 = vmatpush1.bf16.xpose.msra.mxu0 0
  %1759 = vmatprep.subr.bf16.mxu0 0
  %1760 = vmatpush1.bf16.xpose.msra.mxu0 0
  %1761 = vmatprep.subr.bf16.mxu0 0
  %1762 = vmatpush1.bf16.xpose.msra.mxu0 0
  %1763 = vmatprep.subr.bf16.mxu0 0
  %1764 = vmatpush1.bf16.xpose.msra.mxu0 0
  %1765 = vmatprep.subr.bf16.mxu0 0
  %1766 = vmatpush1.bf16.xpose.msra.mxu0 0
  %1767 = vmatprep.subr.bf16.mxu0 0
  %1768 = vmatpush1.bf16.xpose.msra.mxu0 0
  %1769 = vmatprep.mubr.bf16.mxu0 0
  %1770 = vmatmul.mubr.bf16.gmra.mrb[0].mxu0 %v563
  %v1771 = vpop.f32.mrb[0].mxu0
  %v1772 = vadd.f32 0.0, %v1771
  %v1773 = vpop.f32.mrb[0].mxu0
  %v1774 = vpop.f32.mrb[0].mxu0
  %v1775 = vpop.f32.mrb[0].mxu0
  %1776 = vdwg.mxu0
  %1777 = vmatprep.subr.bf16.mxu0 0
  %1778 = vmatpush1.bf16.xpose.msra.mxu0 %v1713
  %1779 = vmatprep.subr.bf16.mxu0 0
  %1780 = vmatpush1.bf16.xpose.msra.mxu0 %v1714
  %1781 = vmatprep.subr.bf16.mxu0 0
  %1782 = vmatpush1.bf16.xpose.msra.mxu0 %v1715
  %1783 = vmatprep.subr.bf16.mxu0 0
  %1784 = vmatpush1.bf16.xpose.msra.mxu0 %v1716
  %1785 = vmatprep.subr.bf16.mxu0 0
  %1786 = vmatpush1.bf16.xpose.msra.mxu0 %v1717
  %1787 = vmatprep.subr.bf16.mxu0 0
  %1788 = vmatpush1.bf16.xpose.msra.mxu0 %v1718
  %1789 = vmatprep.subr.bf16.mxu0 0
  %1790 = vmatpush1.bf16.xpose.msra.mxu0 %v1719
  %1791 = vmatprep.subr.bf16.mxu0 0
  %1792 = vmatpush1.bf16.xpose.msra.mxu0 %v1720
  %1793 = vmatprep.subr.bf16.mxu0 0
  %1794 = vmatpush1.bf16.xpose.msra.mxu0 0
  %1795 = vmatprep.subr.bf16.mxu0 0
  %1796 = vmatpush1.bf16.xpose.msra.mxu0 0
  %1797 = vmatprep.subr.bf16.mxu0 0
  %1798 = vmatpush1.bf16.xpose.msra.mxu0 0
  %1799 = vmatprep.subr.bf16.mxu0 0
  %1800 = vmatpush1.bf16.xpose.msra.mxu0 0
  %1801 = vmatprep.subr.bf16.mxu0 0
  %1802 = vmatpush1.bf16.xpose.msra.mxu0 0
  %1803 = vmatprep.subr.bf16.mxu0 0
  %1804 = vmatpush1.bf16.xpose.msra.mxu0 0
  %1805 = vmatprep.subr.bf16.mxu0 0
  %1806 = vmatpush1.bf16.xpose.msra.mxu0 0
  %1807 = vmatprep.subr.bf16.mxu0 0
  %1808 = vmatpush1.bf16.xpose.msra.mxu0 0
  %1809 = vmatprep.mubr.bf16.mxu0 0
  %1810 = vmatmul.mubr.bf16.gmra.mrb[0].mxu0 %v564
  %v1811 = vpop.f32.mrb[0].mxu0
  %v1812 = vadd.f32 0.0, %v1811
  %v1813 = vpop.f32.mrb[0].mxu0
  %v1814 = vpop.f32.mrb[0].mxu0
  %v1815 = vpop.f32.mrb[0].mxu0
  %1816 = vdwg.mxu0
  %1817 = vmatprep.subr.bf16.mxu0 0
  %1818 = vmatpush1.bf16.xpose.msra.mxu0 %v1721
  %1819 = vmatprep.subr.bf16.mxu0 0
  %1820 = vmatpush1.bf16.xpose.msra.mxu0 %v1722
  %1821 = vmatprep.subr.bf16.mxu0 0
  %1822 = vmatpush1.bf16.xpose.msra.mxu0 %v1723
  %1823 = vmatprep.subr.bf16.mxu0 0
  %1824 = vmatpush1.bf16.xpose.msra.mxu0 %v1724
  %1825 = vmatprep.subr.bf16.mxu0 0
  %1826 = vmatpush1.bf16.xpose.msra.mxu0 %v1725
  %1827 = vmatprep.subr.bf16.mxu0 0
  %1828 = vmatpush1.bf16.xpose.msra.mxu0 %v1726
  %1829 = vmatprep.subr.bf16.mxu0 0
  %1830 = vmatpush1.bf16.xpose.msra.mxu0 %v1727
  %1831 = vmatprep.subr.bf16.mxu0 0
  %1832 = vmatpush1.bf16.xpose.msra.mxu0 %v1728
  %1833 = vmatprep.subr.bf16.mxu0 0
  %1834 = vmatpush1.bf16.xpose.msra.mxu0 0
  %1835 = vmatprep.subr.bf16.mxu0 0
  %1836 = vmatpush1.bf16.xpose.msra.mxu0 0
  %1837 = vmatprep.subr.bf16.mxu0 0
  %1838 = vmatpush1.bf16.xpose.msra.mxu0 0
  %1839 = vmatprep.subr.bf16.mxu0 0
  %1840 = vmatpush1.bf16.xpose.msra.mxu0 0
  %1841 = vmatprep.subr.bf16.mxu0 0
  %1842 = vmatpush1.bf16.xpose.msra.mxu0 0
  %1843 = vmatprep.subr.bf16.mxu0 0
  %1844 = vmatpush1.bf16.xpose.msra.mxu0 0
  %1845 = vmatprep.subr.bf16.mxu0 0
  %1846 = vmatpush1.bf16.xpose.msra.mxu0 0
  %1847 = vmatprep.subr.bf16.mxu0 0
  %1848 = vmatpush1.bf16.xpose.msra.mxu0 0
  %1849 = vmatprep.mubr.bf16.mxu0 0
  %1850 = vmatmul.mubr.bf16.gmra.mrb[0].mxu0 %v565
  %v1851 = vpop.f32.mrb[0].mxu0
  %v1852 = vadd.f32 0.0, %v1851
  %v1853 = vpop.f32.mrb[0].mxu0
  %v1854 = vpop.f32.mrb[0].mxu0
  %v1855 = vpop.f32.mrb[0].mxu0
  %1856 = vdwg.mxu0
  %1857 = vmatprep.subr.bf16.mxu0 0
  %1858 = vmatpush1.bf16.xpose.msra.mxu0 %v1729
  %1859 = vmatprep.subr.bf16.mxu0 0
  %1860 = vmatpush1.bf16.xpose.msra.mxu0 %v1730
  %1861 = vmatprep.subr.bf16.mxu0 0
  %1862 = vmatpush1.bf16.xpose.msra.mxu0 %v1731
  %1863 = vmatprep.subr.bf16.mxu0 0
  %1864 = vmatpush1.bf16.xpose.msra.mxu0 %v1732
  %1865 = vmatprep.subr.bf16.mxu0 0
  %1866 = vmatpush1.bf16.xpose.msra.mxu0 %v1733
  %1867 = vmatprep.subr.bf16.mxu0 0
  %1868 = vmatpush1.bf16.xpose.msra.mxu0 %v1734
  %1869 = vmatprep.subr.bf16.mxu0 0
  %1870 = vmatpush1.bf16.xpose.msra.mxu0 %v1735
  %1871 = vmatprep.subr.bf16.mxu0 0
  %1872 = vmatpush1.bf16.xpose.msra.mxu0 %v1736
  %1873 = vmatprep.subr.bf16.mxu0 0
  %1874 = vmatpush1.bf16.xpose.msra.mxu0 0
  %1875 = vmatprep.subr.bf16.mxu0 0
  %1876 = vmatpush1.bf16.xpose.msra.mxu0 0
  %1877 = vmatprep.subr.bf16.mxu0 0
  %1878 = vmatpush1.bf16.xpose.msra.mxu0 0
  %1879 = vmatprep.subr.bf16.mxu0 0
  %1880 = vmatpush1.bf16.xpose.msra.mxu0 0
  %1881 = vmatprep.subr.bf16.mxu0 0
  %1882 = vmatpush1.bf16.xpose.msra.mxu0 0
  %1883 = vmatprep.subr.bf16.mxu0 0
  %1884 = vmatpush1.bf16.xpose.msra.mxu0 0
  %1885 = vmatprep.subr.bf16.mxu0 0
  %1886 = vmatpush1.bf16.xpose.msra.mxu0 0
  %1887 = vmatprep.subr.bf16.mxu0 0
  %1888 = vmatpush1.bf16.xpose.msra.mxu0 0
  %1889 = vmatprep.mubr.bf16.mxu0 0
  %1890 = vmatmul.mubr.bf16.gmra.mrb[0].mxu0 %v566
  %v1891 = vpop.f32.mrb[0].mxu0
  %v1892 = vadd.f32 0.0, %v1891
  %v1893 = vpop.f32.mrb[0].mxu0
  %v1894 = vpop.f32.mrb[0].mxu0
  %v1895 = vpop.f32.mrb[0].mxu0
  %1896 = vdwg.mxu0
  %v1897 = vpack.c.bf16 %v1812, %v1772
  %v1898 = vpack.c.bf16 %v1892, %v1852
  %1900 = vset.pattern.permute.xlu0 0
  %1901 = vperm.xlu0 %1900, %v136
  %v1902 = vpop.permute.xlu0 %1901
  %1905 = vset.pattern.permute.xlu0 0
  %1906 = vperm.xlu0 %1905, %v137
  %v1907 = vpop.permute.xlu0 %1906
  %1910 = vset.pattern.permute.xlu0 0
  %1911 = vperm.xlu0 %1910, %v138
  %v1912 = vpop.permute.xlu0 %1911
  %1915 = vset.pattern.permute.xlu0 0
  %1916 = vperm.xlu0 %1915, %v139
  %v1917 = vpop.permute.xlu0 %1916
  %v1923 = vunpack.c.l.b16 %v132
  %v1924 = vunpack.c.l.b16 %v133
  %v1925 = vunpack.c.l.b16 %v134
  %v1926 = vunpack.c.l.b16 %v135
  %v1927 = vpack.c.b16 %v1924, %v1923
  %v1928 = vpack.c.b16 %v1926, %v1925
  %v1930 = vsel %vm451, %v1927, 0
  %v1933 = vsel %vm451, %v1928, 0
  %1935 = vmatprep.subr.bf16.mxu0 0
  %1936 = vmatpush1.bf16.msra.mxu0 %v1897
  %1937 = vmatprep.subr.bf16.mxu0 0
  %1938 = vmatpush1.bf16.msra.mxu0 %v1898
  %1939 = vmatprep.subr.bf16.mxu0 0
  %1940 = vmatpush1.bf16.msra.mxu0 0
  %1941 = vmatprep.subr.bf16.mxu0 0
  %1942 = vmatpush1.bf16.msra.mxu0 0
  %1943 = vmatprep.subr.bf16.mxu0 0
  %1944 = vmatpush1.bf16.msra.mxu0 0
  %1945 = vmatprep.subr.bf16.mxu0 0
  %1946 = vmatpush1.bf16.msra.mxu0 0
  %1947 = vmatprep.subr.bf16.mxu0 0
  %1948 = vmatpush1.bf16.msra.mxu0 0
  %1949 = vmatprep.subr.bf16.mxu0 0
  %1950 = vmatpush1.bf16.msra.mxu0 0
  %1951 = vmatprep.subr.bf16.mxu0 0
  %1952 = vmatpush1.bf16.msra.mxu0 0
  %1953 = vmatprep.subr.bf16.mxu0 0
  %1954 = vmatpush1.bf16.msra.mxu0 0
  %1955 = vmatprep.subr.bf16.mxu0 0
  %1956 = vmatpush1.bf16.msra.mxu0 0
  %1957 = vmatprep.subr.bf16.mxu0 0
  %1958 = vmatpush1.bf16.msra.mxu0 0
  %1959 = vmatprep.subr.bf16.mxu0 0
  %1960 = vmatpush1.bf16.msra.mxu0 0
  %1961 = vmatprep.subr.bf16.mxu0 0
  %1962 = vmatpush1.bf16.msra.mxu0 0
  %1963 = vmatprep.subr.bf16.mxu0 0
  %1964 = vmatpush1.bf16.msra.mxu0 0
  %1965 = vmatprep.subr.bf16.mxu0 0
  %1966 = vmatpush1.bf16.msra.mxu0 0
  %1967 = vmatprep.mubr.bf16.mxu0 0
  %1968 = vmatmul.mubr.bf16.gmra.mrb[0].mxu0 %v1930
  %v1969 = vpop.f32.mrb[0].mxu0
  %v1970 = vadd.f32 %v1902, %v1969
  %v1971 = vpop.f32.mrb[0].mxu0
  %v1972 = vpop.f32.mrb[0].mxu0
  %v1973 = vadd.f32 %v1907, %v1972
  %v1974 = vpop.f32.mrb[0].mxu0
  %1975 = vmatprep.mubr.bf16.mxu0 0
  %1976 = vmatmul.mubr.bf16.gmra.mrb[0].mxu0 %v1933
  %v1977 = vpop.f32.mrb[0].mxu0
  %v1978 = vadd.f32 %v1912, %v1977
  %v1979 = vpop.f32.mrb[0].mxu0
  %v1980 = vpop.f32.mrb[0].mxu0
  %v1981 = vadd.f32 %v1917, %v1980
  %v1982 = vpop.f32.mrb[0].mxu0
  %1983 = vdwg.mxu0
  %v1984 = vadd.f32 %v272, %v1970
  %v1985 = vadd.f32 %v273, %v1973
  %v1986 = vadd.f32 %v274, %v1978
  %v1987 = vadd.f32 %v275, %v1981
  %v1988 = vadd.f32 %v1984, %v1985
  %v1989 = vadd.f32 %v1988, %v1986
  %v1990 = vadd.f32 %v1989, %v1987
  %v1991 = vrot.slane %v1990, 4
  %v1992 = vadd.f32 %v1990, %v1991
  %v1993 = vrot.slane %v1992, 2
  %v1994 = vadd.f32 %v1992, %v1993
  %v1995 = vrot.slane %v1994, 1
  %v1996 = vadd.f32 %v1994, %v1995
  %v1997 = vmul.f32 %v1996, %v285
  %v1998 = vsub.f32 %v1984, %v1997
  %v1999 = vsub.f32 %v1985, %v1997
  %v2000 = vsub.f32 %v1986, %v1997
  %v2001 = vsub.f32 %v1987, %v1997
  %v2002 = vmul.f32 %v1998, %v1998
  %v2003 = vmul.f32 %v1999, %v1999
  %v2004 = vmul.f32 %v2000, %v2000
  %v2005 = vmul.f32 %v2001, %v2001
  %v2006 = vadd.f32 %v2002, %v2003
  %v2007 = vadd.f32 %v2006, %v2004
  %v2008 = vadd.f32 %v2007, %v2005
  %v2009 = vrot.slane %v2008, 4
  %v2010 = vadd.f32 %v2008, %v2009
  %v2011 = vrot.slane %v2010, 2
  %v2012 = vadd.f32 %v2010, %v2011
  %v2013 = vrot.slane %v2012, 1
  %v2014 = vadd.f32 %v2012, %v2013
  %v2015 = vmul.f32 %v2014, %v285
  %v2016 = vadd.f32 %v2015, 1e-05
  %v2017 = vrsqrt.pop %v2016
  %v2018 = vmul.f32 %v1998, %v2017
  %v2019 = vmul.f32 %v1999, %v2017
  %v2020 = vmul.f32 %v2000, %v2017
  %v2021 = vmul.f32 %v2001, %v2017
  %2023 = vset.pattern.permute.xlu0 0
  %2024 = vperm.xlu0 %2023, %v140
  %v2025 = vpop.permute.xlu0 %2024
  %2028 = vset.pattern.permute.xlu0 0
  %2029 = vperm.xlu0 %2028, %v141
  %v2030 = vpop.permute.xlu0 %2029
  %2033 = vset.pattern.permute.xlu0 0
  %2034 = vperm.xlu0 %2033, %v142
  %v2035 = vpop.permute.xlu0 %2034
  %2038 = vset.pattern.permute.xlu0 0
  %2039 = vperm.xlu0 %2038, %v143
  %v2040 = vpop.permute.xlu0 %2039
  %v2042 = vmul.f32 %v2018, %v2025
  %v2043 = vmul.f32 %v2019, %v2030
  %v2044 = vmul.f32 %v2020, %v2035
  %v2045 = vmul.f32 %v2021, %v2040
  %2047 = vset.pattern.permute.xlu0 0
  %2048 = vperm.xlu0 %2047, %v144
  %v2049 = vpop.permute.xlu0 %2048
  %2052 = vset.pattern.permute.xlu0 0
  %2053 = vperm.xlu0 %2052, %v145
  %v2054 = vpop.permute.xlu0 %2053
  %2057 = vset.pattern.permute.xlu0 0
  %2058 = vperm.xlu0 %2057, %v146
  %v2059 = vpop.permute.xlu0 %2058
  %2062 = vset.pattern.permute.xlu0 0
  %2063 = vperm.xlu0 %2062, %v147
  %v2064 = vpop.permute.xlu0 %2063
  %v2066 = vadd.f32 %v2042, %v2049
  %v2067 = vadd.f32 %v2043, %v2054
  %v2068 = vadd.f32 %v2044, %v2059
  %v2069 = vadd.f32 %v2045, %v2064
  %v2070 = vpack.c.bf16 %v2067, %v2066
  %v2071 = vpack.c.bf16 %v2069, %v2068
  %2073 = vset.pattern.permute.xlu0 0
  %2074 = vperm.xlu0 %2073, %v164
  %v2075 = vpop.permute.xlu0 %2074
  %2078 = vset.pattern.permute.xlu0 0
  %2079 = vperm.xlu0 %2078, %v165
  %v2080 = vpop.permute.xlu0 %2079
  %2083 = vset.pattern.permute.xlu0 0
  %2084 = vperm.xlu0 %2083, %v166
  %v2085 = vpop.permute.xlu0 %2084
  %2088 = vset.pattern.permute.xlu0 0
  %2089 = vperm.xlu0 %2088, %v167
  %v2090 = vpop.permute.xlu0 %2089
  %2093 = vset.pattern.permute.xlu0 0
  %2094 = vperm.xlu0 %2093, %v168
  %v2095 = vpop.permute.xlu0 %2094
  %2098 = vset.pattern.permute.xlu0 0
  %2099 = vperm.xlu0 %2098, %v169
  %v2100 = vpop.permute.xlu0 %2099
  %2103 = vset.pattern.permute.xlu0 0
  %2104 = vperm.xlu0 %2103, %v170
  %v2105 = vpop.permute.xlu0 %2104
  %2108 = vset.pattern.permute.xlu0 0
  %2109 = vperm.xlu0 %2108, %v171
  %v2110 = vpop.permute.xlu0 %2109
  %2113 = vset.pattern.permute.xlu0 0
  %2114 = vperm.xlu0 %2113, %v172
  %v2115 = vpop.permute.xlu0 %2114
  %2118 = vset.pattern.permute.xlu0 0
  %2119 = vperm.xlu0 %2118, %v173
  %v2120 = vpop.permute.xlu0 %2119
  %2123 = vset.pattern.permute.xlu0 0
  %2124 = vperm.xlu0 %2123, %v174
  %v2125 = vpop.permute.xlu0 %2124
  %2128 = vset.pattern.permute.xlu0 0
  %2129 = vperm.xlu0 %2128, %v175
  %v2130 = vpop.permute.xlu0 %2129
  %2133 = vset.pattern.permute.xlu0 0
  %2134 = vperm.xlu0 %2133, %v176
  %v2135 = vpop.permute.xlu0 %2134
  %2138 = vset.pattern.permute.xlu0 0
  %2139 = vperm.xlu0 %2138, %v177
  %v2140 = vpop.permute.xlu0 %2139
  %2143 = vset.pattern.permute.xlu0 0
  %2144 = vperm.xlu0 %2143, %v178
  %v2145 = vpop.permute.xlu0 %2144
  %2148 = vset.pattern.permute.xlu0 0
  %2149 = vperm.xlu0 %2148, %v179
  %v2150 = vpop.permute.xlu0 %2149
  %v2168 = vunpack.c.l.b16 %v148
  %v2169 = vunpack.c.l.b16 %v149
  %v2170 = vunpack.c.l.b16 %v150
  %v2171 = vunpack.c.l.b16 %v151
  %v2172 = vunpack.c.l.b16 %v152
  %v2173 = vunpack.c.l.b16 %v153
  %v2174 = vunpack.c.l.b16 %v154
  %v2175 = vunpack.c.l.b16 %v155
  %v2176 = vunpack.c.l.b16 %v156
  %v2177 = vunpack.c.l.b16 %v157
  %v2178 = vunpack.c.l.b16 %v158
  %v2179 = vunpack.c.l.b16 %v159
  %v2180 = vunpack.c.l.b16 %v160
  %v2181 = vunpack.c.l.b16 %v161
  %v2182 = vunpack.c.l.b16 %v162
  %v2183 = vunpack.c.l.b16 %v163
  %v2184 = vpack.c.b16 %v2169, %v2168
  %v2185 = vpack.c.b16 %v2171, %v2170
  %v2186 = vpack.c.b16 %v2173, %v2172
  %v2187 = vpack.c.b16 %v2175, %v2174
  %v2188 = vpack.c.b16 %v2177, %v2176
  %v2189 = vpack.c.b16 %v2179, %v2178
  %v2190 = vpack.c.b16 %v2181, %v2180
  %v2191 = vpack.c.b16 %v2183, %v2182
  %v2193 = vsel %vm451, %v2184, 0
  %v2196 = vsel %vm451, %v2185, 0
  %v2199 = vsel %vm451, %v2186, 0
  %v2202 = vsel %vm451, %v2187, 0
  %v2205 = vsel %vm451, %v2188, 0
  %v2208 = vsel %vm451, %v2189, 0
  %v2211 = vsel %vm451, %v2190, 0
  %v2214 = vsel %vm451, %v2191, 0
  %2216 = vmatprep.subr.bf16.mxu0 0
  %2217 = vmatpush1.bf16.msra.mxu0 %v2070
  %2218 = vmatprep.subr.bf16.mxu0 0
  %2219 = vmatpush1.bf16.msra.mxu0 %v2071
  %2220 = vmatprep.subr.bf16.mxu0 0
  %2221 = vmatpush1.bf16.msra.mxu0 0
  %2222 = vmatprep.subr.bf16.mxu0 0
  %2223 = vmatpush1.bf16.msra.mxu0 0
  %2224 = vmatprep.subr.bf16.mxu0 0
  %2225 = vmatpush1.bf16.msra.mxu0 0
  %2226 = vmatprep.subr.bf16.mxu0 0
  %2227 = vmatpush1.bf16.msra.mxu0 0
  %2228 = vmatprep.subr.bf16.mxu0 0
  %2229 = vmatpush1.bf16.msra.mxu0 0
  %2230 = vmatprep.subr.bf16.mxu0 0
  %2231 = vmatpush1.bf16.msra.mxu0 0
  %2232 = vmatprep.subr.bf16.mxu0 0
  %2233 = vmatpush1.bf16.msra.mxu0 0
  %2234 = vmatprep.subr.bf16.mxu0 0
  %2235 = vmatpush1.bf16.msra.mxu0 0
  %2236 = vmatprep.subr.bf16.mxu0 0
  %2237 = vmatpush1.bf16.msra.mxu0 0
  %2238 = vmatprep.subr.bf16.mxu0 0
  %2239 = vmatpush1.bf16.msra.mxu0 0
  %2240 = vmatprep.subr.bf16.mxu0 0
  %2241 = vmatpush1.bf16.msra.mxu0 0
  %2242 = vmatprep.subr.bf16.mxu0 0
  %2243 = vmatpush1.bf16.msra.mxu0 0
  %2244 = vmatprep.subr.bf16.mxu0 0
  %2245 = vmatpush1.bf16.msra.mxu0 0
  %2246 = vmatprep.subr.bf16.mxu0 0
  %2247 = vmatpush1.bf16.msra.mxu0 0
  %2248 = vmatprep.mubr.bf16.mxu0 0
  %2249 = vmatmul.mubr.bf16.gmra.mrb[0].mxu0 %v2193
  %v2250 = vpop.f32.mrb[0].mxu0
  %v2251 = vadd.f32 %v2075, %v2250
  %v2252 = vpop.f32.mrb[0].mxu0
  %v2253 = vpop.f32.mrb[0].mxu0
  %v2254 = vadd.f32 %v2080, %v2253
  %v2255 = vpop.f32.mrb[0].mxu0
  %2256 = vmatprep.mubr.bf16.mxu0 0
  %2257 = vmatmul.mubr.bf16.gmra.mrb[0].mxu0 %v2196
  %v2258 = vpop.f32.mrb[0].mxu0
  %v2259 = vadd.f32 %v2085, %v2258
  %v2260 = vpop.f32.mrb[0].mxu0
  %v2261 = vpop.f32.mrb[0].mxu0
  %v2262 = vadd.f32 %v2090, %v2261
  %v2263 = vpop.f32.mrb[0].mxu0
  %2264 = vmatprep.mubr.bf16.mxu0 0
  %2265 = vmatmul.mubr.bf16.gmra.mrb[0].mxu0 %v2199
  %v2266 = vpop.f32.mrb[0].mxu0
  %v2267 = vadd.f32 %v2095, %v2266
  %v2268 = vpop.f32.mrb[0].mxu0
  %v2269 = vpop.f32.mrb[0].mxu0
  %v2270 = vadd.f32 %v2100, %v2269
  %v2271 = vpop.f32.mrb[0].mxu0
  %2272 = vmatprep.mubr.bf16.mxu0 0
  %2273 = vmatmul.mubr.bf16.gmra.mrb[0].mxu0 %v2202
  %v2274 = vpop.f32.mrb[0].mxu0
  %v2275 = vadd.f32 %v2105, %v2274
  %v2276 = vpop.f32.mrb[0].mxu0
  %v2277 = vpop.f32.mrb[0].mxu0
  %v2278 = vadd.f32 %v2110, %v2277
  %v2279 = vpop.f32.mrb[0].mxu0
  %2280 = vmatprep.mubr.bf16.mxu0 0
  %2281 = vmatmul.mubr.bf16.gmra.mrb[0].mxu0 %v2205
  %v2282 = vpop.f32.mrb[0].mxu0
  %v2283 = vadd.f32 %v2115, %v2282
  %v2284 = vpop.f32.mrb[0].mxu0
  %v2285 = vpop.f32.mrb[0].mxu0
  %v2286 = vadd.f32 %v2120, %v2285
  %v2287 = vpop.f32.mrb[0].mxu0
  %2288 = vmatprep.mubr.bf16.mxu0 0
  %2289 = vmatmul.mubr.bf16.gmra.mrb[0].mxu0 %v2208
  %v2290 = vpop.f32.mrb[0].mxu0
  %v2291 = vadd.f32 %v2125, %v2290
  %v2292 = vpop.f32.mrb[0].mxu0
  %v2293 = vpop.f32.mrb[0].mxu0
  %v2294 = vadd.f32 %v2130, %v2293
  %v2295 = vpop.f32.mrb[0].mxu0
  %2296 = vmatprep.mubr.bf16.mxu0 0
  %2297 = vmatmul.mubr.bf16.gmra.mrb[0].mxu0 %v2211
  %v2298 = vpop.f32.mrb[0].mxu0
  %v2299 = vadd.f32 %v2135, %v2298
  %v2300 = vpop.f32.mrb[0].mxu0
  %v2301 = vpop.f32.mrb[0].mxu0
  %v2302 = vadd.f32 %v2140, %v2301
  %v2303 = vpop.f32.mrb[0].mxu0
  %2304 = vmatprep.mubr.bf16.mxu0 0
  %2305 = vmatmul.mubr.bf16.gmra.mrb[0].mxu0 %v2214
  %v2306 = vpop.f32.mrb[0].mxu0
  %v2307 = vadd.f32 %v2145, %v2306
  %v2308 = vpop.f32.mrb[0].mxu0
  %v2309 = vpop.f32.mrb[0].mxu0
  %v2310 = vadd.f32 %v2150, %v2309
  %v2311 = vpop.f32.mrb[0].mxu0
  %2312 = vdwg.mxu0
  %v2313 = vmul.f32 %v2251, 0.5
  %v2314 = vmul.f32 %v2254, 0.5
  %v2315 = vmul.f32 %v2259, 0.5
  %v2316 = vmul.f32 %v2262, 0.5
  %v2317 = vmul.f32 %v2267, 0.5
  %v2318 = vmul.f32 %v2270, 0.5
  %v2319 = vmul.f32 %v2275, 0.5
  %v2320 = vmul.f32 %v2278, 0.5
  %v2321 = vmul.f32 %v2283, 0.5
  %v2322 = vmul.f32 %v2286, 0.5
  %v2323 = vmul.f32 %v2291, 0.5
  %v2324 = vmul.f32 %v2294, 0.5
  %v2325 = vmul.f32 %v2299, 0.5
  %v2326 = vmul.f32 %v2302, 0.5
  %v2327 = vmul.f32 %v2307, 0.5
  %v2328 = vmul.f32 %v2310, 0.5
  %v2329 = vmul.f32 %v2251, 0.70710677
  %v2330 = vmul.f32 %v2254, 0.70710677
  %v2331 = vmul.f32 %v2259, 0.70710677
  %v2332 = vmul.f32 %v2262, 0.70710677
  %v2333 = vmul.f32 %v2267, 0.70710677
  %v2334 = vmul.f32 %v2270, 0.70710677
  %v2335 = vmul.f32 %v2275, 0.70710677
  %v2336 = vmul.f32 %v2278, 0.70710677
  %v2337 = vmul.f32 %v2283, 0.70710677
  %v2338 = vmul.f32 %v2286, 0.70710677
  %v2339 = vmul.f32 %v2291, 0.70710677
  %v2340 = vmul.f32 %v2294, 0.70710677
  %v2341 = vmul.f32 %v2299, 0.70710677
  %v2342 = vmul.f32 %v2302, 0.70710677
  %v2343 = vmul.f32 %v2307, 0.70710677
  %v2344 = vmul.f32 %v2310, 0.70710677
  %v2345 = verf.f32.pop %v2329
  %v2346 = verf.f32.pop %v2330
  %v2347 = verf.f32.pop %v2331
  %v2348 = verf.f32.pop %v2332
  %v2349 = verf.f32.pop %v2333
  %v2350 = verf.f32.pop %v2334
  %v2351 = verf.f32.pop %v2335
  %v2352 = verf.f32.pop %v2336
  %v2353 = verf.f32.pop %v2337
  %v2354 = verf.f32.pop %v2338
  %v2355 = verf.f32.pop %v2339
  %v2356 = verf.f32.pop %v2340
  %v2357 = verf.f32.pop %v2341
  %v2358 = verf.f32.pop %v2342
  %v2359 = verf.f32.pop %v2343
  %v2360 = verf.f32.pop %v2344
  %v2361 = vadd.f32 %v2345, 1.0
  %v2362 = vadd.f32 %v2346, 1.0
  %v2363 = vadd.f32 %v2347, 1.0
  %v2364 = vadd.f32 %v2348, 1.0
  %v2365 = vadd.f32 %v2349, 1.0
  %v2366 = vadd.f32 %v2350, 1.0
  %v2367 = vadd.f32 %v2351, 1.0
  %v2368 = vadd.f32 %v2352, 1.0
  %v2369 = vadd.f32 %v2353, 1.0
  %v2370 = vadd.f32 %v2354, 1.0
  %v2371 = vadd.f32 %v2355, 1.0
  %v2372 = vadd.f32 %v2356, 1.0
  %v2373 = vadd.f32 %v2357, 1.0
  %v2374 = vadd.f32 %v2358, 1.0
  %v2375 = vadd.f32 %v2359, 1.0
  %v2376 = vadd.f32 %v2360, 1.0
  %v2377 = vmul.f32 %v2313, %v2361
  %v2378 = vmul.f32 %v2314, %v2362
  %v2379 = vmul.f32 %v2315, %v2363
  %v2380 = vmul.f32 %v2316, %v2364
  %v2381 = vmul.f32 %v2317, %v2365
  %v2382 = vmul.f32 %v2318, %v2366
  %v2383 = vmul.f32 %v2319, %v2367
  %v2384 = vmul.f32 %v2320, %v2368
  %v2385 = vmul.f32 %v2321, %v2369
  %v2386 = vmul.f32 %v2322, %v2370
  %v2387 = vmul.f32 %v2323, %v2371
  %v2388 = vmul.f32 %v2324, %v2372
  %v2389 = vmul.f32 %v2325, %v2373
  %v2390 = vmul.f32 %v2326, %v2374
  %v2391 = vmul.f32 %v2327, %v2375
  %v2392 = vmul.f32 %v2328, %v2376
  %v2393 = vpack.c.bf16 %v2378, %v2377
  %v2394 = vpack.c.bf16 %v2380, %v2379
  %v2395 = vpack.c.bf16 %v2382, %v2381
  %v2396 = vpack.c.bf16 %v2384, %v2383
  %v2397 = vpack.c.bf16 %v2386, %v2385
  %v2398 = vpack.c.bf16 %v2388, %v2387
  %v2399 = vpack.c.bf16 %v2390, %v2389
  %v2400 = vpack.c.bf16 %v2392, %v2391
  %2402 = vset.pattern.permute.xlu0 0
  %2403 = vperm.xlu0 %2402, %v184
  %v2404 = vpop.permute.xlu0 %2403
  %2407 = vset.pattern.permute.xlu0 0
  %2408 = vperm.xlu0 %2407, %v185
  %v2409 = vpop.permute.xlu0 %2408
  %2412 = vset.pattern.permute.xlu0 0
  %2413 = vperm.xlu0 %2412, %v186
  %v2414 = vpop.permute.xlu0 %2413
  %2417 = vset.pattern.permute.xlu0 0
  %2418 = vperm.xlu0 %2417, %v187
  %v2419 = vpop.permute.xlu0 %2418
  %v2425 = vunpack.c.l.b16 %v180
  %v2426 = vunpack.c.l.b16 %v181
  %v2427 = vunpack.c.l.b16 %v182
  %v2428 = vunpack.c.l.b16 %v183
  %v2429 = vpack.c.b16 %v2426, %v2425
  %v2430 = vpack.c.b16 %v2428, %v2427
  %2433 = vmatprep.subr.bf16.mxu0 0
  %2434 = vmatpush1.bf16.msra.mxu0 %v2393
  %2435 = vmatprep.subr.bf16.mxu0 0
  %2436 = vmatpush1.bf16.msra.mxu0 %v2394
  %2437 = vmatprep.subr.bf16.mxu0 0
  %2438 = vmatpush1.bf16.msra.mxu0 %v2395
  %2439 = vmatprep.subr.bf16.mxu0 0
  %2440 = vmatpush1.bf16.msra.mxu0 %v2396
  %2441 = vmatprep.subr.bf16.mxu0 0
  %2442 = vmatpush1.bf16.msra.mxu0 %v2397
  %2443 = vmatprep.subr.bf16.mxu0 0
  %2444 = vmatpush1.bf16.msra.mxu0 %v2398
  %2445 = vmatprep.subr.bf16.mxu0 0
  %2446 = vmatpush1.bf16.msra.mxu0 %v2399
  %2447 = vmatprep.subr.bf16.mxu0 0
  %2448 = vmatpush1.bf16.msra.mxu0 %v2400
  %2449 = vmatprep.subr.bf16.mxu0 0
  %2450 = vmatpush1.bf16.msra.mxu0 0
  %2451 = vmatprep.subr.bf16.mxu0 0
  %2452 = vmatpush1.bf16.msra.mxu0 0
  %2453 = vmatprep.subr.bf16.mxu0 0
  %2454 = vmatpush1.bf16.msra.mxu0 0
  %2455 = vmatprep.subr.bf16.mxu0 0
  %2456 = vmatpush1.bf16.msra.mxu0 0
  %2457 = vmatprep.subr.bf16.mxu0 0
  %2458 = vmatpush1.bf16.msra.mxu0 0
  %2459 = vmatprep.subr.bf16.mxu0 0
  %2460 = vmatpush1.bf16.msra.mxu0 0
  %2461 = vmatprep.subr.bf16.mxu0 0
  %2462 = vmatpush1.bf16.msra.mxu0 0
  %2463 = vmatprep.subr.bf16.mxu0 0
  %2464 = vmatpush1.bf16.msra.mxu0 0
  %2465 = vmatprep.mubr.bf16.mxu0 0
  %2466 = vmatmul.mubr.bf16.gmra.mrb[0].mxu0 %v2429
  %v2467 = vpop.f32.mrb[0].mxu0
  %v2468 = vadd.f32 %v2404, %v2467
  %v2469 = vpop.f32.mrb[0].mxu0
  %v2470 = vpop.f32.mrb[0].mxu0
  %v2471 = vadd.f32 %v2409, %v2470
  %v2472 = vpop.f32.mrb[0].mxu0
  %2473 = vmatprep.mubr.bf16.mxu0 0
  %2474 = vmatmul.mubr.bf16.gmra.mrb[0].mxu0 %v2430
  %v2475 = vpop.f32.mrb[0].mxu0
  %v2476 = vadd.f32 %v2414, %v2475
  %v2477 = vpop.f32.mrb[0].mxu0
  %v2478 = vpop.f32.mrb[0].mxu0
  %v2479 = vadd.f32 %v2419, %v2478
  %v2480 = vpop.f32.mrb[0].mxu0
  %2481 = vdwg.mxu0
  %v2482 = vadd.f32 %v1984, %v2468
  %v2483 = vadd.f32 %v1985, %v2471
  %v2484 = vadd.f32 %v1986, %v2476
  %v2485 = vadd.f32 %v1987, %v2479
  %v2486 = vadd.f32 %v2482, %v2483
  %v2487 = vrot.slane %v2486, 4
  %v2488 = vadd.f32 %v2486, %v2487
  %v2489 = vrot.slane %v2488, 2
  %v2490 = vadd.f32 %v2488, %v2489
  %v2491 = vrot.slane %v2490, 1
  %v2492 = vadd.f32 %v2490, %v2491
  %v2493 = vadd.f32 %v2484, %v2485
  %v2494 = vrot.slane %v2493, 4
  %v2495 = vadd.f32 %v2493, %v2494
  %v2496 = vrot.slane %v2495, 2
  %v2497 = vadd.f32 %v2495, %v2496
  %v2498 = vrot.slane %v2497, 1
  %v2499 = vadd.f32 %v2497, %v2498
  %v2500 = vrcp.pop 16.0
  %v2501 = vmul.f32 %v2492, %v2500
  %v2502 = vmul.f32 %v2499, %v2500
  %v2503 = vsub.f32 %v2482, %v2501
  %v2504 = vsub.f32 %v2483, %v2501
  %v2505 = vsub.f32 %v2484, %v2502
  %v2506 = vsub.f32 %v2485, %v2502
  %v2507 = vmul.f32 %v2503, %v2503
  %v2508 = vmul.f32 %v2504, %v2504
  %v2509 = vmul.f32 %v2505, %v2505
  %v2510 = vmul.f32 %v2506, %v2506
  %v2511 = vadd.f32 %v2507, %v2508
  %v2512 = vrot.slane %v2511, 4
  %v2513 = vadd.f32 %v2511, %v2512
  %v2514 = vrot.slane %v2513, 2
  %v2515 = vadd.f32 %v2513, %v2514
  %v2516 = vrot.slane %v2515, 1
  %v2517 = vadd.f32 %v2515, %v2516
  %v2518 = vadd.f32 %v2509, %v2510
  %v2519 = vrot.slane %v2518, 4
  %v2520 = vadd.f32 %v2518, %v2519
  %v2521 = vrot.slane %v2520, 2
  %v2522 = vadd.f32 %v2520, %v2521
  %v2523 = vrot.slane %v2522, 1
  %v2524 = vadd.f32 %v2522, %v2523
  %v2525 = vmul.f32 %v2517, %v2500
  %v2526 = vmul.f32 %v2524, %v2500
  %v2527 = vadd.f32 %v2525, 1e-05
  %v2528 = vadd.f32 %v2526, 1e-05
  %v2529 = vrsqrt.pop %v2527
  %v2530 = vrsqrt.pop %v2528
  %v2531 = vmul.f32 %v2503, %v2529
  %v2532 = vmul.f32 %v2504, %v2529
  %v2533 = vmul.f32 %v2505, %v2530
  %v2534 = vmul.f32 %v2506, %v2530
  %2536 = vset.pattern.permute.xlu0 0
  %2537 = vperm.xlu0 %2536, %v188
  %v2538 = vpop.permute.xlu0 %2537
  %2541 = vset.pattern.permute.xlu0 0
  %2542 = vperm.xlu0 %2541, %v189
  %v2543 = vpop.permute.xlu0 %2542
  %v2545 = vmul.f32 %v2531, %v2538
  %v2546 = vmul.f32 %v2532, %v2543
  %v2547 = vmul.f32 %v2533, %v2538
  %v2548 = vmul.f32 %v2534, %v2543
  %2550 = vset.pattern.permute.xlu0 0
  %2551 = vperm.xlu0 %2550, %v190
  %v2552 = vpop.permute.xlu0 %2551
  %2555 = vset.pattern.permute.xlu0 0
  %2556 = vperm.xlu0 %2555, %v191
  %v2557 = vpop.permute.xlu0 %2556
  %v2559 = vadd.f32 %v2545, %v2552
  %v2560 = vadd.f32 %v2546, %v2557
  %v2561 = vadd.f32 %v2547, %v2552
  %v2562 = vadd.f32 %v2548, %v2557
  %v2563 = vpack.c.bf16 %v2560, %v2559
  %v2564 = vpack.c.bf16 %v2562, %v2561
  %2566 = vset.pattern.permute.xlu0 0
  %2567 = vperm.xlu0 %2566, %v204
  %v2568 = vpop.permute.xlu0 %2567
  %2571 = vset.pattern.permute.xlu0 0
  %2572 = vperm.xlu0 %2571, %v205
  %v2573 = vpop.permute.xlu0 %2572
  %2576 = vset.pattern.permute.xlu0 0
  %2577 = vperm.xlu0 %2576, %v206
  %v2578 = vpop.permute.xlu0 %2577
  %2581 = vset.pattern.permute.xlu0 0
  %2582 = vperm.xlu0 %2581, %v207
  %v2583 = vpop.permute.xlu0 %2582
  %2586 = vset.pattern.permute.xlu0 0
  %2587 = vperm.xlu0 %2586, %v208
  %v2588 = vpop.permute.xlu0 %2587
  %2591 = vset.pattern.permute.xlu0 0
  %2592 = vperm.xlu0 %2591, %v209
  %v2593 = vpop.permute.xlu0 %2592
  %2596 = vset.pattern.permute.xlu0 0
  %2597 = vperm.xlu0 %2596, %v210
  %v2598 = vpop.permute.xlu0 %2597
  %2601 = vset.pattern.permute.xlu0 0
  %2602 = vperm.xlu0 %2601, %v211
  %v2603 = vpop.permute.xlu0 %2602
  %2606 = vset.pattern.permute.xlu0 0
  %2607 = vperm.xlu0 %2606, %v212
  %v2608 = vpop.permute.xlu0 %2607
  %2611 = vset.pattern.permute.xlu0 0
  %2612 = vperm.xlu0 %2611, %v213
  %v2613 = vpop.permute.xlu0 %2612
  %2616 = vset.pattern.permute.xlu0 0
  %2617 = vperm.xlu0 %2616, %v214
  %v2618 = vpop.permute.xlu0 %2617
  %2621 = vset.pattern.permute.xlu0 0
  %2622 = vperm.xlu0 %2621, %v215
  %v2623 = vpop.permute.xlu0 %2622
  %v2637 = vunpack.c.l.b16 %v192
  %v2638 = vunpack.c.l.b16 %v193
  %v2639 = vunpack.c.l.b16 %v194
  %v2640 = vunpack.c.l.b16 %v195
  %v2641 = vunpack.c.l.b16 %v196
  %v2642 = vunpack.c.l.b16 %v197
  %v2643 = vunpack.c.l.b16 %v198
  %v2644 = vunpack.c.l.b16 %v199
  %v2645 = vunpack.c.l.b16 %v200
  %v2646 = vunpack.c.l.b16 %v201
  %v2647 = vunpack.c.l.b16 %v202
  %v2648 = vunpack.c.l.b16 %v203
  %v2649 = vpack.c.b16 %v2638, %v2637
  %v2650 = vpack.c.b16 %v2640, %v2639
  %v2651 = vpack.c.b16 %v2642, %v2641
  %v2652 = vpack.c.b16 %v2644, %v2643
  %v2653 = vpack.c.b16 %v2646, %v2645
  %v2654 = vpack.c.b16 %v2648, %v2647
  %v2656 = vsel %vm451, %v2649, 0
  %v2659 = vsel %vm451, %v2650, 0
  %v2662 = vsel %vm451, %v2651, 0
  %v2665 = vsel %vm451, %v2652, 0
  %v2668 = vsel %vm451, %v2653, 0
  %v2671 = vsel %vm451, %v2654, 0
  %2673 = vmatprep.subr.bf16.mxu0 0
  %2674 = vmatpush1.bf16.msra.mxu0 %v2563
  %2675 = vmatprep.subr.bf16.mxu0 0
  %2676 = vmatpush1.bf16.msra.mxu0 %v2564
  %2677 = vmatprep.subr.bf16.mxu0 0
  %2678 = vmatpush1.bf16.msra.mxu0 0
  %2679 = vmatprep.subr.bf16.mxu0 0
  %2680 = vmatpush1.bf16.msra.mxu0 0
  %2681 = vmatprep.subr.bf16.mxu0 0
  %2682 = vmatpush1.bf16.msra.mxu0 0
  %2683 = vmatprep.subr.bf16.mxu0 0
  %2684 = vmatpush1.bf16.msra.mxu0 0
  %2685 = vmatprep.subr.bf16.mxu0 0
  %2686 = vmatpush1.bf16.msra.mxu0 0
  %2687 = vmatprep.subr.bf16.mxu0 0
  %2688 = vmatpush1.bf16.msra.mxu0 0
  %2689 = vmatprep.subr.bf16.mxu0 0
  %2690 = vmatpush1.bf16.msra.mxu0 0
  %2691 = vmatprep.subr.bf16.mxu0 0
  %2692 = vmatpush1.bf16.msra.mxu0 0
  %2693 = vmatprep.subr.bf16.mxu0 0
  %2694 = vmatpush1.bf16.msra.mxu0 0
  %2695 = vmatprep.subr.bf16.mxu0 0
  %2696 = vmatpush1.bf16.msra.mxu0 0
  %2697 = vmatprep.subr.bf16.mxu0 0
  %2698 = vmatpush1.bf16.msra.mxu0 0
  %2699 = vmatprep.subr.bf16.mxu0 0
  %2700 = vmatpush1.bf16.msra.mxu0 0
  %2701 = vmatprep.subr.bf16.mxu0 0
  %2702 = vmatpush1.bf16.msra.mxu0 0
  %2703 = vmatprep.subr.bf16.mxu0 0
  %2704 = vmatpush1.bf16.msra.mxu0 0
  %2705 = vmatprep.mubr.bf16.mxu0 0
  %2706 = vmatmul.mubr.bf16.gmra.mrb[0].mxu0 %v2656
  %v2707 = vpop.f32.mrb[0].mxu0
  %v2708 = vadd.f32 %v2568, %v2707
  %v2709 = vpop.f32.mrb[0].mxu0
  %v2710 = vpop.f32.mrb[0].mxu0
  %v2711 = vadd.f32 %v2573, %v2710
  %v2712 = vpop.f32.mrb[0].mxu0
  %2713 = vmatprep.mubr.bf16.mxu0 0
  %2714 = vmatmul.mubr.bf16.gmra.mrb[0].mxu0 %v2659
  %v2715 = vpop.f32.mrb[0].mxu0
  %v2716 = vadd.f32 %v2578, %v2715
  %v2717 = vpop.f32.mrb[0].mxu0
  %v2718 = vpop.f32.mrb[0].mxu0
  %v2719 = vadd.f32 %v2583, %v2718
  %v2720 = vpop.f32.mrb[0].mxu0
  %2721 = vmatprep.mubr.bf16.mxu0 0
  %2722 = vmatmul.mubr.bf16.gmra.mrb[0].mxu0 %v2662
  %v2723 = vpop.f32.mrb[0].mxu0
  %v2724 = vadd.f32 %v2588, %v2723
  %v2725 = vpop.f32.mrb[0].mxu0
  %v2726 = vpop.f32.mrb[0].mxu0
  %v2727 = vadd.f32 %v2593, %v2726
  %v2728 = vpop.f32.mrb[0].mxu0
  %2729 = vmatprep.mubr.bf16.mxu0 0
  %2730 = vmatmul.mubr.bf16.gmra.mrb[0].mxu0 %v2665
  %v2731 = vpop.f32.mrb[0].mxu0
  %v2732 = vadd.f32 %v2598, %v2731
  %v2733 = vpop.f32.mrb[0].mxu0
  %v2734 = vpop.f32.mrb[0].mxu0
  %v2735 = vadd.f32 %v2603, %v2734
  %v2736 = vpop.f32.mrb[0].mxu0
  %2737 = vmatprep.mubr.bf16.mxu0 0
  %2738 = vmatmul.mubr.bf16.gmra.mrb[0].mxu0 %v2668
  %v2739 = vpop.f32.mrb[0].mxu0
  %v2740 = vadd.f32 %v2608, %v2739
  %v2741 = vpop.f32.mrb[0].mxu0
  %v2742 = vpop.f32.mrb[0].mxu0
  %v2743 = vadd.f32 %v2613, %v2742
  %v2744 = vpop.f32.mrb[0].mxu0
  %2745 = vmatprep.mubr.bf16.mxu0 0
  %2746 = vmatmul.mubr.bf16.gmra.mrb[0].mxu0 %v2671
  %v2747 = vpop.f32.mrb[0].mxu0
  %v2748 = vadd.f32 %v2618, %v2747
  %v2749 = vpop.f32.mrb[0].mxu0
  %v2750 = vpop.f32.mrb[0].mxu0
  %v2751 = vadd.f32 %v2623, %v2750
  %v2752 = vpop.f32.mrb[0].mxu0
  %2753 = vdwg.mxu0
  %v2754 = vmul.f32 %v2708, 0.5
  %v2755 = vmul.f32 %v2711, 0.5
  %v2756 = vmul.f32 %v2732, 0.5
  %v2757 = vmul.f32 %v2735, 0.5
  %v2760 = vcombine.high %v2724, %v2724
  %v2761 = vcombine.high %v2727, %v2727
  %v2766 = vcombine.high %v2748, %v2748
  %v2767 = vcombine.high %v2751, %v2751
  %v2770 = vmul.f32 %v2754, %v2716
  %v2771 = vmul.f32 %v2755, %v2719
  %v2774 = vcombine.high %v2770, %v2770
  %v2775 = vcombine.high %v2771, %v2771
  %v2778 = vsel %vm608, %v2770, 0.0
  %v2779 = vrot.slane %v2778, 4
  %v2780 = vadd.f32 %v2778, %v2779
  %v2781 = vrot.slane %v2780, 2
  %v2782 = vadd.f32 %v2780, %v2781
  %v2783 = vrot.slane %v2782, 1
  %v2784 = vadd.f32 %v2782, %v2783
  %v2785 = vsel %vm608, %v2774, 0.0
  %v2786 = vrot.slane %v2785, 4
  %v2787 = vadd.f32 %v2785, %v2786
  %v2788 = vrot.slane %v2787, 2
  %v2789 = vadd.f32 %v2787, %v2788
  %v2790 = vrot.slane %v2789, 1
  %v2791 = vadd.f32 %v2789, %v2790
  %v2792 = vsel %vm608, %v2771, 0.0
  %v2793 = vrot.slane %v2792, 4
  %v2794 = vadd.f32 %v2792, %v2793
  %v2795 = vrot.slane %v2794, 2
  %v2796 = vadd.f32 %v2794, %v2795
  %v2797 = vrot.slane %v2796, 1
  %v2798 = vadd.f32 %v2796, %v2797
  %v2799 = vsel %vm608, %v2775, 0.0
  %v2800 = vrot.slane %v2799, 4
  %v2801 = vadd.f32 %v2799, %v2800
  %v2802 = vrot.slane %v2801, 2
  %v2803 = vadd.f32 %v2801, %v2802
  %v2804 = vrot.slane %v2803, 1
  %v2805 = vadd.f32 %v2803, %v2804
  %v2806 = vmul.f32 %v2754, %v2740
  %v2807 = vmul.f32 %v2755, %v2743
  %v2810 = vcombine.high %v2806, %v2806
  %v2811 = vcombine.high %v2807, %v2807
  %v2814 = vsel %vm608, %v2806, 0.0
  %v2815 = vrot.slane %v2814, 4
  %v2816 = vadd.f32 %v2814, %v2815
  %v2817 = vrot.slane %v2816, 2
  %v2818 = vadd.f32 %v2816, %v2817
  %v2819 = vrot.slane %v2818, 1
  %v2820 = vadd.f32 %v2818, %v2819
  %v2821 = vsel %vm608, %v2810, 0.0
  %v2822 = vrot.slane %v2821, 4
  %v2823 = vadd.f32 %v2821, %v2822
  %v2824 = vrot.slane %v2823, 2
  %v2825 = vadd.f32 %v2823, %v2824
  %v2826 = vrot.slane %v2825, 1
  %v2827 = vadd.f32 %v2825, %v2826
  %v2828 = vsel %vm608, %v2807, 0.0
  %v2829 = vrot.slane %v2828, 4
  %v2830 = vadd.f32 %v2828, %v2829
  %v2831 = vrot.slane %v2830, 2
  %v2832 = vadd.f32 %v2830, %v2831
  %v2833 = vrot.slane %v2832, 1
  %v2834 = vadd.f32 %v2832, %v2833
  %v2835 = vsel %vm608, %v2811, 0.0
  %v2836 = vrot.slane %v2835, 4
  %v2837 = vadd.f32 %v2835, %v2836
  %v2838 = vrot.slane %v2837, 2
  %v2839 = vadd.f32 %v2837, %v2838
  %v2840 = vrot.slane %v2839, 1
  %v2841 = vadd.f32 %v2839, %v2840
  %v2842 = vmax.f32 %v2784, %v2820
  %v2843 = vmax.f32 %v2791, %v2827
  %v2844 = vmax.f32 %v2798, %v2834
  %v2845 = vmax.f32 %v2805, %v2841
  %v2846 = vsub.f32 %v2784, %v2842
  %v2847 = vsub.f32 %v2791, %v2843
  %v2848 = vsub.f32 %v2798, %v2844
  %v2849 = vsub.f32 %v2805, %v2845
  %v2850 = vmul.f32 %v2846, 1.442695
  %v2851 = vpow.pop %v2850
  %v2852 = vmul.f32 %v2847, 1.442695
  %v2853 = vpow.pop %v2852
  %v2854 = vmul.f32 %v2848, 1.442695
  %v2855 = vpow.pop %v2854
  %v2856 = vmul.f32 %v2849, 1.442695
  %v2857 = vpow.pop %v2856
  %v2858 = vsub.f32 %v2820, %v2842
  %v2859 = vsub.f32 %v2827, %v2843
  %v2860 = vsub.f32 %v2834, %v2844
  %v2861 = vsub.f32 %v2841, %v2845
  %v2862 = vmul.f32 %v2858, 1.442695
  %v2863 = vpow.pop %v2862
  %v2864 = vmul.f32 %v2859, 1.442695
  %v2865 = vpow.pop %v2864
  %v2866 = vmul.f32 %v2860, 1.442695
  %v2867 = vpow.pop %v2866
  %v2868 = vmul.f32 %v2861, 1.442695
  %v2869 = vpow.pop %v2868
  %v2870 = vadd.f32 %v2851, %v2863
  %v2871 = vadd.f32 %v2853, %v2865
  %v2872 = vadd.f32 %v2855, %v2867
  %v2873 = vadd.f32 %v2857, %v2869
  %v2874 = vrcp.pop %v2870
  %v2875 = vmul.f32 1.0, %v2874
  %v2876 = vrcp.pop %v2871
  %v2877 = vmul.f32 1.0, %v2876
  %v2878 = vrcp.pop %v2872
  %v2879 = vmul.f32 1.0, %v2878
  %v2880 = vrcp.pop %v2873
  %v2881 = vmul.f32 1.0, %v2880
  %v2882 = vmul.f32 %v2851, %v2875
  %v2883 = vmul.f32 %v2853, %v2877
  %v2884 = vmul.f32 %v2855, %v2879
  %v2885 = vmul.f32 %v2857, %v2881
  %v2886 = vmul.f32 %v2863, %v2875
  %v2887 = vmul.f32 %v2865, %v2877
  %v2888 = vmul.f32 %v2867, %v2879
  %v2889 = vmul.f32 %v2869, %v2881
  %v2890 = vmul.f32 %v2882, %v2724
  %v2891 = vmul.f32 %v2883, %v2760
  %v2892 = vmul.f32 %v2884, %v2727
  %v2893 = vmul.f32 %v2885, %v2761
  %v2894 = vmul.f32 %v2886, %v2748
  %v2895 = vmul.f32 %v2887, %v2766
  %v2896 = vmul.f32 %v2888, %v2751
  %v2897 = vmul.f32 %v2889, %v2767
  %v2898 = vadd.f32 %v2890, %v2894
  %v2899 = vadd.f32 %v2891, %v2895
  %v2900 = vadd.f32 %v2892, %v2896
  %v2901 = vadd.f32 %v2893, %v2897
  %v2902 = vmul.f32 %v2756, %v2716
  %v2903 = vmul.f32 %v2757, %v2719
  %v2906 = vcombine.high %v2902, %v2902
  %v2907 = vcombine.high %v2903, %v2903
  %v2910 = vsel %vm608, %v2902, 0.0
  %v2911 = vrot.slane %v2910, 4
  %v2912 = vadd.f32 %v2910, %v2911
  %v2913 = vrot.slane %v2912, 2
  %v2914 = vadd.f32 %v2912, %v2913
  %v2915 = vrot.slane %v2914, 1
  %v2916 = vadd.f32 %v2914, %v2915
  %v2917 = vsel %vm608, %v2906, 0.0
  %v2918 = vrot.slane %v2917, 4
  %v2919 = vadd.f32 %v2917, %v2918
  %v2920 = vrot.slane %v2919, 2
  %v2921 = vadd.f32 %v2919, %v2920
  %v2922 = vrot.slane %v2921, 1
  %v2923 = vadd.f32 %v2921, %v2922
  %v2924 = vsel %vm608, %v2903, 0.0
  %v2925 = vrot.slane %v2924, 4
  %v2926 = vadd.f32 %v2924, %v2925
  %v2927 = vrot.slane %v2926, 2
  %v2928 = vadd.f32 %v2926, %v2927
  %v2929 = vrot.slane %v2928, 1
  %v2930 = vadd.f32 %v2928, %v2929
  %v2931 = vsel %vm608, %v2907, 0.0
  %v2932 = vrot.slane %v2931, 4
  %v2933 = vadd.f32 %v2931, %v2932
  %v2934 = vrot.slane %v2933, 2
  %v2935 = vadd.f32 %v2933, %v2934
  %v2936 = vrot.slane %v2935, 1
  %v2937 = vadd.f32 %v2935, %v2936
  %v2938 = vmul.f32 %v2756, %v2740
  %v2939 = vmul.f32 %v2757, %v2743
  %v2942 = vcombine.high %v2938, %v2938
  %v2943 = vcombine.high %v2939, %v2939
  %v2946 = vsel %vm608, %v2938, 0.0
  %v2947 = vrot.slane %v2946, 4
  %v2948 = vadd.f32 %v2946, %v2947
  %v2949 = vrot.slane %v2948, 2
  %v2950 = vadd.f32 %v2948, %v2949
  %v2951 = vrot.slane %v2950, 1
  %v2952 = vadd.f32 %v2950, %v2951
  %v2953 = vsel %vm608, %v2942, 0.0
  %v2954 = vrot.slane %v2953, 4
  %v2955 = vadd.f32 %v2953, %v2954
  %v2956 = vrot.slane %v2955, 2
  %v2957 = vadd.f32 %v2955, %v2956
  %v2958 = vrot.slane %v2957, 1
  %v2959 = vadd.f32 %v2957, %v2958
  %v2960 = vsel %vm608, %v2939, 0.0
  %v2961 = vrot.slane %v2960, 4
  %v2962 = vadd.f32 %v2960, %v2961
  %v2963 = vrot.slane %v2962, 2
  %v2964 = vadd.f32 %v2962, %v2963
  %v2965 = vrot.slane %v2964, 1
  %v2966 = vadd.f32 %v2964, %v2965
  %v2967 = vsel %vm608, %v2943, 0.0
  %v2968 = vrot.slane %v2967, 4
  %v2969 = vadd.f32 %v2967, %v2968
  %v2970 = vrot.slane %v2969, 2
  %v2971 = vadd.f32 %v2969, %v2970
  %v2972 = vrot.slane %v2971, 1
  %v2973 = vadd.f32 %v2971, %v2972
  %v2974 = vmax.f32 %v2916, %v2952
  %v2975 = vmax.f32 %v2923, %v2959
  %v2976 = vmax.f32 %v2930, %v2966
  %v2977 = vmax.f32 %v2937, %v2973
  %v2978 = vsub.f32 %v2916, %v2974
  %v2979 = vsub.f32 %v2923, %v2975
  %v2980 = vsub.f32 %v2930, %v2976
  %v2981 = vsub.f32 %v2937, %v2977
  %v2982 = vmul.f32 %v2978, 1.442695
  %v2983 = vpow.pop %v2982
  %v2984 = vmul.f32 %v2979, 1.442695
  %v2985 = vpow.pop %v2984
  %v2986 = vmul.f32 %v2980, 1.442695
  %v2987 = vpow.pop %v2986
  %v2988 = vmul.f32 %v2981, 1.442695
  %v2989 = vpow.pop %v2988
  %v2990 = vsub.f32 %v2952, %v2974
  %v2991 = vsub.f32 %v2959, %v2975
  %v2992 = vsub.f32 %v2966, %v2976
  %v2993 = vsub.f32 %v2973, %v2977
  %v2994 = vmul.f32 %v2990, 1.442695
  %v2995 = vpow.pop %v2994
  %v2996 = vmul.f32 %v2991, 1.442695
  %v2997 = vpow.pop %v2996
  %v2998 = vmul.f32 %v2992, 1.442695
  %v2999 = vpow.pop %v2998
  %v3000 = vmul.f32 %v2993, 1.442695
  %v3001 = vpow.pop %v3000
  %v3002 = vadd.f32 %v2983, %v2995
  %v3003 = vadd.f32 %v2985, %v2997
  %v3004 = vadd.f32 %v2987, %v2999
  %v3005 = vadd.f32 %v2989, %v3001
  %v3006 = vrcp.pop %v3002
  %v3007 = vmul.f32 1.0, %v3006
  %v3008 = vrcp.pop %v3003
  %v3009 = vmul.f32 1.0, %v3008
  %v3010 = vrcp.pop %v3004
  %v3011 = vmul.f32 1.0, %v3010
  %v3012 = vrcp.pop %v3005
  %v3013 = vmul.f32 1.0, %v3012
  %v3014 = vmul.f32 %v2983, %v3007
  %v3015 = vmul.f32 %v2985, %v3009
  %v3016 = vmul.f32 %v2987, %v3011
  %v3017 = vmul.f32 %v2989, %v3013
  %v3018 = vmul.f32 %v2995, %v3007
  %v3019 = vmul.f32 %v2997, %v3009
  %v3020 = vmul.f32 %v2999, %v3011
  %v3021 = vmul.f32 %v3001, %v3013
  %v3022 = vmul.f32 %v3014, %v2724
  %v3023 = vmul.f32 %v3015, %v2760
  %v3024 = vmul.f32 %v3016, %v2727
  %v3025 = vmul.f32 %v3017, %v2761
  %v3026 = vmul.f32 %v3018, %v2748
  %v3027 = vmul.f32 %v3019, %v2766
  %v3028 = vmul.f32 %v3020, %v2751
  %v3029 = vmul.f32 %v3021, %v2767
  %v3030 = vadd.f32 %v3022, %v3026
  %v3031 = vadd.f32 %v3023, %v3027
  %v3032 = vadd.f32 %v3024, %v3028
  %v3033 = vadd.f32 %v3025, %v3029
  %v3038 = vcombine.low %v2898, %v2899
  %v3039 = vcombine.low %v2900, %v2901
  %v3046 = vcombine.low %v3030, %v3031
  %v3047 = vcombine.low %v3032, %v3033
  %v3050 = vpack.c.bf16 %v3039, %v3038
  %v3051 = vpack.c.bf16 %v3047, %v3046
  %3053 = vset.pattern.permute.xlu0 0
  %3054 = vperm.xlu0 %3053, %v220
  %v3055 = vpop.permute.xlu0 %3054
  %3058 = vset.pattern.permute.xlu0 0
  %3059 = vperm.xlu0 %3058, %v221
  %v3060 = vpop.permute.xlu0 %3059
  %3063 = vset.pattern.permute.xlu0 0
  %3064 = vperm.xlu0 %3063, %v222
  %v3065 = vpop.permute.xlu0 %3064
  %3068 = vset.pattern.permute.xlu0 0
  %3069 = vperm.xlu0 %3068, %v223
  %v3070 = vpop.permute.xlu0 %3069
  %v3076 = vunpack.c.l.b16 %v216
  %v3077 = vunpack.c.l.b16 %v217
  %v3078 = vunpack.c.l.b16 %v218
  %v3079 = vunpack.c.l.b16 %v219
  %v3080 = vpack.c.b16 %v3077, %v3076
  %v3081 = vpack.c.b16 %v3079, %v3078
  %v3083 = vsel %vm451, %v3080, 0
  %v3086 = vsel %vm451, %v3081, 0
  %3088 = vmatprep.subr.bf16.mxu0 0
  %3089 = vmatpush1.bf16.msra.mxu0 %v3050
  %3090 = vmatprep.subr.bf16.mxu0 0
  %3091 = vmatpush1.bf16.msra.mxu0 %v3051
  %3092 = vmatprep.subr.bf16.mxu0 0
  %3093 = vmatpush1.bf16.msra.mxu0 0
  %3094 = vmatprep.subr.bf16.mxu0 0
  %3095 = vmatpush1.bf16.msra.mxu0 0
  %3096 = vmatprep.subr.bf16.mxu0 0
  %3097 = vmatpush1.bf16.msra.mxu0 0
  %3098 = vmatprep.subr.bf16.mxu0 0
  %3099 = vmatpush1.bf16.msra.mxu0 0
  %3100 = vmatprep.subr.bf16.mxu0 0
  %3101 = vmatpush1.bf16.msra.mxu0 0
  %3102 = vmatprep.subr.bf16.mxu0 0
  %3103 = vmatpush1.bf16.msra.mxu0 0
  %3104 = vmatprep.subr.bf16.mxu0 0
  %3105 = vmatpush1.bf16.msra.mxu0 0
  %3106 = vmatprep.subr.bf16.mxu0 0
  %3107 = vmatpush1.bf16.msra.mxu0 0
  %3108 = vmatprep.subr.bf16.mxu0 0
  %3109 = vmatpush1.bf16.msra.mxu0 0
  %3110 = vmatprep.subr.bf16.mxu0 0
  %3111 = vmatpush1.bf16.msra.mxu0 0
  %3112 = vmatprep.subr.bf16.mxu0 0
  %3113 = vmatpush1.bf16.msra.mxu0 0
  %3114 = vmatprep.subr.bf16.mxu0 0
  %3115 = vmatpush1.bf16.msra.mxu0 0
  %3116 = vmatprep.subr.bf16.mxu0 0
  %3117 = vmatpush1.bf16.msra.mxu0 0
  %3118 = vmatprep.subr.bf16.mxu0 0
  %3119 = vmatpush1.bf16.msra.mxu0 0
  %3120 = vmatprep.mubr.bf16.mxu0 0
  %3121 = vmatmul.mubr.bf16.gmra.mrb[0].mxu0 %v3083
  %v3122 = vpop.f32.mrb[0].mxu0
  %v3123 = vadd.f32 %v3055, %v3122
  %v3124 = vpop.f32.mrb[0].mxu0
  %v3125 = vpop.f32.mrb[0].mxu0
  %v3126 = vadd.f32 %v3060, %v3125
  %v3127 = vpop.f32.mrb[0].mxu0
  %3128 = vmatprep.mubr.bf16.mxu0 0
  %3129 = vmatmul.mubr.bf16.gmra.mrb[0].mxu0 %v3086
  %v3130 = vpop.f32.mrb[0].mxu0
  %v3131 = vadd.f32 %v3065, %v3130
  %v3132 = vpop.f32.mrb[0].mxu0
  %v3133 = vpop.f32.mrb[0].mxu0
  %v3134 = vadd.f32 %v3070, %v3133
  %v3135 = vpop.f32.mrb[0].mxu0
  %3136 = vdwg.mxu0
  %v3137 = vadd.f32 %v2482, %v3123
  %v3138 = vadd.f32 %v2483, %v3126
  %v3139 = vadd.f32 %v2484, %v3131
  %v3140 = vadd.f32 %v2485, %v3134
  %v3141 = vadd.f32 %v3137, %v3138
  %v3142 = vadd.f32 %v3141, %v3139
  %v3143 = vadd.f32 %v3142, %v3140
  %v3144 = vrot.slane %v3143, 4
  %v3145 = vadd.f32 %v3143, %v3144
  %v3146 = vrot.slane %v3145, 2
  %v3147 = vadd.f32 %v3145, %v3146
  %v3148 = vrot.slane %v3147, 1
  %v3149 = vadd.f32 %v3147, %v3148
  %v3150 = vmul.f32 %v3149, %v285
  %v3151 = vsub.f32 %v3137, %v3150
  %v3152 = vsub.f32 %v3138, %v3150
  %v3153 = vsub.f32 %v3139, %v3150
  %v3154 = vsub.f32 %v3140, %v3150
  %v3155 = vmul.f32 %v3151, %v3151
  %v3156 = vmul.f32 %v3152, %v3152
  %v3157 = vmul.f32 %v3153, %v3153
  %v3158 = vmul.f32 %v3154, %v3154
  %v3159 = vadd.f32 %v3155, %v3156
  %v3160 = vadd.f32 %v3159, %v3157
  %v3161 = vadd.f32 %v3160, %v3158
  %v3162 = vrot.slane %v3161, 4
  %v3163 = vadd.f32 %v3161, %v3162
  %v3164 = vrot.slane %v3163, 2
  %v3165 = vadd.f32 %v3163, %v3164
  %v3166 = vrot.slane %v3165, 1
  %v3167 = vadd.f32 %v3165, %v3166
  %v3168 = vmul.f32 %v3167, %v285
  %v3169 = vadd.f32 %v3168, 1e-05
  %v3170 = vrsqrt.pop %v3169
  %v3171 = vmul.f32 %v3151, %v3170
  %v3172 = vmul.f32 %v3152, %v3170
  %v3173 = vmul.f32 %v3153, %v3170
  %v3174 = vmul.f32 %v3154, %v3170
  %3176 = vset.pattern.permute.xlu0 0
  %3177 = vperm.xlu0 %3176, %v224
  %v3178 = vpop.permute.xlu0 %3177
  %3181 = vset.pattern.permute.xlu0 0
  %3182 = vperm.xlu0 %3181, %v225
  %v3183 = vpop.permute.xlu0 %3182
  %3186 = vset.pattern.permute.xlu0 0
  %3187 = vperm.xlu0 %3186, %v226
  %v3188 = vpop.permute.xlu0 %3187
  %3191 = vset.pattern.permute.xlu0 0
  %3192 = vperm.xlu0 %3191, %v227
  %v3193 = vpop.permute.xlu0 %3192
  %v3195 = vmul.f32 %v3171, %v3178
  %v3196 = vmul.f32 %v3172, %v3183
  %v3197 = vmul.f32 %v3173, %v3188
  %v3198 = vmul.f32 %v3174, %v3193
  %3200 = vset.pattern.permute.xlu0 0
  %3201 = vperm.xlu0 %3200, %v228
  %v3202 = vpop.permute.xlu0 %3201
  %3205 = vset.pattern.permute.xlu0 0
  %3206 = vperm.xlu0 %3205, %v229
  %v3207 = vpop.permute.xlu0 %3206
  %3210 = vset.pattern.permute.xlu0 0
  %3211 = vperm.xlu0 %3210, %v230
  %v3212 = vpop.permute.xlu0 %3211
  %3215 = vset.pattern.permute.xlu0 0
  %3216 = vperm.xlu0 %3215, %v231
  %v3217 = vpop.permute.xlu0 %3216
  %v3219 = vadd.f32 %v3195, %v3202
  %v3220 = vadd.f32 %v3196, %v3207
  %v3221 = vadd.f32 %v3197, %v3212
  %v3222 = vadd.f32 %v3198, %v3217
  %v3223 = vpack.c.bf16 %v3220, %v3219
  %v3224 = vpack.c.bf16 %v3222, %v3221
  %3226 = vset.pattern.permute.xlu0 0
  %3227 = vperm.xlu0 %3226, %v248
  %v3228 = vpop.permute.xlu0 %3227
  %3231 = vset.pattern.permute.xlu0 0
  %3232 = vperm.xlu0 %3231, %v249
  %v3233 = vpop.permute.xlu0 %3232
  %3236 = vset.pattern.permute.xlu0 0
  %3237 = vperm.xlu0 %3236, %v250
  %v3238 = vpop.permute.xlu0 %3237
  %3241 = vset.pattern.permute.xlu0 0
  %3242 = vperm.xlu0 %3241, %v251
  %v3243 = vpop.permute.xlu0 %3242
  %3246 = vset.pattern.permute.xlu0 0
  %3247 = vperm.xlu0 %3246, %v252
  %v3248 = vpop.permute.xlu0 %3247
  %3251 = vset.pattern.permute.xlu0 0
  %3252 = vperm.xlu0 %3251, %v253
  %v3253 = vpop.permute.xlu0 %3252
  %3256 = vset.pattern.permute.xlu0 0
  %3257 = vperm.xlu0 %3256, %v254
  %v3258 = vpop.permute.xlu0 %3257
  %3261 = vset.pattern.permute.xlu0 0
  %3262 = vperm.xlu0 %3261, %v255
  %v3263 = vpop.permute.xlu0 %3262
  %3266 = vset.pattern.permute.xlu0 0
  %3267 = vperm.xlu0 %3266, %v256
  %v3268 = vpop.permute.xlu0 %3267
  %3271 = vset.pattern.permute.xlu0 0
  %3272 = vperm.xlu0 %3271, %v257
  %v3273 = vpop.permute.xlu0 %3272
  %3276 = vset.pattern.permute.xlu0 0
  %3277 = vperm.xlu0 %3276, %v258
  %v3278 = vpop.permute.xlu0 %3277
  %3281 = vset.pattern.permute.xlu0 0
  %3282 = vperm.xlu0 %3281, %v259
  %v3283 = vpop.permute.xlu0 %3282
  %3286 = vset.pattern.permute.xlu0 0
  %3287 = vperm.xlu0 %3286, %v260
  %v3288 = vpop.permute.xlu0 %3287
  %3291 = vset.pattern.permute.xlu0 0
  %3292 = vperm.xlu0 %3291, %v261
  %v3293 = vpop.permute.xlu0 %3292
  %3296 = vset.pattern.permute.xlu0 0
  %3297 = vperm.xlu0 %3296, %v262
  %v3298 = vpop.permute.xlu0 %3297
  %3301 = vset.pattern.permute.xlu0 0
  %3302 = vperm.xlu0 %3301, %v263
  %v3303 = vpop.permute.xlu0 %3302
  %v3321 = vunpack.c.l.b16 %v232
  %v3322 = vunpack.c.l.b16 %v233
  %v3323 = vunpack.c.l.b16 %v234
  %v3324 = vunpack.c.l.b16 %v235
  %v3325 = vunpack.c.l.b16 %v236
  %v3326 = vunpack.c.l.b16 %v237
  %v3327 = vunpack.c.l.b16 %v238
  %v3328 = vunpack.c.l.b16 %v239
  %v3329 = vunpack.c.l.b16 %v240
  %v3330 = vunpack.c.l.b16 %v241
  %v3331 = vunpack.c.l.b16 %v242
  %v3332 = vunpack.c.l.b16 %v243
  %v3333 = vunpack.c.l.b16 %v244
  %v3334 = vunpack.c.l.b16 %v245
  %v3335 = vunpack.c.l.b16 %v246
  %v3336 = vunpack.c.l.b16 %v247
  %v3337 = vpack.c.b16 %v3322, %v3321
  %v3338 = vpack.c.b16 %v3324, %v3323
  %v3339 = vpack.c.b16 %v3326, %v3325
  %v3340 = vpack.c.b16 %v3328, %v3327
  %v3341 = vpack.c.b16 %v3330, %v3329
  %v3342 = vpack.c.b16 %v3332, %v3331
  %v3343 = vpack.c.b16 %v3334, %v3333
  %v3344 = vpack.c.b16 %v3336, %v3335
  %v3346 = vsel %vm451, %v3337, 0
  %v3349 = vsel %vm451, %v3338, 0
  %v3352 = vsel %vm451, %v3339, 0
  %v3355 = vsel %vm451, %v3340, 0
  %v3358 = vsel %vm451, %v3341, 0
  %v3361 = vsel %vm451, %v3342, 0
  %v3364 = vsel %vm451, %v3343, 0
  %v3367 = vsel %vm451, %v3344, 0
  %3369 = vmatprep.subr.bf16.mxu0 0
  %3370 = vmatpush1.bf16.msra.mxu0 %v3223
  %3371 = vmatprep.subr.bf16.mxu0 0
  %3372 = vmatpush1.bf16.msra.mxu0 %v3224
  %3373 = vmatprep.subr.bf16.mxu0 0
  %3374 = vmatpush1.bf16.msra.mxu0 0
  %3375 = vmatprep.subr.bf16.mxu0 0
  %3376 = vmatpush1.bf16.msra.mxu0 0
  %3377 = vmatprep.subr.bf16.mxu0 0
  %3378 = vmatpush1.bf16.msra.mxu0 0
  %3379 = vmatprep.subr.bf16.mxu0 0
  %3380 = vmatpush1.bf16.msra.mxu0 0
  %3381 = vmatprep.subr.bf16.mxu0 0
  %3382 = vmatpush1.bf16.msra.mxu0 0
  %3383 = vmatprep.subr.bf16.mxu0 0
  %3384 = vmatpush1.bf16.msra.mxu0 0
  %3385 = vmatprep.subr.bf16.mxu0 0
  %3386 = vmatpush1.bf16.msra.mxu0 0
  %3387 = vmatprep.subr.bf16.mxu0 0
  %3388 = vmatpush1.bf16.msra.mxu0 0
  %3389 = vmatprep.subr.bf16.mxu0 0
  %3390 = vmatpush1.bf16.msra.mxu0 0
  %3391 = vmatprep.subr.bf16.mxu0 0
  %3392 = vmatpush1.bf16.msra.mxu0 0
  %3393 = vmatprep.subr.bf16.mxu0 0
  %3394 = vmatpush1.bf16.msra.mxu0 0
  %3395 = vmatprep.subr.bf16.mxu0 0
  %3396 = vmatpush1.bf16.msra.mxu0 0
  %3397 = vmatprep.subr.bf16.mxu0 0
  %3398 = vmatpush1.bf16.msra.mxu0 0
  %3399 = vmatprep.subr.bf16.mxu0 0
  %3400 = vmatpush1.bf16.msra.mxu0 0
  %3401 = vmatprep.mubr.bf16.mxu0 0
  %3402 = vmatmul.mubr.bf16.gmra.mrb[0].mxu0 %v3346
  %v3403 = vpop.f32.mrb[0].mxu0
  %v3404 = vadd.f32 %v3228, %v3403
  %v3405 = vpop.f32.mrb[0].mxu0
  %v3406 = vpop.f32.mrb[0].mxu0
  %v3407 = vadd.f32 %v3233, %v3406
  %v3408 = vpop.f32.mrb[0].mxu0
  %3409 = vmatprep.mubr.bf16.mxu0 0
  %3410 = vmatmul.mubr.bf16.gmra.mrb[0].mxu0 %v3349
  %v3411 = vpop.f32.mrb[0].mxu0
  %v3412 = vadd.f32 %v3238, %v3411
  %v3413 = vpop.f32.mrb[0].mxu0
  %v3414 = vpop.f32.mrb[0].mxu0
  %v3415 = vadd.f32 %v3243, %v3414
  %v3416 = vpop.f32.mrb[0].mxu0
  %3417 = vmatprep.mubr.bf16.mxu0 0
  %3418 = vmatmul.mubr.bf16.gmra.mrb[0].mxu0 %v3352
  %v3419 = vpop.f32.mrb[0].mxu0
  %v3420 = vadd.f32 %v3248, %v3419
  %v3421 = vpop.f32.mrb[0].mxu0
  %v3422 = vpop.f32.mrb[0].mxu0
  %v3423 = vadd.f32 %v3253, %v3422
  %v3424 = vpop.f32.mrb[0].mxu0
  %3425 = vmatprep.mubr.bf16.mxu0 0
  %3426 = vmatmul.mubr.bf16.gmra.mrb[0].mxu0 %v3355
  %v3427 = vpop.f32.mrb[0].mxu0
  %v3428 = vadd.f32 %v3258, %v3427
  %v3429 = vpop.f32.mrb[0].mxu0
  %v3430 = vpop.f32.mrb[0].mxu0
  %v3431 = vadd.f32 %v3263, %v3430
  %v3432 = vpop.f32.mrb[0].mxu0
  %3433 = vmatprep.mubr.bf16.mxu0 0
  %3434 = vmatmul.mubr.bf16.gmra.mrb[0].mxu0 %v3358
  %v3435 = vpop.f32.mrb[0].mxu0
  %v3436 = vadd.f32 %v3268, %v3435
  %v3437 = vpop.f32.mrb[0].mxu0
  %v3438 = vpop.f32.mrb[0].mxu0
  %v3439 = vadd.f32 %v3273, %v3438
  %v3440 = vpop.f32.mrb[0].mxu0
  %3441 = vmatprep.mubr.bf16.mxu0 0
  %3442 = vmatmul.mubr.bf16.gmra.mrb[0].mxu0 %v3361
  %v3443 = vpop.f32.mrb[0].mxu0
  %v3444 = vadd.f32 %v3278, %v3443
  %v3445 = vpop.f32.mrb[0].mxu0
  %v3446 = vpop.f32.mrb[0].mxu0
  %v3447 = vadd.f32 %v3283, %v3446
  %v3448 = vpop.f32.mrb[0].mxu0
  %3449 = vmatprep.mubr.bf16.mxu0 0
  %3450 = vmatmul.mubr.bf16.gmra.mrb[0].mxu0 %v3364
  %v3451 = vpop.f32.mrb[0].mxu0
  %v3452 = vadd.f32 %v3288, %v3451
  %v3453 = vpop.f32.mrb[0].mxu0
  %v3454 = vpop.f32.mrb[0].mxu0
  %v3455 = vadd.f32 %v3293, %v3454
  %v3456 = vpop.f32.mrb[0].mxu0
  %3457 = vmatprep.mubr.bf16.mxu0 0
  %3458 = vmatmul.mubr.bf16.gmra.mrb[0].mxu0 %v3367
  %v3459 = vpop.f32.mrb[0].mxu0
  %v3460 = vadd.f32 %v3298, %v3459
  %v3461 = vpop.f32.mrb[0].mxu0
  %v3462 = vpop.f32.mrb[0].mxu0
  %v3463 = vadd.f32 %v3303, %v3462
  %v3464 = vpop.f32.mrb[0].mxu0
  %3465 = vdwg.mxu0
  %v3466 = vmul.f32 %v3404, 0.5
  %v3467 = vmul.f32 %v3407, 0.5
  %v3468 = vmul.f32 %v3412, 0.5
  %v3469 = vmul.f32 %v3415, 0.5
  %v3470 = vmul.f32 %v3420, 0.5
  %v3471 = vmul.f32 %v3423, 0.5
  %v3472 = vmul.f32 %v3428, 0.5
  %v3473 = vmul.f32 %v3431, 0.5
  %v3474 = vmul.f32 %v3436, 0.5
  %v3475 = vmul.f32 %v3439, 0.5
  %v3476 = vmul.f32 %v3444, 0.5
  %v3477 = vmul.f32 %v3447, 0.5
  %v3478 = vmul.f32 %v3452, 0.5
  %v3479 = vmul.f32 %v3455, 0.5
  %v3480 = vmul.f32 %v3460, 0.5
  %v3481 = vmul.f32 %v3463, 0.5
  %v3482 = vmul.f32 %v3404, 0.70710677
  %v3483 = vmul.f32 %v3407, 0.70710677
  %v3484 = vmul.f32 %v3412, 0.70710677
  %v3485 = vmul.f32 %v3415, 0.70710677
  %v3486 = vmul.f32 %v3420, 0.70710677
  %v3487 = vmul.f32 %v3423, 0.70710677
  %v3488 = vmul.f32 %v3428, 0.70710677
  %v3489 = vmul.f32 %v3431, 0.70710677
  %v3490 = vmul.f32 %v3436, 0.70710677
  %v3491 = vmul.f32 %v3439, 0.70710677
  %v3492 = vmul.f32 %v3444, 0.70710677
  %v3493 = vmul.f32 %v3447, 0.70710677
  %v3494 = vmul.f32 %v3452, 0.70710677
  %v3495 = vmul.f32 %v3455, 0.70710677
  %v3496 = vmul.f32 %v3460, 0.70710677
  %v3497 = vmul.f32 %v3463, 0.70710677
  %v3498 = verf.f32.pop %v3482
  %v3499 = verf.f32.pop %v3483
  %v3500 = verf.f32.pop %v3484
  %v3501 = verf.f32.pop %v3485
  %v3502 = verf.f32.pop %v3486
  %v3503 = verf.f32.pop %v3487
  %v3504 = verf.f32.pop %v3488
  %v3505 = verf.f32.pop %v3489
  %v3506 = verf.f32.pop %v3490
  %v3507 = verf.f32.pop %v3491
  %v3508 = verf.f32.pop %v3492
  %v3509 = verf.f32.pop %v3493
  %v3510 = verf.f32.pop %v3494
  %v3511 = verf.f32.pop %v3495
  %v3512 = verf.f32.pop %v3496
  %v3513 = verf.f32.pop %v3497
  %v3514 = vadd.f32 %v3498, 1.0
  %v3515 = vadd.f32 %v3499, 1.0
  %v3516 = vadd.f32 %v3500, 1.0
  %v3517 = vadd.f32 %v3501, 1.0
  %v3518 = vadd.f32 %v3502, 1.0
  %v3519 = vadd.f32 %v3503, 1.0
  %v3520 = vadd.f32 %v3504, 1.0
  %v3521 = vadd.f32 %v3505, 1.0
  %v3522 = vadd.f32 %v3506, 1.0
  %v3523 = vadd.f32 %v3507, 1.0
  %v3524 = vadd.f32 %v3508, 1.0
  %v3525 = vadd.f32 %v3509, 1.0
  %v3526 = vadd.f32 %v3510, 1.0
  %v3527 = vadd.f32 %v3511, 1.0
  %v3528 = vadd.f32 %v3512, 1.0
  %v3529 = vadd.f32 %v3513, 1.0
  %v3530 = vmul.f32 %v3466, %v3514
  %v3531 = vmul.f32 %v3467, %v3515
  %v3532 = vmul.f32 %v3468, %v3516
  %v3533 = vmul.f32 %v3469, %v3517
  %v3534 = vmul.f32 %v3470, %v3518
  %v3535 = vmul.f32 %v3471, %v3519
  %v3536 = vmul.f32 %v3472, %v3520
  %v3537 = vmul.f32 %v3473, %v3521
  %v3538 = vmul.f32 %v3474, %v3522
  %v3539 = vmul.f32 %v3475, %v3523
  %v3540 = vmul.f32 %v3476, %v3524
  %v3541 = vmul.f32 %v3477, %v3525
  %v3542 = vmul.f32 %v3478, %v3526
  %v3543 = vmul.f32 %v3479, %v3527
  %v3544 = vmul.f32 %v3480, %v3528
  %v3545 = vmul.f32 %v3481, %v3529
  %v3546 = vpack.c.bf16 %v3531, %v3530
  %v3547 = vpack.c.bf16 %v3533, %v3532
  %v3548 = vpack.c.bf16 %v3535, %v3534
  %v3549 = vpack.c.bf16 %v3537, %v3536
  %v3550 = vpack.c.bf16 %v3539, %v3538
  %v3551 = vpack.c.bf16 %v3541, %v3540
  %v3552 = vpack.c.bf16 %v3543, %v3542
  %v3553 = vpack.c.bf16 %v3545, %v3544
  %3555 = vset.pattern.permute.xlu0 0
  %3556 = vperm.xlu0 %3555, %v268
  %v3557 = vpop.permute.xlu0 %3556
  %3560 = vset.pattern.permute.xlu0 0
  %3561 = vperm.xlu0 %3560, %v269
  %v3562 = vpop.permute.xlu0 %3561
  %3565 = vset.pattern.permute.xlu0 0
  %3566 = vperm.xlu0 %3565, %v270
  %v3567 = vpop.permute.xlu0 %3566
  %3570 = vset.pattern.permute.xlu0 0
  %3571 = vperm.xlu0 %3570, %v271
  %v3572 = vpop.permute.xlu0 %3571
  %v3578 = vunpack.c.l.b16 %v264
  %v3579 = vunpack.c.l.b16 %v265
  %v3580 = vunpack.c.l.b16 %v266
  %v3581 = vunpack.c.l.b16 %v267
  %v3582 = vpack.c.b16 %v3579, %v3578
  %v3583 = vpack.c.b16 %v3581, %v3580
  %3586 = vmatprep.subr.bf16.mxu0 0
  %3587 = vmatpush1.bf16.msra.mxu0 %v3546
  %3588 = vmatprep.subr.bf16.mxu0 0
  %3589 = vmatpush1.bf16.msra.mxu0 %v3547
  %3590 = vmatprep.subr.bf16.mxu0 0
  %3591 = vmatpush1.bf16.msra.mxu0 %v3548
  %3592 = vmatprep.subr.bf16.mxu0 0
  %3593 = vmatpush1.bf16.msra.mxu0 %v3549
  %3594 = vmatprep.subr.bf16.mxu0 0
  %3595 = vmatpush1.bf16.msra.mxu0 %v3550
  %3596 = vmatprep.subr.bf16.mxu0 0
  %3597 = vmatpush1.bf16.msra.mxu0 %v3551
  %3598 = vmatprep.subr.bf16.mxu0 0
  %3599 = vmatpush1.bf16.msra.mxu0 %v3552
  %3600 = vmatprep.subr.bf16.mxu0 0
  %3601 = vmatpush1.bf16.msra.mxu0 %v3553
  %3602 = vmatprep.subr.bf16.mxu0 0
  %3603 = vmatpush1.bf16.msra.mxu0 0
  %3604 = vmatprep.subr.bf16.mxu0 0
  %3605 = vmatpush1.bf16.msra.mxu0 0
  %3606 = vmatprep.subr.bf16.mxu0 0
  %3607 = vmatpush1.bf16.msra.mxu0 0
  %3608 = vmatprep.subr.bf16.mxu0 0
  %3609 = vmatpush1.bf16.msra.mxu0 0
  %3610 = vmatprep.subr.bf16.mxu0 0
  %3611 = vmatpush1.bf16.msra.mxu0 0
  %3612 = vmatprep.subr.bf16.mxu0 0
  %3613 = vmatpush1.bf16.msra.mxu0 0
  %3614 = vmatprep.subr.bf16.mxu0 0
  %3615 = vmatpush1.bf16.msra.mxu0 0
  %3616 = vmatprep.subr.bf16.mxu0 0
  %3617 = vmatpush1.bf16.msra.mxu0 0
  %3618 = vmatprep.mubr.bf16.mxu0 0
  %3619 = vmatmul.mubr.bf16.gmra.mrb[0].mxu0 %v3582
  %v3620 = vpop.f32.mrb[0].mxu0
  %v3621 = vadd.f32 %v3557, %v3620
  %v3622 = vpop.f32.mrb[0].mxu0
  %v3623 = vpop.f32.mrb[0].mxu0
  %v3624 = vadd.f32 %v3562, %v3623
  %v3625 = vpop.f32.mrb[0].mxu0
  %3626 = vmatprep.mubr.bf16.mxu0 0
  %3627 = vmatmul.mubr.bf16.gmra.mrb[0].mxu0 %v3583
  %v3628 = vpop.f32.mrb[0].mxu0
  %v3629 = vadd.f32 %v3567, %v3628
  %v3630 = vpop.f32.mrb[0].mxu0
  %v3631 = vpop.f32.mrb[0].mxu0
  %v3632 = vadd.f32 %v3572, %v3631
  %v3633 = vpop.f32.mrb[0].mxu0
  %3634 = vdwg.mxu0
  %v3635 = vadd.f32 %v3137, %v3621
  %v3636 = vadd.f32 %v3138, %v3624
  %v3637 = vadd.f32 %v3139, %v3629
  %v3638 = vadd.f32 %v3140, %v3632
  %v3639 = vadd.f32 %v3635, %v272
  %v3640 = vadd.f32 %v3636, %v273
  %v3641 = vadd.f32 %v3637, %v274
  %v3642 = vadd.f32 %v3638, %v275
  %3643 = vst [vmem:[%s26] sm:$0xff] %v3639
  %3644 = vst [vmem:[%s26 + $0x8] sm:$0xff] %v3640
  %3645 = vst [vmem:[%s26 + $0x10] sm:$0xff] %v3641
  %3646 = vst [vmem:[%s26 + $0x18] sm:$0xff] %v3642
  // Predicated region
  $region106: #{shared_block_forward.1} parent=0 // pred_check
    _
  $region107: #{shared_block_forward.1} parent=0 // pred_check_branch
    %3648 = sbr.rel (0) target = $region109
  $region108: #{shared_block_forward.1} parent=0 // pred_region
    _
  $region109: #{shared_block_forward.1} parent=0 // pred_fallthru
    _
  // Predicated region
  $region110: #{shared_block_forward.1} parent=0 // pred_check
    _
  $region111: #{shared_block_forward.1} parent=0 // pred_check_branch
    %3650 = sbr.rel (0) target = $region113
  $region112: #{shared_block_forward.1} parent=0 // pred_region
    _
  $region113: #{shared_block_forward.1} parent=0 // pred_fallthru
    _

</llo_original>
